<compile_context>
chip_gen: v7x
topology: tpu7x:2x2x1
jax: 0.10.0
libtpu: 0.0.40
codegen_flags: <defaults>
</compile_context>

<pallas_src>
import functools

import jax
import jax.numpy as jnp
from jax import lax
from jax.experimental import pallas as pl
from jax.experimental.pallas import tpu as pltpu


_LANE = 128      # lane tile
_SUBLANE = 8     # sublane tile


def _round_up(x, m):
    return (x + m - 1) // m * m


def _vmem_limits():
    """(vmem_limit_bytes, block_budget_bytes) derived from the actual part.

    v5e/v6e have 128 MiB VMEM -> ~96 MiB scoped limit; v7x has 64 MiB ->
    ~48 MiB.  The block budget leaves headroom for compiler scratch and the
    double-buffered constants.
    """
    try:
        cap = int(pltpu.get_tpu_info().vmem_capacity_bytes)
    except Exception:  # query unavailable -> assume the smallest part (v7x, 64 MiB)
        cap = 64 * 1024 * 1024
    limit = min(cap * 3 // 4, 96 * 1024 * 1024)
    budget = limit * 3 // 5
    return limit, budget


def _shift_lanes(v, s, use_roll):
    """y[:, j] = v[:, j + s].  Out-of-range columns are zero (concat path) or
    wrapped garbage (roll path); the caller masks them either way."""
    if s == 0:
        return v
    blk = v.shape[-1]
    if use_roll:
        # XLU lane rotate: no zero slab / full-width concatenate per tap.
        return pltpu.roll(v, shift=(-s) % blk, axis=1)
    c = v.shape[0]
    zeros = jnp.zeros((c, abs(s)), v.dtype)
    if s > 0:
        return jnp.concatenate([v[:, s:], zeros], axis=1)
    return jnp.concatenate([zeros, v[:, :blk + s]], axis=1)


def _double_conv_kernel(x_ref, mask_ref, w1_ref, b1_ref, w2_ref, b2_ref,
                        down_ref, *, K, pad, compute_dtype, use_roll):
    """One batch block of DoubleConv: x (Cin, blk) -> down (Cout, blk).

    Each Conv1d = K accumulated (Cout, Cin) x (Cin, blk) MXU matmuls whose
    outputs are lane-shifted and masked (output-side accumulation): no im2col
    slab and no K live shifted activation copies.
    """

    def conv_relu(inp_f32, w_ref, b_ref):
        inp = inp_f32.astype(compute_dtype)   # bf16 MXU operand (f32 accumulation)
        acc = None
        for k in range(K):                    # static, unrolled over taps
            s = k - pad
            z = jnp.dot(w_ref[k], inp, preferred_element_type=jnp.float32)
            if s != 0:
                # Per-tap mask zeroes conv zero-padding positions AND any column
                # whose shifted source would leak across a flattened batch
                # segment (it also kills roll wrap-around, since block edges
                # coincide with segment edges).
                z = _shift_lanes(z, s, use_roll) * mask_ref[pl.ds(k, 1), :]
            acc = z if acc is None else acc + z
        return jnp.maximum(acc + b_ref[...], 0.0)

    h = conv_relu(x_ref[...], w1_ref, b1_ref)
    y = conv_relu(h, w2_ref, b2_ref)
    down_ref[...] = y.astype(down_ref.dtype)


def _pick_batch_block(batch, seg_len, cin_p, cout_p, K, w_itemsize, budget):
    """Pick the batch block size (a divisor of `batch`).

    Constraints / preferences:
      * lane extent b*seg_len is a multiple of 128 or covers the full array
        (BlockSpec legality);
      * estimated VMEM footprint (double-buffered I/O blocks + constants +
        in-body temporaries) fits the budget;
      * prefer grids of >= 2 (ideally even) steps so v7x's two TensorCores and
        input/output double buffering are usable; then take the largest block.
    """
    def est_bytes(b):
        blk = b * seg_len
        act4 = 4 * blk
        io = 2 * (cin_p + cout_p) * act4            # double-buffered x / down blocks
        mask = 2 * K * act4                         # constant, default double-buffered
        weights = 2 * (K * cout_p * (cin_p + cout_p)) * w_itemsize + 2 * 2 * cout_p * 4
        temps = (cin_p + 4 * cout_p) * act4         # casts, z, shifted z, acc, h (conservative)
        return io + mask + weights + temps

    legal = [b for b in range(1, batch + 1)
             if batch % b == 0 and (b == batch or (b * seg_len) % _LANE == 0)]
    fitting = [b for b in legal if est_bytes(b) <= budget]
    if fitting:
        even = [b for b in fitting if batch // b >= 2 and (batch // b) % 2 == 0]
        multi = [b for b in fitting if batch // b >= 2]
        pool = even or multi or fitting
        return max(pool)
    # Nothing fits the budget: take the smallest legal block and rely on the
    # headroom between the budget and the explicit vmem_limit_bytes.
    return min(legal)


def double_conv_flat(x_flat, w1, b1, w2, b2, *, batch, seg_len, kernel_size,
                     padding, compute_dtype, vmem_limit, vmem_budget):
    """Fused Conv1d->ReLU->Conv1d->ReLU on a (C, batch*seg_len) activation tile."""
    cin_p, total = x_flat.shape
    assert total == batch * seg_len
    cout_p = w1.shape[0]
    K = kernel_size

    b_blk = _pick_batch_block(batch, seg_len, cin_p, cout_p, K,
                              jnp.dtype(compute_dtype).itemsize, vmem_budget)
    blk = b_blk * seg_len
    grid = (batch // b_blk,)
    use_roll = (blk % _LANE == 0)

    # (Cout, Cin, K) -> (K, Cout, Cin); weights cast to the MXU operand dtype
    # on the host (halves their DMA when bf16), biases stay f32.
    w1t = jnp.transpose(w1, (2, 0, 1)).astype(compute_dtype)
    w2t = jnp.transpose(w2, (2, 0, 1)).astype(compute_dtype)
    b1c = b1.reshape(cout_p, 1).astype(jnp.float32)
    b2c = b2.reshape(cout_p, 1).astype(jnp.float32)

    # Per-tap validity masks for ONE block (K, blk).  blk is a multiple of
    # seg_len, so the identical block serves every grid step -> constant
    # index_map below, DMA'd once (no per-step mask traffic).
    pos = jnp.arange(blk, dtype=jnp.int32) % seg_len
    mask = jnp.stack(
        [((pos + (k - padding) >= 0) & (pos + (k - padding) < seg_len))
         for k in range(K)], axis=0).astype(jnp.float32)

    kernel = functools.partial(_double_conv_kernel, K=K, pad=padding,
                               compute_dtype=compute_dtype, use_roll=use_roll)
    return pl.pallas_call(
        kernel,
        out_shape=jax.ShapeDtypeStruct((cout_p, total), x_flat.dtype),
        grid_spec=pltpu.PrefetchScalarGridSpec(
            num_scalar_prefetch=0,
            grid=grid,
            in_specs=[
                pl.BlockSpec((cin_p, blk), lambda i: (0, i)),
                # Constant operands (same block index every step -> DMA'd once).
                # They are tiny; default double buffering is accepted instead of
                # risking pl.Buffered(1) support across jax versions.
                pl.BlockSpec((K, blk), lambda i: (0, 0)),
                pl.BlockSpec((K, cout_p, cin_p), lambda i: (0, 0, 0)),
                pl.BlockSpec((cout_p, 1), lambda i: (0, 0)),
                pl.BlockSpec((K, cout_p, cout_p), lambda i: (0, 0, 0)),
                pl.BlockSpec((cout_p, 1), lambda i: (0, 0)),
            ],
            out_specs=pl.BlockSpec((cout_p, blk), lambda i: (0, i)),
        ),
        compiler_params=pltpu.CompilerParams(
            dimension_semantics=("parallel",),
            vmem_limit_bytes=vmem_limit,
        ),
    )(x_flat, mask, w1t, b1c, w2t, b2c)


def down_seq_forward(x, params, *, kernel_size=3, padding=None,
                     compute_dtype=jnp.bfloat16):
    """Pallas forward pass of DownSeq.

    x: (N, in_channels, L) float32
    params: list of (w1, b1, w2, b2) per DownSample step in PyTorch Conv1d
            layouts: w*: (Cout, Cin, K), b*: (Cout,)
    compute_dtype: MXU operand dtype (bf16 is native on v5e/v6e/v7x; results
            accumulate in f32 either way; pass jnp.float32 for bit accuracy).
    Returns (x_out, down_list) with the same semantics as DownSeq.forward.
    """
    if padding is None:
        padding = kernel_size // 2
    if 2 * padding != kernel_size - 1:
        raise NotImplementedError(
            "Only 'same'-length convolutions (stride 1, 2*padding == K-1) are supported.")

    vmem_limit, vmem_budget = _vmem_limits()

    n, c0, seq = x.shape
    # Lane-dense layout: (C, N*L); zero-pad channels to the sublane tile (8).
    c0p = _round_up(c0, _SUBLANE)
    cur = jnp.transpose(x, (1, 0, 2)).reshape(c0, n * seq)
    if c0p != c0:
        cur = jnp.pad(cur, ((0, c0p - c0), (0, 0)))

    cur_len = seq
    cin_real, cin_pad = c0, c0p
    down_list = []
    for (w1, b1, w2, b2) in params:
        cout = w1.shape[0]
        cout_p = _round_up(cout, _SUBLANE)
        w1p = jnp.zeros((cout_p, cin_pad, kernel_size), w1.dtype).at[:cout, :cin_real, :].set(w1)
        b1p = jnp.zeros((cout_p,), b1.dtype).at[:cout].set(b1)
        w2p = jnp.zeros((cout_p, cout_p, kernel_size), w2.dtype).at[:cout, :cout, :].set(w2)
        b2p = jnp.zeros((cout_p,), b2.dtype).at[:cout].set(b2)

        down_flat = double_conv_flat(
            cur, w1p, b1p, w2p, b2p, batch=n, seg_len=cur_len,
            kernel_size=kernel_size, padding=padding,
            compute_dtype=compute_dtype,
            vmem_limit=vmem_limit, vmem_budget=vmem_budget)

        d3 = down_flat.reshape(cout_p, n, cur_len)       # metadata-only reshape
        # Skip connection back in PyTorch NCL layout (drop the channel padding).
        down_list.append(jnp.transpose(d3, (1, 0, 2))[:, :cout, :])

        # MaxPool1d(kernel_size=2, stride=2): single fused XLA pass over
        # down_flat (reshape is a bitcast; the max fuses with it).
        # TODO(synk): fold the pool into the Pallas kernel epilogue (needs a
        # stride-2 lane compaction without a cheap Mosaic lowering today).
        half = cur_len // 2
        cur = jnp.max(d3[:, :, :2 * half].reshape(cout_p, n, half, 2),
                      axis=-1).reshape(cout_p, n * half)

        cur_len = half
        cin_real, cin_pad = cout, cout_p

    x_out = jnp.transpose(cur.reshape(cin_pad, n, cur_len), (1, 0, 2))[:, :cin_real, :]
    return x_out, down_list


def _reference_downseq(x, params, padding):
    """Plain-JAX reference matching the PyTorch DownSeq forward."""
    def conv1d(inp, w, b):
        out = lax.conv_general_dilated(
            inp, w, window_strides=(1,), padding=[(padding, padding)],
            dimension_numbers=("NCH", "OIH", "NCH"))
        return out + b[None, :, None]

    downs, cur = [], x
    for (w1, b1, w2, b2) in params:
        h = jnp.maximum(conv1d(cur, w1, b1), 0.0)
        d = jnp.maximum(conv1d(h, w2, b2), 0.0)
        downs.append(d)
        nn_, cc, ll = d.shape
        half = ll // 2
        cur = jnp.max(d[:, :, :2 * half].reshape(nn_, cc, half, 2), axis=-1)
    return cur, downs


if __name__ == "__main__":
    N, IN_CH, CHANNELS, STEPS, L, K = 4, 3, 8, 4, 64, 3

    key = jax.random.PRNGKey(0)
    params = []
    cin = IN_CH
    for i in range(STEPS):
        cout = CHANNELS if i == 0 else cin * 2
        key, k1, k2, k3, k4 = jax.random.split(key, 5)
        bound1 = 1.0 / (cin * K) ** 0.5
        bound2 = 1.0 / (cout * K) ** 0.5
        params.append((
            jax.random.uniform(k1, (cout, cin, K), jnp.float32, -bound1, bound1),
            jax.random.uniform(k2, (cout,), jnp.float32, -bound1, bound1),
            jax.random.uniform(k3, (cout, cout, K), jnp.float32, -bound2, bound2),
            jax.random.uniform(k4, (cout,), jnp.float32, -bound2, bound2),
        ))
        cin = cout
    key, kx = jax.random.split(key)
    x = jax.random.normal(kx, (N, IN_CH, L), dtype=jnp.float32)

    ref_x, ref_downs = _reference_downseq(x, params, K // 2)

    # 1) f32 MXU operands: tight structural check against the XLA reference.
    fwd_f32 = jax.jit(functools.partial(down_seq_forward, kernel_size=K,
                                        compute_dtype=jnp.float32))
    x32, d32 = fwd_f32(x, params)
    jax.block_until_ready((x32, d32))
    assert x32.shape == ref_x.shape, (x32.shape, ref_x.shape)
    assert jnp.allclose(x32, ref_x, atol=1e-4, rtol=1e-4), "f32 final output mismatch"
    assert len(d32) == len(ref_downs)
    for i, (d, rd) in enumerate(zip(d32, ref_downs)):
        assert d.shape == rd.shape, (i, d.shape, rd.shape)
        assert jnp.allclose(d, rd, atol=1e-4, rtol=1e-4), f"f32 down[{i}] mismatch"

    # 2) bf16 MXU operands (default fast path): bf16-appropriate tolerance.
    fwd_bf16 = jax.jit(functools.partial(down_seq_forward, kernel_size=K,
                                         compute_dtype=jnp.bfloat16))
    xbf, dbf = fwd_bf16(x, params)
    jax.block_until_ready((xbf, dbf))
    assert xbf.shape == ref_x.shape
    assert jnp.allclose(xbf, ref_x, atol=5e-2, rtol=5e-2), "bf16 final output mismatch"
    for i, (d, rd) in enumerate(zip(dbf, ref_downs)):
        assert d.shape == rd.shape
        assert jnp.allclose(d, rd, atol=5e-2, rtol=5e-2), f"bf16 down[{i}] mismatch"

    print("KERNEL_OK")
</pallas_src>

<mosaic_0001>
module attributes {stable_mosaic.version = 11 : i64} {
  func.func @_double_conv_kernel(%arg0: i32, %arg1: memref<8x128xf32, #tpu.memory_space<vmem>>, %arg2: memref<3x128xf32, #tpu.memory_space<vmem>>, %arg3: memref<3x16x8xf32, #tpu.memory_space<vmem>>, %arg4: memref<16x1xf32, #tpu.memory_space<vmem>>, %arg5: memref<3x16x16xf32, #tpu.memory_space<vmem>>, %arg6: memref<16x1xf32, #tpu.memory_space<vmem>>, %arg7: memref<16x128xf32, #tpu.memory_space<vmem>>) attributes {dimension_semantics = [#tpu.dimension_semantics<parallel>], iteration_bounds = array<i64: 1>, scalar_prefetch = 0 : i64, scratch_operands = 0 : i64, tpu.core_type = #tpu.core_type<tc>, window_params = [{transform_indices = @transform_0, window_bounds = array<i64: 8, 128>}, {pipeline_mode = #tpu.pipeline_mode<synchronous>, transform_indices = @transform_1, window_bounds = array<i64: 3, 128>}, {pipeline_mode = #tpu.pipeline_mode<synchronous>, transform_indices = @transform_2, window_bounds = array<i64: 3, 16, 8>}, {pipeline_mode = #tpu.pipeline_mode<synchronous>, transform_indices = @transform_3, window_bounds = array<i64: 16, 1>}, {pipeline_mode = #tpu.pipeline_mode<synchronous>, transform_indices = @transform_4, window_bounds = array<i64: 3, 16, 16>}, {pipeline_mode = #tpu.pipeline_mode<synchronous>, transform_indices = @transform_5, window_bounds = array<i64: 16, 1>}, {transform_indices = @transform_6, window_bounds = array<i64: 16, 128>}]} {
    %c0 = arith.constant 0 : index
    %c0_0 = arith.constant 0 : index
    %0 = vector.load %arg1[%c0, %c0_0] : memref<8x128xf32, #tpu.memory_space<vmem>>, vector<8x128xf32>
    %c0_1 = arith.constant 0 : index
    %c0_2 = arith.constant 0 : index
    %c0_3 = arith.constant 0 : index
    %1 = vector.load %arg3[%c0_1, %c0_2, %c0_3] : memref<3x16x8xf32, #tpu.memory_space<vmem>>, vector<1x16x8xf32>
    %2 = vector.shape_cast %1 : vector<1x16x8xf32> to vector<16x8xf32>
    %cst = arith.constant dense<0.000000e+00> : vector<16x128xf32>
    %3 = tpu.matmul %2, %0, %cst {dimension_numbers = #tpu.dot_dimension_numbers<[1], [0], [0], [1], [0, 0, 1, 1], [], []>} : vector<16x8xf32>, vector<8x128xf32>, vector<16x128xf32> -> vector<16x128xf32>
    %c1_i32 = arith.constant 1 : i32
    %4 = tpu.dynamic_rotate %3 by %c1_i32 dim 1 : vector<16x128xf32>, i32 -> vector<16x128xf32>
    %c0_4 = arith.constant 0 : index
    %c0_5 = arith.constant 0 : index
    %5 = vector.load %arg2[%c0_4, %c0_5] : memref<3x128xf32, #tpu.memory_space<vmem>>, vector<1x128xf32>
    %6 = vector.broadcast %5 : vector<1x128xf32> to vector<16x128xf32>
    %7 = arith.mulf %4, %6 : vector<16x128xf32>
    %c1 = arith.constant 1 : index
    %c0_6 = arith.constant 0 : index
    %c0_7 = arith.constant 0 : index
    %8 = vector.load %arg3[%c1, %c0_6, %c0_7] : memref<3x16x8xf32, #tpu.memory_space<vmem>>, vector<1x16x8xf32>
    %9 = vector.shape_cast %8 : vector<1x16x8xf32> to vector<16x8xf32>
    %cst_8 = arith.constant dense<0.000000e+00> : vector<16x128xf32>
    %10 = tpu.matmul %9, %0, %cst_8 {dimension_numbers = #tpu.dot_dimension_numbers<[1], [0], [0], [1], [0, 0, 1, 1], [], []>} : vector<16x8xf32>, vector<8x128xf32>, vector<16x128xf32> -> vector<16x128xf32>
    %11 = arith.addf %7, %10 : vector<16x128xf32>
    %c2 = arith.constant 2 : index
    %c0_9 = arith.constant 0 : index
    %c0_10 = arith.constant 0 : index
    %12 = vector.load %arg3[%c2, %c0_9, %c0_10] : memref<3x16x8xf32, #tpu.memory_space<vmem>>, vector<1x16x8xf32>
    %13 = vector.shape_cast %12 : vector<1x16x8xf32> to vector<16x8xf32>
    %cst_11 = arith.constant dense<0.000000e+00> : vector<16x128xf32>
    %14 = tpu.matmul %13, %0, %cst_11 {dimension_numbers = #tpu.dot_dimension_numbers<[1], [0], [0], [1], [0, 0, 1, 1], [], []>} : vector<16x8xf32>, vector<8x128xf32>, vector<16x128xf32> -> vector<16x128xf32>
    %c127_i32 = arith.constant 127 : i32
    %15 = tpu.dynamic_rotate %14 by %c127_i32 dim 1 : vector<16x128xf32>, i32 -> vector<16x128xf32>
    %c2_12 = arith.constant 2 : index
    %c0_13 = arith.constant 0 : index
    %16 = vector.load %arg2[%c2_12, %c0_13] : memref<3x128xf32, #tpu.memory_space<vmem>>, vector<1x128xf32>
    %17 = vector.broadcast %16 : vector<1x128xf32> to vector<16x128xf32>
    %18 = arith.mulf %15, %17 : vector<16x128xf32>
    %19 = arith.addf %11, %18 : vector<16x128xf32>
    %c0_14 = arith.constant 0 : index
    %c0_15 = arith.constant 0 : index
    %20 = vector.load %arg4[%c0_14, %c0_15] : memref<16x1xf32, #tpu.memory_space<vmem>>, vector<16x1xf32>
    %21 = vector.broadcast %20 : vector<16x1xf32> to vector<16x128xf32>
    %22 = arith.addf %19, %21 : vector<16x128xf32>
    %cst_16 = arith.constant 0.000000e+00 : f32
    %23 = vector.broadcast %cst_16 : f32 to vector<16x128xf32>
    %24 = arith.maximumf %22, %23 : vector<16x128xf32>
    %c0_17 = arith.constant 0 : index
    %c0_18 = arith.constant 0 : index
    %c0_19 = arith.constant 0 : index
    %25 = vector.load %arg5[%c0_17, %c0_18, %c0_19] : memref<3x16x16xf32, #tpu.memory_space<vmem>>, vector<1x16x16xf32>
    %26 = vector.shape_cast %25 : vector<1x16x16xf32> to vector<16x16xf32>
    %cst_20 = arith.constant dense<0.000000e+00> : vector<16x128xf32>
    %27 = tpu.matmul %26, %24, %cst_20 {dimension_numbers = #tpu.dot_dimension_numbers<[1], [0], [0], [1], [0, 0, 1, 1], [], []>} : vector<16x16xf32>, vector<16x128xf32>, vector<16x128xf32> -> vector<16x128xf32>
    %c1_i32_21 = arith.constant 1 : i32
    %28 = tpu.dynamic_rotate %27 by %c1_i32_21 dim 1 : vector<16x128xf32>, i32 -> vector<16x128xf32>
    %c0_22 = arith.constant 0 : index
    %c0_23 = arith.constant 0 : index
    %29 = vector.load %arg2[%c0_22, %c0_23] : memref<3x128xf32, #tpu.memory_space<vmem>>, vector<1x128xf32>
    %30 = vector.broadcast %29 : vector<1x128xf32> to vector<16x128xf32>
    %31 = arith.mulf %28, %30 : vector<16x128xf32>
    %c1_24 = arith.constant 1 : index
    %c0_25 = arith.constant 0 : index
    %c0_26 = arith.constant 0 : index
    %32 = vector.load %arg5[%c1_24, %c0_25, %c0_26] : memref<3x16x16xf32, #tpu.memory_space<vmem>>, vector<1x16x16xf32>
    %33 = vector.shape_cast %32 : vector<1x16x16xf32> to vector<16x16xf32>
    %cst_27 = arith.constant dense<0.000000e+00> : vector<16x128xf32>
    %34 = tpu.matmul %33, %24, %cst_27 {dimension_numbers = #tpu.dot_dimension_numbers<[1], [0], [0], [1], [0, 0, 1, 1], [], []>} : vector<16x16xf32>, vector<16x128xf32>, vector<16x128xf32> -> vector<16x128xf32>
    %35 = arith.addf %31, %34 : vector<16x128xf32>
    %c2_28 = arith.constant 2 : index
    %c0_29 = arith.constant 0 : index
    %c0_30 = arith.constant 0 : index
    %36 = vector.load %arg5[%c2_28, %c0_29, %c0_30] : memref<3x16x16xf32, #tpu.memory_space<vmem>>, vector<1x16x16xf32>
    %37 = vector.shape_cast %36 : vector<1x16x16xf32> to vector<16x16xf32>
    %cst_31 = arith.constant dense<0.000000e+00> : vector<16x128xf32>
    %38 = tpu.matmul %37, %24, %cst_31 {dimension_numbers = #tpu.dot_dimension_numbers<[1], [0], [0], [1], [0, 0, 1, 1], [], []>} : vector<16x16xf32>, vector<16x128xf32>, vector<16x128xf32> -> vector<16x128xf32>
    %c127_i32_32 = arith.constant 127 : i32
    %39 = tpu.dynamic_rotate %38 by %c127_i32_32 dim 1 : vector<16x128xf32>, i32 -> vector<16x128xf32>
    %c2_33 = arith.constant 2 : index
    %c0_34 = arith.constant 0 : index
    %40 = vector.load %arg2[%c2_33, %c0_34] : memref<3x128xf32, #tpu.memory_space<vmem>>, vector<1x128xf32>
    %41 = vector.broadcast %40 : vector<1x128xf32> to vector<16x128xf32>
    %42 = arith.mulf %39, %41 : vector<16x128xf32>
    %43 = arith.addf %35, %42 : vector<16x128xf32>
    %c0_35 = arith.constant 0 : index
    %c0_36 = arith.constant 0 : index
    %44 = vector.load %arg6[%c0_35, %c0_36] : memref<16x1xf32, #tpu.memory_space<vmem>>, vector<16x1xf32>
    %45 = vector.broadcast %44 : vector<16x1xf32> to vector<16x128xf32>
    %46 = arith.addf %43, %45 : vector<16x128xf32>
    %cst_37 = arith.constant 0.000000e+00 : f32
    %47 = vector.broadcast %cst_37 : f32 to vector<16x128xf32>
    %48 = arith.maximumf %46, %47 : vector<16x128xf32>
    %c0_38 = arith.constant 0 : index
    %c0_39 = arith.constant 0 : index
    %49 = vector.load %arg7[%c0_38, %c0_39] : memref<16x128xf32, #tpu.memory_space<vmem>>, vector<16x128xf32>
    tpu.vector_store %arg7[%c0_38, %c0_39], %48 {strides = array<i32>} : memref<16x128xf32, #tpu.memory_space<vmem>>, vector<16x128xf32>,
    return
  }
  func.func @transform_0(%arg0: i32) -> (i32, i32) {
    %c0_i32 = arith.constant 0 : i32
    %c0_i32_0 = arith.constant 0 : i32
    return %c0_i32, %arg0 : i32, i32
  }
  func.func @transform_1(%arg0: i32) -> (i32, i32) {
    %c0_i32 = arith.constant 0 : i32
    %c0_i32_0 = arith.constant 0 : i32
    %c0_i32_1 = arith.constant 0 : i32
    return %c0_i32, %c0_i32_0 : i32, i32
  }
  func.func @transform_2(%arg0: i32) -> (i32, i32, i32) {
    %c0_i32 = arith.constant 0 : i32
    %c0_i32_0 = arith.constant 0 : i32
    %c0_i32_1 = arith.constant 0 : i32
    %c0_i32_2 = arith.constant 0 : i32
    return %c0_i32, %c0_i32_0, %c0_i32_1 : i32, i32, i32
  }
  func.func @transform_3(%arg0: i32) -> (i32, i32) {
    %c0_i32 = arith.constant 0 : i32
    %c0_i32_0 = arith.constant 0 : i32
    %c0_i32_1 = arith.constant 0 : i32
    return %c0_i32, %c0_i32_0 : i32, i32
  }
  func.func @transform_4(%arg0: i32) -> (i32, i32, i32) {
    %c0_i32 = arith.constant 0 : i32
    %c0_i32_0 = arith.constant 0 : i32
    %c0_i32_1 = arith.constant 0 : i32
    %c0_i32_2 = arith.constant 0 : i32
    return %c0_i32, %c0_i32_0, %c0_i32_1 : i32, i32, i32
  }
  func.func @transform_5(%arg0: i32) -> (i32, i32) {
    %c0_i32 = arith.constant 0 : i32
    %c0_i32_0 = arith.constant 0 : i32
    %c0_i32_1 = arith.constant 0 : i32
    return %c0_i32, %c0_i32_0 : i32, i32
  }
  func.func @transform_6(%arg0: i32) -> (i32, i32) {
    %c0_i32 = arith.constant 0 : i32
    %c0_i32_0 = arith.constant 0 : i32
    return %c0_i32, %arg0 : i32, i32
  }
}

module attributes {stable_mosaic.version = 11 : i64} {
  func.func @_double_conv_kernel(%arg0: i32, %arg1: memref<8x128xf32, #tpu.memory_space<vmem>>, %arg2: memref<3x128xf32, #tpu.memory_space<vmem>>, %arg3: memref<3x8x8xf32, #tpu.memory_space<vmem>>, %arg4: memref<8x1xf32, #tpu.memory_space<vmem>>, %arg5: memref<3x8x8xf32, #tpu.memory_space<vmem>>, %arg6: memref<8x1xf32, #tpu.memory_space<vmem>>, %arg7: memref<8x128xf32, #tpu.memory_space<vmem>>) attributes {dimension_semantics = [#tpu.dimension_semantics<parallel>], iteration_bounds = array<i64: 2>, scalar_prefetch = 0 : i64, scratch_operands = 0 : i64, tpu.core_type = #tpu.core_type<tc>, window_params = [{transform_indices = @transform_0, window_bounds = array<i64: 8, 128>}, {pipeline_mode = #tpu.pipeline_mode<synchronous>, transform_indices = @transform_1, window_bounds = array<i64: 3, 128>}, {pipeline_mode = #tpu.pipeline_mode<synchronous>, transform_indices = @transform_2, window_bounds = array<i64: 3, 8, 8>}, {pipeline_mode = #tpu.pipeline_mode<synchronous>, transform_indices = @transform_3, window_bounds = array<i64: 8, 1>}, {pipeline_mode = #tpu.pipeline_mode<synchronous>, transform_indices = @transform_4, window_bounds = array<i64: 3, 8, 8>}, {pipeline_mode = #tpu.pipeline_mode<synchronous>, transform_indices = @transform_5, window_bounds = array<i64: 8, 1>}, {transform_indices = @transform_6, window_bounds = array<i64: 8, 128>}]} {
    %c0 = arith.constant 0 : index
    %c0_0 = arith.constant 0 : index
    %0 = vector.load %arg1[%c0, %c0_0] : memref<8x128xf32, #tpu.memory_space<vmem>>, vector<8x128xf32>
    %c0_1 = arith.constant 0 : index
    %c0_2 = arith.constant 0 : index
    %c0_3 = arith.constant 0 : index
    %1 = vector.load %arg3[%c0_1, %c0_2, %c0_3] : memref<3x8x8xf32, #tpu.memory_space<vmem>>, vector<1x8x8xf32>
    %2 = vector.shape_cast %1 : vector<1x8x8xf32> to vector<8x8xf32>
    %cst = arith.constant dense<0.000000e+00> : vector<8x128xf32>
    %3 = tpu.matmul %2, %0, %cst {dimension_numbers = #tpu.dot_dimension_numbers<[1], [0], [0], [1], [0, 0, 1, 1], [], []>} : vector<8x8xf32>, vector<8x128xf32>, vector<8x128xf32> -> vector<8x128xf32>
    %c1_i32 = arith.constant 1 : i32
    %4 = tpu.dynamic_rotate %3 by %c1_i32 dim 1 : vector<8x128xf32>, i32 -> vector<8x128xf32>
    %c0_4 = arith.constant 0 : index
    %c0_5 = arith.constant 0 : index
    %5 = vector.load %arg2[%c0_4, %c0_5] : memref<3x128xf32, #tpu.memory_space<vmem>>, vector<1x128xf32>
    %6 = vector.broadcast %5 : vector<1x128xf32> to vector<8x128xf32>
    %7 = arith.mulf %4, %6 : vector<8x128xf32>
    %c1 = arith.constant 1 : index
    %c0_6 = arith.constant 0 : index
    %c0_7 = arith.constant 0 : index
    %8 = vector.load %arg3[%c1, %c0_6, %c0_7] : memref<3x8x8xf32, #tpu.memory_space<vmem>>, vector<1x8x8xf32>
    %9 = vector.shape_cast %8 : vector<1x8x8xf32> to vector<8x8xf32>
    %cst_8 = arith.constant dense<0.000000e+00> : vector<8x128xf32>
    %10 = tpu.matmul %9, %0, %cst_8 {dimension_numbers = #tpu.dot_dimension_numbers<[1], [0], [0], [1], [0, 0, 1, 1], [], []>} : vector<8x8xf32>, vector<8x128xf32>, vector<8x128xf32> -> vector<8x128xf32>
    %11 = arith.addf %7, %10 : vector<8x128xf32>
    %c2 = arith.constant 2 : index
    %c0_9 = arith.constant 0 : index
    %c0_10 = arith.constant 0 : index
    %12 = vector.load %arg3[%c2, %c0_9, %c0_10] : memref<3x8x8xf32, #tpu.memory_space<vmem>>, vector<1x8x8xf32>
    %13 = vector.shape_cast %12 : vector<1x8x8xf32> to vector<8x8xf32>
    %cst_11 = arith.constant dense<0.000000e+00> : vector<8x128xf32>
    %14 = tpu.matmul %13, %0, %cst_11 {dimension_numbers = #tpu.dot_dimension_numbers<[1], [0], [0], [1], [0, 0, 1, 1], [], []>} : vector<8x8xf32>, vector<8x128xf32>, vector<8x128xf32> -> vector<8x128xf32>
    %c127_i32 = arith.constant 127 : i32
    %15 = tpu.dynamic_rotate %14 by %c127_i32 dim 1 : vector<8x128xf32>, i32 -> vector<8x128xf32>
    %c2_12 = arith.constant 2 : index
    %c0_13 = arith.constant 0 : index
    %16 = vector.load %arg2[%c2_12, %c0_13] : memref<3x128xf32, #tpu.memory_space<vmem>>, vector<1x128xf32>
    %17 = vector.broadcast %16 : vector<1x128xf32> to vector<8x128xf32>
    %18 = arith.mulf %15, %17 : vector<8x128xf32>
    %19 = arith.addf %11, %18 : vector<8x128xf32>
    %c0_14 = arith.constant 0 : index
    %c0_15 = arith.constant 0 : index
    %20 = vector.load %arg4[%c0_14, %c0_15] : memref<8x1xf32, #tpu.memory_space<vmem>>, vector<8x1xf32>
    %21 = vector.broadcast %20 : vector<8x1xf32> to vector<8x128xf32>
    %22 = arith.addf %19, %21 : vector<8x128xf32>
    %cst_16 = arith.constant 0.000000e+00 : f32
    %23 = vector.broadcast %cst_16 : f32 to vector<8x128xf32>
    %24 = arith.maximumf %22, %23 : vector<8x128xf32>
    %c0_17 = arith.constant 0 : index
    %c0_18 = arith.constant 0 : index
    %c0_19 = arith.constant 0 : index
    %25 = vector.load %arg5[%c0_17, %c0_18, %c0_19] : memref<3x8x8xf32, #tpu.memory_space<vmem>>, vector<1x8x8xf32>
    %26 = vector.shape_cast %25 : vector<1x8x8xf32> to vector<8x8xf32>
    %cst_20 = arith.constant dense<0.000000e+00> : vector<8x128xf32>
    %27 = tpu.matmul %26, %24, %cst_20 {dimension_numbers = #tpu.dot_dimension_numbers<[1], [0], [0], [1], [0, 0, 1, 1], [], []>} : vector<8x8xf32>, vector<8x128xf32>, vector<8x128xf32> -> vector<8x128xf32>
    %c1_i32_21 = arith.constant 1 : i32
    %28 = tpu.dynamic_rotate %27 by %c1_i32_21 dim 1 : vector<8x128xf32>, i32 -> vector<8x128xf32>
    %c0_22 = arith.constant 0 : index
    %c0_23 = arith.constant 0 : index
    %29 = vector.load %arg2[%c0_22, %c0_23] : memref<3x128xf32, #tpu.memory_space<vmem>>, vector<1x128xf32>
    %30 = vector.broadcast %29 : vector<1x128xf32> to vector<8x128xf32>
    %31 = arith.mulf %28, %30 : vector<8x128xf32>
    %c1_24 = arith.constant 1 : index
    %c0_25 = arith.constant 0 : index
    %c0_26 = arith.constant 0 : index
    %32 = vector.load %arg5[%c1_24, %c0_25, %c0_26] : memref<3x8x8xf32, #tpu.memory_space<vmem>>, vector<1x8x8xf32>
    %33 = vector.shape_cast %32 : vector<1x8x8xf32> to vector<8x8xf32>
    %cst_27 = arith.constant dense<0.000000e+00> : vector<8x128xf32>
    %34 = tpu.matmul %33, %24, %cst_27 {dimension_numbers = #tpu.dot_dimension_numbers<[1], [0], [0], [1], [0, 0, 1, 1], [], []>} : vector<8x8xf32>, vector<8x128xf32>, vector<8x128xf32> -> vector<8x128xf32>
    %35 = arith.addf %31, %34 : vector<8x128xf32>
    %c2_28 = arith.constant 2 : index
    %c0_29 = arith.constant 0 : index
    %c0_30 = arith.constant 0 : index
    %36 = vector.load %arg5[%c2_28, %c0_29, %c0_30] : memref<3x8x8xf32, #tpu.memory_space<vmem>>, vector<1x8x8xf32>
    %37 = vector.shape_cast %36 : vector<1x8x8xf32> to vector<8x8xf32>
    %cst_31 = arith.constant dense<0.000000e+00> : vector<8x128xf32>
    %38 = tpu.matmul %37, %24, %cst_31 {dimension_numbers = #tpu.dot_dimension_numbers<[1], [0], [0], [1], [0, 0, 1, 1], [], []>} : vector<8x8xf32>, vector<8x128xf32>, vector<8x128xf32> -> vector<8x128xf32>
    %c127_i32_32 = arith.constant 127 : i32
    %39 = tpu.dynamic_rotate %38 by %c127_i32_32 dim 1 : vector<8x128xf32>, i32 -> vector<8x128xf32>
    %c2_33 = arith.constant 2 : index
    %c0_34 = arith.constant 0 : index
    %40 = vector.load %arg2[%c2_33, %c0_34] : memref<3x128xf32, #tpu.memory_space<vmem>>, vector<1x128xf32>
    %41 = vector.broadcast %40 : vector<1x128xf32> to vector<8x128xf32>
    %42 = arith.mulf %39, %41 : vector<8x128xf32>
    %43 = arith.addf %35, %42 : vector<8x128xf32>
    %c0_35 = arith.constant 0 : index
    %c0_36 = arith.constant 0 : index
    %44 = vector.load %arg6[%c0_35, %c0_36] : memref<8x1xf32, #tpu.memory_space<vmem>>, vector<8x1xf32>
    %45 = vector.broadcast %44 : vector<8x1xf32> to vector<8x128xf32>
    %46 = arith.addf %43, %45 : vector<8x128xf32>
    %cst_37 = arith.constant 0.000000e+00 : f32
    %47 = vector.broadcast %cst_37 : f32 to vector<8x128xf32>
    %48 = arith.maximumf %46, %47 : vector<8x128xf32>
    %c0_38 = arith.constant 0 : index
    %c0_39 = arith.constant 0 : index
    %49 = vector.load %arg7[%c0_38, %c0_39] : memref<8x128xf32, #tpu.memory_space<vmem>>, vector<8x128xf32>
    tpu.vector_store %arg7[%c0_38, %c0_39], %48 {strides = array<i32>} : memref<8x128xf32, #tpu.memory_space<vmem>>, vector<8x128xf32>,
    return
  }
  func.func @transform_0(%arg0: i32) -> (i32, i32) {
    %c0_i32 = arith.constant 0 : i32
    %c0_i32_0 = arith.constant 0 : i32
    return %c0_i32, %arg0 : i32, i32
  }
  func.func @transform_1(%arg0: i32) -> (i32, i32) {
    %c0_i32 = arith.constant 0 : i32
    %c0_i32_0 = arith.constant 0 : i32
    %c0_i32_1 = arith.constant 0 : i32
    return %c0_i32, %c0_i32_0 : i32, i32
  }
  func.func @transform_2(%arg0: i32) -> (i32, i32, i32) {
    %c0_i32 = arith.constant 0 : i32
    %c0_i32_0 = arith.constant 0 : i32
    %c0_i32_1 = arith.constant 0 : i32
    %c0_i32_2 = arith.constant 0 : i32
    return %c0_i32, %c0_i32_0, %c0_i32_1 : i32, i32, i32
  }
  func.func @transform_3(%arg0: i32) -> (i32, i32) {
    %c0_i32 = arith.constant 0 : i32
    %c0_i32_0 = arith.constant 0 : i32
    %c0_i32_1 = arith.constant 0 : i32
    return %c0_i32, %c0_i32_0 : i32, i32
  }
  func.func @transform_4(%arg0: i32) -> (i32, i32, i32) {
    %c0_i32 = arith.constant 0 : i32
    %c0_i32_0 = arith.constant 0 : i32
    %c0_i32_1 = arith.constant 0 : i32
    %c0_i32_2 = arith.constant 0 : i32
    return %c0_i32, %c0_i32_0, %c0_i32_1 : i32, i32, i32
  }
  func.func @transform_5(%arg0: i32) -> (i32, i32) {
    %c0_i32 = arith.constant 0 : i32
    %c0_i32_0 = arith.constant 0 : i32
    %c0_i32_1 = arith.constant 0 : i32
    return %c0_i32, %c0_i32_0 : i32, i32
  }
  func.func @transform_6(%arg0: i32) -> (i32, i32) {
    %c0_i32 = arith.constant 0 : i32
    %c0_i32_0 = arith.constant 0 : i32
    return %c0_i32, %arg0 : i32, i32
  }
}

module attributes {stable_mosaic.version = 11 : i64} {
  func.func @_double_conv_kernel(%arg0: i32, %arg1: memref<16x64xf32, #tpu.memory_space<vmem>>, %arg2: memref<3x64xf32, #tpu.memory_space<vmem>>, %arg3: memref<3x32x16xf32, #tpu.memory_space<vmem>>, %arg4: memref<32x1xf32, #tpu.memory_space<vmem>>, %arg5: memref<3x32x32xf32, #tpu.memory_space<vmem>>, %arg6: memref<32x1xf32, #tpu.memory_space<vmem>>, %arg7: memref<32x64xf32, #tpu.memory_space<vmem>>) attributes {dimension_semantics = [#tpu.dimension_semantics<parallel>], iteration_bounds = array<i64: 1>, scalar_prefetch = 0 : i64, scratch_operands = 0 : i64, tpu.core_type = #tpu.core_type<tc>, window_params = [{transform_indices = @transform_0, window_bounds = array<i64: 16, 64>}, {pipeline_mode = #tpu.pipeline_mode<synchronous>, transform_indices = @transform_1, window_bounds = array<i64: 3, 64>}, {pipeline_mode = #tpu.pipeline_mode<synchronous>, transform_indices = @transform_2, window_bounds = array<i64: 3, 32, 16>}, {pipeline_mode = #tpu.pipeline_mode<synchronous>, transform_indices = @transform_3, window_bounds = array<i64: 32, 1>}, {pipeline_mode = #tpu.pipeline_mode<synchronous>, transform_indices = @transform_4, window_bounds = array<i64: 3, 32, 32>}, {pipeline_mode = #tpu.pipeline_mode<synchronous>, transform_indices = @transform_5, window_bounds = array<i64: 32, 1>}, {transform_indices = @transform_6, window_bounds = array<i64: 32, 64>}]} {
    %c0 = arith.constant 0 : index
    %c0_0 = arith.constant 0 : index
    %0 = vector.load %arg1[%c0, %c0_0] : memref<16x64xf32, #tpu.memory_space<vmem>>, vector<16x64xf32>
    %c0_1 = arith.constant 0 : index
    %c0_2 = arith.constant 0 : index
    %c0_3 = arith.constant 0 : index
    %1 = vector.load %arg3[%c0_1, %c0_2, %c0_3] : memref<3x32x16xf32, #tpu.memory_space<vmem>>, vector<1x32x16xf32>
    %2 = vector.shape_cast %1 : vector<1x32x16xf32> to vector<32x16xf32>
    %cst = arith.constant dense<0.000000e+00> : vector<32x64xf32>
    %3 = tpu.matmul %2, %0, %cst {dimension_numbers = #tpu.dot_dimension_numbers<[1], [0], [0], [1], [0, 0, 1, 1], [], []>} : vector<32x16xf32>, vector<16x64xf32>, vector<32x64xf32> -> vector<32x64xf32>
    %cst_4 = arith.constant 0.000000e+00 : f32
    %4 = vector.broadcast %cst_4 : f32 to vector<32x1xf32>
    %5 = vector.extract_strided_slice %3 {offsets = [0, 0], sizes = [32, 63], strides = [1, 1]} : vector<32x64xf32> to vector<32x63xf32>
    %6 = tpu.concatenate %4, %5 in 1 : vector<32x1xf32>, vector<32x63xf32> -> vector<32x64xf32>
    %c0_5 = arith.constant 0 : index
    %c0_6 = arith.constant 0 : index
    %7 = vector.load %arg2[%c0_5, %c0_6] : memref<3x64xf32, #tpu.memory_space<vmem>>, vector<1x64xf32>
    %8 = vector.broadcast %7 : vector<1x64xf32> to vector<32x64xf32>
    %9 = arith.mulf %6, %8 : vector<32x64xf32>
    %c1 = arith.constant 1 : index
    %c0_7 = arith.constant 0 : index
    %c0_8 = arith.constant 0 : index
    %10 = vector.load %arg3[%c1, %c0_7, %c0_8] : memref<3x32x16xf32, #tpu.memory_space<vmem>>, vector<1x32x16xf32>
    %11 = vector.shape_cast %10 : vector<1x32x16xf32> to vector<32x16xf32>
    %cst_9 = arith.constant dense<0.000000e+00> : vector<32x64xf32>
    %12 = tpu.matmul %11, %0, %cst_9 {dimension_numbers = #tpu.dot_dimension_numbers<[1], [0], [0], [1], [0, 0, 1, 1], [], []>} : vector<32x16xf32>, vector<16x64xf32>, vector<32x64xf32> -> vector<32x64xf32>
    %13 = arith.addf %9, %12 : vector<32x64xf32>
    %c2 = arith.constant 2 : index
    %c0_10 = arith.constant 0 : index
    %c0_11 = arith.constant 0 : index
    %14 = vector.load %arg3[%c2, %c0_10, %c0_11] : memref<3x32x16xf32, #tpu.memory_space<vmem>>, vector<1x32x16xf32>
    %15 = vector.shape_cast %14 : vector<1x32x16xf32> to vector<32x16xf32>
    %cst_12 = arith.constant dense<0.000000e+00> : vector<32x64xf32>
    %16 = tpu.matmul %15, %0, %cst_12 {dimension_numbers = #tpu.dot_dimension_numbers<[1], [0], [0], [1], [0, 0, 1, 1], [], []>} : vector<32x16xf32>, vector<16x64xf32>, vector<32x64xf32> -> vector<32x64xf32>
    %cst_13 = arith.constant 0.000000e+00 : f32
    %17 = vector.broadcast %cst_13 : f32 to vector<32x1xf32>
    %18 = vector.extract_strided_slice %16 {offsets = [0, 1], sizes = [32, 63], strides = [1, 1]} : vector<32x64xf32> to vector<32x63xf32>
    %19 = tpu.concatenate %18, %17 in 1 : vector<32x63xf32>, vector<32x1xf32> -> vector<32x64xf32>
    %c2_14 = arith.constant 2 : index
    %c0_15 = arith.constant 0 : index
    %20 = vector.load %arg2[%c2_14, %c0_15] : memref<3x64xf32, #tpu.memory_space<vmem>>, vector<1x64xf32>
    %21 = vector.broadcast %20 : vector<1x64xf32> to vector<32x64xf32>
    %22 = arith.mulf %19, %21 : vector<32x64xf32>
    %23 = arith.addf %13, %22 : vector<32x64xf32>
    %c0_16 = arith.constant 0 : index
    %c0_17 = arith.constant 0 : index
    %24 = vector.load %arg4[%c0_16, %c0_17] : memref<32x1xf32, #tpu.memory_space<vmem>>, vector<32x1xf32>
    %25 = vector.broadcast %24 : vector<32x1xf32> to vector<32x64xf32>
    %26 = arith.addf %23, %25 : vector<32x64xf32>
    %cst_18 = arith.constant 0.000000e+00 : f32
    %27 = vector.broadcast %cst_18 : f32 to vector<32x64xf32>
    %28 = arith.maximumf %26, %27 : vector<32x64xf32>
    %c0_19 = arith.constant 0 : index
    %c0_20 = arith.constant 0 : index
    %c0_21 = arith.constant 0 : index
    %29 = vector.load %arg5[%c0_19, %c0_20, %c0_21] : memref<3x32x32xf32, #tpu.memory_space<vmem>>, vector<1x32x32xf32>
    %30 = vector.shape_cast %29 : vector<1x32x32xf32> to vector<32x32xf32>
    %cst_22 = arith.constant dense<0.000000e+00> : vector<32x64xf32>
    %31 = tpu.matmul %30, %28, %cst_22 {dimension_numbers = #tpu.dot_dimension_numbers<[1], [0], [0], [1], [0, 0, 1, 1], [], []>} : vector<32x32xf32>, vector<32x64xf32>, vector<32x64xf32> -> vector<32x64xf32>
    %cst_23 = arith.constant 0.000000e+00 : f32
    %32 = vector.broadcast %cst_23 : f32 to vector<32x1xf32>
    %33 = vector.extract_strided_slice %31 {offsets = [0, 0], sizes = [32, 63], strides = [1, 1]} : vector<32x64xf32> to vector<32x63xf32>
    %34 = tpu.concatenate %32, %33 in 1 : vector<32x1xf32>, vector<32x63xf32> -> vector<32x64xf32>
    %c0_24 = arith.constant 0 : index
    %c0_25 = arith.constant 0 : index
    %35 = vector.load %arg2[%c0_24, %c0_25] : memref<3x64xf32, #tpu.memory_space<vmem>>, vector<1x64xf32>
    %36 = vector.broadcast %35 : vector<1x64xf32> to vector<32x64xf32>
    %37 = arith.mulf %34, %36 : vector<32x64xf32>
    %c1_26 = arith.constant 1 : index
    %c0_27 = arith.constant 0 : index
    %c0_28 = arith.constant 0 : index
    %38 = vector.load %arg5[%c1_26, %c0_27, %c0_28] : memref<3x32x32xf32, #tpu.memory_space<vmem>>, vector<1x32x32xf32>
    %39 = vector.shape_cast %38 : vector<1x32x32xf32> to vector<32x32xf32>
    %cst_29 = arith.constant dense<0.000000e+00> : vector<32x64xf32>
    %40 = tpu.matmul %39, %28, %cst_29 {dimension_numbers = #tpu.dot_dimension_numbers<[1], [0], [0], [1], [0, 0, 1, 1], [], []>} : vector<32x32xf32>, vector<32x64xf32>, vector<32x64xf32> -> vector<32x64xf32>
    %41 = arith.addf %37, %40 : vector<32x64xf32>
    %c2_30 = arith.constant 2 : index
    %c0_31 = arith.constant 0 : index
    %c0_32 = arith.constant 0 : index
    %42 = vector.load %arg5[%c2_30, %c0_31, %c0_32] : memref<3x32x32xf32, #tpu.memory_space<vmem>>, vector<1x32x32xf32>
    %43 = vector.shape_cast %42 : vector<1x32x32xf32> to vector<32x32xf32>
    %cst_33 = arith.constant dense<0.000000e+00> : vector<32x64xf32>
    %44 = tpu.matmul %43, %28, %cst_33 {dimension_numbers = #tpu.dot_dimension_numbers<[1], [0], [0], [1], [0, 0, 1, 1], [], []>} : vector<32x32xf32>, vector<32x64xf32>, vector<32x64xf32> -> vector<32x64xf32>
    %cst_34 = arith.constant 0.000000e+00 : f32
    %45 = vector.broadcast %cst_34 : f32 to vector<32x1xf32>
    %46 = vector.extract_strided_slice %44 {offsets = [0, 1], sizes = [32, 63], strides = [1, 1]} : vector<32x64xf32> to vector<32x63xf32>
    %47 = tpu.concatenate %46, %45 in 1 : vector<32x63xf32>, vector<32x1xf32> -> vector<32x64xf32>
    %c2_35 = arith.constant 2 : index
    %c0_36 = arith.constant 0 : index
    %48 = vector.load %arg2[%c2_35, %c0_36] : memref<3x64xf32, #tpu.memory_space<vmem>>, vector<1x64xf32>
    %49 = vector.broadcast %48 : vector<1x64xf32> to vector<32x64xf32>
    %50 = arith.mulf %47, %49 : vector<32x64xf32>
    %51 = arith.addf %41, %50 : vector<32x64xf32>
    %c0_37 = arith.constant 0 : index
    %c0_38 = arith.constant 0 : index
    %52 = vector.load %arg6[%c0_37, %c0_38] : memref<32x1xf32, #tpu.memory_space<vmem>>, vector<32x1xf32>
    %53 = vector.broadcast %52 : vector<32x1xf32> to vector<32x64xf32>
    %54 = arith.addf %51, %53 : vector<32x64xf32>
    %cst_39 = arith.constant 0.000000e+00 : f32
    %55 = vector.broadcast %cst_39 : f32 to vector<32x64xf32>
    %56 = arith.maximumf %54, %55 : vector<32x64xf32>
    %c0_40 = arith.constant 0 : index
    %c0_41 = arith.constant 0 : index
    %57 = vector.load %arg7[%c0_40, %c0_41] : memref<32x64xf32, #tpu.memory_space<vmem>>, vector<32x64xf32>
    tpu.vector_store %arg7[%c0_40, %c0_41], %56 {strides = array<i32>} : memref<32x64xf32, #tpu.memory_space<vmem>>, vector<32x64xf32>,
    return
  }
  func.func @transform_0(%arg0: i32) -> (i32, i32) {
    %c0_i32 = arith.constant 0 : i32
    %c0_i32_0 = arith.constant 0 : i32
    return %c0_i32, %arg0 : i32, i32
  }
  func.func @transform_1(%arg0: i32) -> (i32, i32) {
    %c0_i32 = arith.constant 0 : i32
    %c0_i32_0 = arith.constant 0 : i32
    %c0_i32_1 = arith.constant 0 : i32
    return %c0_i32, %c0_i32_0 : i32, i32
  }
  func.func @transform_2(%arg0: i32) -> (i32, i32, i32) {
    %c0_i32 = arith.constant 0 : i32
    %c0_i32_0 = arith.constant 0 : i32
    %c0_i32_1 = arith.constant 0 : i32
    %c0_i32_2 = arith.constant 0 : i32
    return %c0_i32, %c0_i32_0, %c0_i32_1 : i32, i32, i32
  }
  func.func @transform_3(%arg0: i32) -> (i32, i32) {
    %c0_i32 = arith.constant 0 : i32
    %c0_i32_0 = arith.constant 0 : i32
    %c0_i32_1 = arith.constant 0 : i32
    return %c0_i32, %c0_i32_0 : i32, i32
  }
  func.func @transform_4(%arg0: i32) -> (i32, i32, i32) {
    %c0_i32 = arith.constant 0 : i32
    %c0_i32_0 = arith.constant 0 : i32
    %c0_i32_1 = arith.constant 0 : i32
    %c0_i32_2 = arith.constant 0 : i32
    return %c0_i32, %c0_i32_0, %c0_i32_1 : i32, i32, i32
  }
  func.func @transform_5(%arg0: i32) -> (i32, i32) {
    %c0_i32 = arith.constant 0 : i32
    %c0_i32_0 = arith.constant 0 : i32
    %c0_i32_1 = arith.constant 0 : i32
    return %c0_i32, %c0_i32_0 : i32, i32
  }
  func.func @transform_6(%arg0: i32) -> (i32, i32) {
    %c0_i32 = arith.constant 0 : i32
    %c0_i32_0 = arith.constant 0 : i32
    return %c0_i32, %arg0 : i32, i32
  }
}

module attributes {stable_mosaic.version = 11 : i64} {
  func.func @_double_conv_kernel(%arg0: i32, %arg1: memref<32x32xf32, #tpu.memory_space<vmem>>, %arg2: memref<3x32xf32, #tpu.memory_space<vmem>>, %arg3: memref<3x64x32xf32, #tpu.memory_space<vmem>>, %arg4: memref<64x1xf32, #tpu.memory_space<vmem>>, %arg5: memref<3x64x64xf32, #tpu.memory_space<vmem>>, %arg6: memref<64x1xf32, #tpu.memory_space<vmem>>, %arg7: memref<64x32xf32, #tpu.memory_space<vmem>>) attributes {dimension_semantics = [#tpu.dimension_semantics<parallel>], iteration_bounds = array<i64: 1>, scalar_prefetch = 0 : i64, scratch_operands = 0 : i64, tpu.core_type = #tpu.core_type<tc>, window_params = [{transform_indices = @transform_0, window_bounds = array<i64: 32, 32>}, {pipeline_mode = #tpu.pipeline_mode<synchronous>, transform_indices = @transform_1, window_bounds = array<i64: 3, 32>}, {pipeline_mode = #tpu.pipeline_mode<synchronous>, transform_indices = @transform_2, window_bounds = array<i64: 3, 64, 32>}, {pipeline_mode = #tpu.pipeline_mode<synchronous>, transform_indices = @transform_3, window_bounds = array<i64: 64, 1>}, {pipeline_mode = #tpu.pipeline_mode<synchronous>, transform_indices = @transform_4, window_bounds = array<i64: 3, 64, 64>}, {pipeline_mode = #tpu.pipeline_mode<synchronous>, transform_indices = @transform_5, window_bounds = array<i64: 64, 1>}, {transform_indices = @transform_6, window_bounds = array<i64: 64, 32>}]} {
    %c0 = arith.constant 0 : index
    %c0_0 = arith.constant 0 : index
    %0 = vector.load %arg1[%c0, %c0_0] : memref<32x32xf32, #tpu.memory_space<vmem>>, vector<32x32xf32>
    %c0_1 = arith.constant 0 : index
    %c0_2 = arith.constant 0 : index
    %c0_3 = arith.constant 0 : index
    %1 = vector.load %arg3[%c0_1, %c0_2, %c0_3] : memref<3x64x32xf32, #tpu.memory_space<vmem>>, vector<1x64x32xf32>
    %2 = vector.shape_cast %1 : vector<1x64x32xf32> to vector<64x32xf32>
    %cst = arith.constant dense<0.000000e+00> : vector<64x32xf32>
    %3 = tpu.matmul %2, %0, %cst {dimension_numbers = #tpu.dot_dimension_numbers<[1], [0], [0], [1], [0, 0, 1, 1], [], []>} : vector<64x32xf32>, vector<32x32xf32>, vector<64x32xf32> -> vector<64x32xf32>
    %cst_4 = arith.constant 0.000000e+00 : f32
    %4 = vector.broadcast %cst_4 : f32 to vector<64x1xf32>
    %5 = vector.extract_strided_slice %3 {offsets = [0, 0], sizes = [64, 31], strides = [1, 1]} : vector<64x32xf32> to vector<64x31xf32>
    %6 = tpu.concatenate %4, %5 in 1 : vector<64x1xf32>, vector<64x31xf32> -> vector<64x32xf32>
    %c0_5 = arith.constant 0 : index
    %c0_6 = arith.constant 0 : index
    %7 = vector.load %arg2[%c0_5, %c0_6] : memref<3x32xf32, #tpu.memory_space<vmem>>, vector<1x32xf32>
    %8 = vector.broadcast %7 : vector<1x32xf32> to vector<64x32xf32>
    %9 = arith.mulf %6, %8 : vector<64x32xf32>
    %c1 = arith.constant 1 : index
    %c0_7 = arith.constant 0 : index
    %c0_8 = arith.constant 0 : index
    %10 = vector.load %arg3[%c1, %c0_7, %c0_8] : memref<3x64x32xf32, #tpu.memory_space<vmem>>, vector<1x64x32xf32>
    %11 = vector.shape_cast %10 : vector<1x64x32xf32> to vector<64x32xf32>
    %cst_9 = arith.constant dense<0.000000e+00> : vector<64x32xf32>
    %12 = tpu.matmul %11, %0, %cst_9 {dimension_numbers = #tpu.dot_dimension_numbers<[1], [0], [0], [1], [0, 0, 1, 1], [], []>} : vector<64x32xf32>, vector<32x32xf32>, vector<64x32xf32> -> vector<64x32xf32>
    %13 = arith.addf %9, %12 : vector<64x32xf32>
    %c2 = arith.constant 2 : index
    %c0_10 = arith.constant 0 : index
    %c0_11 = arith.constant 0 : index
    %14 = vector.load %arg3[%c2, %c0_10, %c0_11] : memref<3x64x32xf32, #tpu.memory_space<vmem>>, vector<1x64x32xf32>
    %15 = vector.shape_cast %14 : vector<1x64x32xf32> to vector<64x32xf32>
    %cst_12 = arith.constant dense<0.000000e+00> : vector<64x32xf32>
    %16 = tpu.matmul %15, %0, %cst_12 {dimension_numbers = #tpu.dot_dimension_numbers<[1], [0], [0], [1], [0, 0, 1, 1], [], []>} : vector<64x32xf32>, vector<32x32xf32>, vector<64x32xf32> -> vector<64x32xf32>
    %cst_13 = arith.constant 0.000000e+00 : f32
    %17 = vector.broadcast %cst_13 : f32 to vector<64x1xf32>
    %18 = vector.extract_strided_slice %16 {offsets = [0, 1], sizes = [64, 31], strides = [1, 1]} : vector<64x32xf32> to vector<64x31xf32>
    %19 = tpu.concatenate %18, %17 in 1 : vector<64x31xf32>, vector<64x1xf32> -> vector<64x32xf32>
    %c2_14 = arith.constant 2 : index
    %c0_15 = arith.constant 0 : index
    %20 = vector.load %arg2[%c2_14, %c0_15] : memref<3x32xf32, #tpu.memory_space<vmem>>, vector<1x32xf32>
    %21 = vector.broadcast %20 : vector<1x32xf32> to vector<64x32xf32>
    %22 = arith.mulf %19, %21 : vector<64x32xf32>
    %23 = arith.addf %13, %22 : vector<64x32xf32>
    %c0_16 = arith.constant 0 : index
    %c0_17 = arith.constant 0 : index
    %24 = vector.load %arg4[%c0_16, %c0_17] : memref<64x1xf32, #tpu.memory_space<vmem>>, vector<64x1xf32>
    %25 = vector.broadcast %24 : vector<64x1xf32> to vector<64x32xf32>
    %26 = arith.addf %23, %25 : vector<64x32xf32>
    %cst_18 = arith.constant 0.000000e+00 : f32
    %27 = vector.broadcast %cst_18 : f32 to vector<64x32xf32>
    %28 = arith.maximumf %26, %27 : vector<64x32xf32>
    %c0_19 = arith.constant 0 : index
    %c0_20 = arith.constant 0 : index
    %c0_21 = arith.constant 0 : index
    %29 = vector.load %arg5[%c0_19, %c0_20, %c0_21] : memref<3x64x64xf32, #tpu.memory_space<vmem>>, vector<1x64x64xf32>
    %30 = vector.shape_cast %29 : vector<1x64x64xf32> to vector<64x64xf32>
    %cst_22 = arith.constant dense<0.000000e+00> : vector<64x32xf32>
    %31 = tpu.matmul %30, %28, %cst_22 {dimension_numbers = #tpu.dot_dimension_numbers<[1], [0], [0], [1], [0, 0, 1, 1], [], []>} : vector<64x64xf32>, vector<64x32xf32>, vector<64x32xf32> -> vector<64x32xf32>
    %cst_23 = arith.constant 0.000000e+00 : f32
    %32 = vector.broadcast %cst_23 : f32 to vector<64x1xf32>
    %33 = vector.extract_strided_slice %31 {offsets = [0, 0], sizes = [64, 31], strides = [1, 1]} : vector<64x32xf32> to vector<64x31xf32>
    %34 = tpu.concatenate %32, %33 in 1 : vector<64x1xf32>, vector<64x31xf32> -> vector<64x32xf32>
    %c0_24 = arith.constant 0 : index
    %c0_25 = arith.constant 0 : index
    %35 = vector.load %arg2[%c0_24, %c0_25] : memref<3x32xf32, #tpu.memory_space<vmem>>, vector<1x32xf32>
    %36 = vector.broadcast %35 : vector<1x32xf32> to vector<64x32xf32>
    %37 = arith.mulf %34, %36 : vector<64x32xf32>
    %c1_26 = arith.constant 1 : index
    %c0_27 = arith.constant 0 : index
    %c0_28 = arith.constant 0 : index
    %38 = vector.load %arg5[%c1_26, %c0_27, %c0_28] : memref<3x64x64xf32, #tpu.memory_space<vmem>>, vector<1x64x64xf32>
    %39 = vector.shape_cast %38 : vector<1x64x64xf32> to vector<64x64xf32>
    %cst_29 = arith.constant dense<0.000000e+00> : vector<64x32xf32>
    %40 = tpu.matmul %39, %28, %cst_29 {dimension_numbers = #tpu.dot_dimension_numbers<[1], [0], [0], [1], [0, 0, 1, 1], [], []>} : vector<64x64xf32>, vector<64x32xf32>, vector<64x32xf32> -> vector<64x32xf32>
    %41 = arith.addf %37, %40 : vector<64x32xf32>
    %c2_30 = arith.constant 2 : index
    %c0_31 = arith.constant 0 : index
    %c0_32 = arith.constant 0 : index
    %42 = vector.load %arg5[%c2_30, %c0_31, %c0_32] : memref<3x64x64xf32, #tpu.memory_space<vmem>>, vector<1x64x64xf32>
    %43 = vector.shape_cast %42 : vector<1x64x64xf32> to vector<64x64xf32>
    %cst_33 = arith.constant dense<0.000000e+00> : vector<64x32xf32>
    %44 = tpu.matmul %43, %28, %cst_33 {dimension_numbers = #tpu.dot_dimension_numbers<[1], [0], [0], [1], [0, 0, 1, 1], [], []>} : vector<64x64xf32>, vector<64x32xf32>, vector<64x32xf32> -> vector<64x32xf32>
    %cst_34 = arith.constant 0.000000e+00 : f32
    %45 = vector.broadcast %cst_34 : f32 to vector<64x1xf32>
    %46 = vector.extract_strided_slice %44 {offsets = [0, 1], sizes = [64, 31], strides = [1, 1]} : vector<64x32xf32> to vector<64x31xf32>
    %47 = tpu.concatenate %46, %45 in 1 : vector<64x31xf32>, vector<64x1xf32> -> vector<64x32xf32>
    %c2_35 = arith.constant 2 : index
    %c0_36 = arith.constant 0 : index
    %48 = vector.load %arg2[%c2_35, %c0_36] : memref<3x32xf32, #tpu.memory_space<vmem>>, vector<1x32xf32>
    %49 = vector.broadcast %48 : vector<1x32xf32> to vector<64x32xf32>
    %50 = arith.mulf %47, %49 : vector<64x32xf32>
    %51 = arith.addf %41, %50 : vector<64x32xf32>
    %c0_37 = arith.constant 0 : index
    %c0_38 = arith.constant 0 : index
    %52 = vector.load %arg6[%c0_37, %c0_38] : memref<64x1xf32, #tpu.memory_space<vmem>>, vector<64x1xf32>
    %53 = vector.broadcast %52 : vector<64x1xf32> to vector<64x32xf32>
    %54 = arith.addf %51, %53 : vector<64x32xf32>
    %cst_39 = arith.constant 0.000000e+00 : f32
    %55 = vector.broadcast %cst_39 : f32 to vector<64x32xf32>
    %56 = arith.maximumf %54, %55 : vector<64x32xf32>
    %c0_40 = arith.constant 0 : index
    %c0_41 = arith.constant 0 : index
    %57 = vector.load %arg7[%c0_40, %c0_41] : memref<64x32xf32, #tpu.memory_space<vmem>>, vector<64x32xf32>
    tpu.vector_store %arg7[%c0_40, %c0_41], %56 {strides = array<i32>} : memref<64x32xf32, #tpu.memory_space<vmem>>, vector<64x32xf32>,
    return
  }
  func.func @transform_0(%arg0: i32) -> (i32, i32) {
    %c0_i32 = arith.constant 0 : i32
    %c0_i32_0 = arith.constant 0 : i32
    return %c0_i32, %arg0 : i32, i32
  }
  func.func @transform_1(%arg0: i32) -> (i32, i32) {
    %c0_i32 = arith.constant 0 : i32
    %c0_i32_0 = arith.constant 0 : i32
    %c0_i32_1 = arith.constant 0 : i32
    return %c0_i32, %c0_i32_0 : i32, i32
  }
  func.func @transform_2(%arg0: i32) -> (i32, i32, i32) {
    %c0_i32 = arith.constant 0 : i32
    %c0_i32_0 = arith.constant 0 : i32
    %c0_i32_1 = arith.constant 0 : i32
    %c0_i32_2 = arith.constant 0 : i32
    return %c0_i32, %c0_i32_0, %c0_i32_1 : i32, i32, i32
  }
  func.func @transform_3(%arg0: i32) -> (i32, i32) {
    %c0_i32 = arith.constant 0 : i32
    %c0_i32_0 = arith.constant 0 : i32
    %c0_i32_1 = arith.constant 0 : i32
    return %c0_i32, %c0_i32_0 : i32, i32
  }
  func.func @transform_4(%arg0: i32) -> (i32, i32, i32) {
    %c0_i32 = arith.constant 0 : i32
    %c0_i32_0 = arith.constant 0 : i32
    %c0_i32_1 = arith.constant 0 : i32
    %c0_i32_2 = arith.constant 0 : i32
    return %c0_i32, %c0_i32_0, %c0_i32_1 : i32, i32, i32
  }
  func.func @transform_5(%arg0: i32) -> (i32, i32) {
    %c0_i32 = arith.constant 0 : i32
    %c0_i32_0 = arith.constant 0 : i32
    %c0_i32_1 = arith.constant 0 : i32
    return %c0_i32, %c0_i32_0 : i32, i32
  }
  func.func @transform_6(%arg0: i32) -> (i32, i32) {
    %c0_i32 = arith.constant 0 : i32
    %c0_i32_0 = arith.constant 0 : i32
    return %c0_i32, %arg0 : i32, i32
  }
}

</mosaic_0001>

<llo_original>
// kernel: down_seq_forward.4
$region0: #{down_seq_forward.4}
  #allocation0 [shape = 'u32[]', space=smem, size = 0x4, offset = 0x4, fixed_abs, tag = 'smem constant byte address 0x4 - core index']
  #allocation1 [shape = 'u32[144,128]{1,0:T(1,128)}', space=vmem, size = 0x12000, scoped, tag = 'internal scratch']
  %s0 = inlined_call_operand.vmem [shape: f32[8,256], index: 0, kind: input, shape index: {}]
  %s1 = inlined_call_operand.vmem [shape: f32[3,128], index: 1, kind: input, shape index: {}]
  %s2 = inlined_call_operand.vmem [shape: f32[3,8,8], index: 2, kind: input, shape index: {}]
  %s3 = inlined_call_operand.vmem [shape: f32[8,1], index: 3, kind: input, shape index: {}]
  %s4 = inlined_call_operand.vmem [shape: f32[3,8,8], index: 4, kind: input, shape index: {}]
  %s5 = inlined_call_operand.vmem [shape: f32[8,1], index: 5, kind: input, shape index: {}]
  %s6 = inlined_call_operand.vmem [shape: f32[8,256], index: 6, kind: output, shape index: {}]
  %s7 = sld [smem:[#allocation0]]
  $region57: #{down_seq_forward.4} parent=0
    _
  %s9 = ssub.s32 1, %s7
  %s10 = scalar_select 0, %s9, %s7
  loop: start=0, step=1, limit=4
  $region2: #{down_seq_forward.4} parent=0 // loop_pre_header
    _
  $region3: #{down_seq_forward.4} parent=0 // loop_header
    %s12 = sphi 0, %s16
    %p13 = scmp.ge.s32.totalorder %s12, 4
    %s22 = sphi 0, %s24
    %s25 = sphi 0, %s22
    %s26 = sphi 0, %s25
    %s42 = sphi 0, %s26
    %s46 = sphi 0, %s46
    %s48 = sphi 0, %s46
    %s49 = sphi 0, %s48
    %s63 = sphi 0, %s49
    %s67 = sphi 0, %s67
    %s69 = sphi 0, %s67
    %s70 = sphi 0, %s69
    %s84 = sphi 0, %s70
    %s88 = sphi 0, %s88
    %s90 = sphi 0, %s88
    %s91 = sphi 0, %s90
    %s105 = sphi 0, %s91
    %s109 = sphi 0, %s109
    %s111 = sphi 0, %s109
    %s112 = sphi 0, %s111
    %s126 = sphi 0, %s112
    %s130 = sphi 0, %s130
    %s132 = sphi 0, %s130
    %s133 = sphi 0, %s132
    %s147 = sphi 0, %s133
    %s153 = sphi 0, %s155
    %s156 = sphi 0, %s153
    %s157 = sphi 0, %s156
    %s173 = sphi 0, %s157
  $region4: #{down_seq_forward.4} parent=0 // loop_header_branch
    %15 = sbr.rel (%p13) target = $region8
  $region5: #{down_seq_forward.4} parent=0 // loop_body
    %s17 = ssub.s32 %s12, 1
    %s18 = ssub.s32 %s12, 2
    %s19 = sadd.s32 %s12, 1
    %s20 = ssub.s32 %s12, %s19
    %p21 = scmp.eq.s32.totalorder %s20, 0
    %s23 = sadd.s32 %s22, 1
    %s24 = scalar_select %p21, %s22, %s23
    %p27 = pneg %p21
    %p28 = scmp.eq.s32.totalorder %s12, 1
    %p29 = por %p27, %p28
    %p30 = scmp.ne.s32.totalorder %s22, %s25
    %p31 = scmp.eq.s32.totalorder %s12, 0
    %p32 = por %p30, %p31
    %p33 = scmp.ne.s32.totalorder %s22, %s25
    %p34 = scmp.eq.s32.totalorder %s17, 1
    %p35 = por %p33, %p34
    %p36 = scmp.ne.s32.totalorder %s25, %s26
    %p37 = scmp.eq.s32.totalorder %s17, 0
    %p38 = por %p36, %p37
    %p39 = scmp.ne.s32.totalorder %s25, %s26
    %p40 = scmp.eq.s32.totalorder %s18, 1
    %p41 = por %p39, %p40
    %p43 = scmp.ne.s32.totalorder %s26, %s42
    %p44 = scmp.eq.s32.totalorder %s18, 0
    %p45 = por %p43, %p44
    %s47 = sadd.s32 %s46, 1
    %p50 = scmp.eq.s32.totalorder %s12, 1
    %p51 = scmp.ne.s32.totalorder %s46, %s48
    %p52 = scmp.eq.s32.totalorder %s12, 0
    %p53 = por %p51, %p52
    %p54 = scmp.ne.s32.totalorder %s46, %s48
    %p55 = scmp.eq.s32.totalorder %s17, 1
    %p56 = por %p54, %p55
    %p57 = scmp.ne.s32.totalorder %s48, %s49
    %p58 = scmp.eq.s32.totalorder %s17, 0
    %p59 = por %p57, %p58
    %p60 = scmp.ne.s32.totalorder %s48, %s49
    %p61 = scmp.eq.s32.totalorder %s18, 1
    %p62 = por %p60, %p61
    %p64 = scmp.ne.s32.totalorder %s49, %s63
    %p65 = scmp.eq.s32.totalorder %s18, 0
    %p66 = por %p64, %p65
    %s68 = sadd.s32 %s67, 1
    %p71 = scmp.eq.s32.totalorder %s12, 1
    %p72 = scmp.ne.s32.totalorder %s67, %s69
    %p73 = scmp.eq.s32.totalorder %s12, 0
    %p74 = por %p72, %p73
    %p75 = scmp.ne.s32.totalorder %s67, %s69
    %p76 = scmp.eq.s32.totalorder %s17, 1
    %p77 = por %p75, %p76
    %p78 = scmp.ne.s32.totalorder %s69, %s70
    %p79 = scmp.eq.s32.totalorder %s17, 0
    %p80 = por %p78, %p79
    %p81 = scmp.ne.s32.totalorder %s69, %s70
    %p82 = scmp.eq.s32.totalorder %s18, 1
    %p83 = por %p81, %p82
    %p85 = scmp.ne.s32.totalorder %s70, %s84
    %p86 = scmp.eq.s32.totalorder %s18, 0
    %p87 = por %p85, %p86
    %s89 = sadd.s32 %s88, 1
    %p92 = scmp.eq.s32.totalorder %s12, 1
    %p93 = scmp.ne.s32.totalorder %s88, %s90
    %p94 = scmp.eq.s32.totalorder %s12, 0
    %p95 = por %p93, %p94
    %p96 = scmp.ne.s32.totalorder %s88, %s90
    %p97 = scmp.eq.s32.totalorder %s17, 1
    %p98 = por %p96, %p97
    %p99 = scmp.ne.s32.totalorder %s90, %s91
    %p100 = scmp.eq.s32.totalorder %s17, 0
    %p101 = por %p99, %p100
    %p102 = scmp.ne.s32.totalorder %s90, %s91
    %p103 = scmp.eq.s32.totalorder %s18, 1
    %p104 = por %p102, %p103
    %p106 = scmp.ne.s32.totalorder %s91, %s105
    %p107 = scmp.eq.s32.totalorder %s18, 0
    %p108 = por %p106, %p107
    %s110 = sadd.s32 %s109, 1
    %p113 = scmp.eq.s32.totalorder %s12, 1
    %p114 = scmp.ne.s32.totalorder %s109, %s111
    %p115 = scmp.eq.s32.totalorder %s12, 0
    %p116 = por %p114, %p115
    %p117 = scmp.ne.s32.totalorder %s109, %s111
    %p118 = scmp.eq.s32.totalorder %s17, 1
    %p119 = por %p117, %p118
    %p120 = scmp.ne.s32.totalorder %s111, %s112
    %p121 = scmp.eq.s32.totalorder %s17, 0
    %p122 = por %p120, %p121
    %p123 = scmp.ne.s32.totalorder %s111, %s112
    %p124 = scmp.eq.s32.totalorder %s18, 1
    %p125 = por %p123, %p124
    %p127 = scmp.ne.s32.totalorder %s112, %s126
    %p128 = scmp.eq.s32.totalorder %s18, 0
    %p129 = por %p127, %p128
    %s131 = sadd.s32 %s130, 1
    %p134 = scmp.eq.s32.totalorder %s12, 1
    %p135 = scmp.ne.s32.totalorder %s130, %s132
    %p136 = scmp.eq.s32.totalorder %s12, 0
    %p137 = por %p135, %p136
    %p138 = scmp.ne.s32.totalorder %s130, %s132
    %p139 = scmp.eq.s32.totalorder %s17, 1
    %p140 = por %p138, %p139
    %p141 = scmp.ne.s32.totalorder %s132, %s133
    %p142 = scmp.eq.s32.totalorder %s17, 0
    %p143 = por %p141, %p142
    %p144 = scmp.ne.s32.totalorder %s132, %s133
    %p145 = scmp.eq.s32.totalorder %s18, 1
    %p146 = por %p144, %p145
    %p148 = scmp.ne.s32.totalorder %s133, %s147
    %p149 = scmp.eq.s32.totalorder %s18, 0
    %p150 = por %p148, %p149
    %s151 = ssub.s32 %s12, %s19
    %p152 = scmp.eq.s32.totalorder %s151, 0
    %s154 = sadd.s32 %s153, 1
    %s155 = scalar_select %p152, %s153, %s154
    %p158 = pneg %p152
    %p159 = scmp.eq.s32.totalorder %s12, 1
    %p160 = por %p158, %p159
    %p161 = scmp.ne.s32.totalorder %s153, %s156
    %p162 = scmp.eq.s32.totalorder %s12, 0
    %p163 = por %p161, %p162
    %p164 = scmp.ne.s32.totalorder %s153, %s156
    %p165 = scmp.eq.s32.totalorder %s17, 1
    %p166 = por %p164, %p165
    %p167 = scmp.ne.s32.totalorder %s156, %s157
    %p168 = scmp.eq.s32.totalorder %s17, 0
    %p169 = por %p167, %p168
    %p170 = scmp.ne.s32.totalorder %s156, %s157
    %p171 = scmp.eq.s32.totalorder %s18, 1
    %p172 = por %p170, %p171
    %p174 = scmp.ne.s32.totalorder %s157, %s173
    %p175 = scmp.eq.s32.totalorder %s18, 0
    %p176 = por %p174, %p175
    %p177 = scmp.le.s32.totalorder 1, %s12
    %p178 = scmp.lt.s32.totalorder %s12, 3
    %p179 = pnand %p177, %p178
    %p180 = pneg %p179
    // Predicated region
    $region9: #{down_seq_forward.4} parent=5 // pred_check
      _
    $region10: #{down_seq_forward.4} parent=5 // pred_check_branch
      %182 = sbr.rel (%p179) target = $region12
    $region11: #{down_seq_forward.4} parent=5 // pred_region
      %s183 = ssub.s32 %s12, 1
      // Predicated region
      $region13: #{down_seq_forward.4} parent=11 // pred_check
        %p184 = pneg %p59
      $region14: #{down_seq_forward.4} parent=11 // pred_check_branch
        %186 = sbr.rel (%p184) target = $region16
      $region15: #{down_seq_forward.4} parent=11 // pred_region
        _
      $region16: #{down_seq_forward.4} parent=11 // pred_fallthru
        _
      // Predicated region
      $region17: #{down_seq_forward.4} parent=11 // pred_check
        %p187 = pneg %p80
      $region18: #{down_seq_forward.4} parent=11 // pred_check_branch
        %189 = sbr.rel (%p187) target = $region20
      $region19: #{down_seq_forward.4} parent=11 // pred_region
        _
      $region20: #{down_seq_forward.4} parent=11 // pred_fallthru
        _
      // Predicated region
      $region21: #{down_seq_forward.4} parent=11 // pred_check
        %p190 = pneg %p101
      $region22: #{down_seq_forward.4} parent=11 // pred_check_branch
        %192 = sbr.rel (%p190) target = $region24
      $region23: #{down_seq_forward.4} parent=11 // pred_region
        _
      $region24: #{down_seq_forward.4} parent=11 // pred_fallthru
        _
      // Predicated region
      $region25: #{down_seq_forward.4} parent=11 // pred_check
        %p193 = pneg %p122
      $region26: #{down_seq_forward.4} parent=11 // pred_check_branch
        %195 = sbr.rel (%p193) target = $region28
      $region27: #{down_seq_forward.4} parent=11 // pred_region
        _
      $region28: #{down_seq_forward.4} parent=11 // pred_fallthru
        _
      // Predicated region
      $region29: #{down_seq_forward.4} parent=11 // pred_check
        %p196 = pneg %p143
      $region30: #{down_seq_forward.4} parent=11 // pred_check_branch
        %198 = sbr.rel (%p196) target = $region32
      $region31: #{down_seq_forward.4} parent=11 // pred_region
        _
      $region32: #{down_seq_forward.4} parent=11 // pred_fallthru
        _
    $region12: #{down_seq_forward.4} parent=5 // pred_fallthru
      _
    %p199 = scmp.lt.s32.totalorder %s12, 2
    // Predicated region
    $region33: #{down_seq_forward.4} parent=5 // pred_check
      %p200 = pneg %p199
    $region34: #{down_seq_forward.4} parent=5 // pred_check_branch
      %202 = sbr.rel (%p200) target = $region36
    $region35: #{down_seq_forward.4} parent=5 // pred_region
      // Predicated region
      $region37: #{down_seq_forward.4} parent=35 // pred_check
        %p203 = pneg %p32
      $region38: #{down_seq_forward.4} parent=35 // pred_check_branch
        %205 = sbr.rel (%p203) target = $region40
      $region39: #{down_seq_forward.4} parent=35 // pred_region
        %p206 = scmp.lt.s32.totalorder %s12, 1
        %s207 = scalar_select %p206, %s12, 1
        %s208 = smul.addr %s207, 8
        %s209 = scalar_lea.vmem %s0, %s208
      $region40: #{down_seq_forward.4} parent=35 // pred_fallthru
        _
    $region36: #{down_seq_forward.4} parent=5 // pred_fallthru
      _
    %p210 = scmp.le.s32.totalorder 1, %s12
    %p211 = scmp.lt.s32.totalorder %s12, 3
    %p212 = pnand %p210, %p211
    %p213 = pneg %p212
    // Predicated region
    $region41: #{down_seq_forward.4} parent=5 // pred_check
      _
    $region42: #{down_seq_forward.4} parent=5 // pred_check_branch
      %215 = sbr.rel (%p212) target = $region44
    $region43: #{down_seq_forward.4} parent=5 // pred_region
      %s216 = ssub.s32 %s12, 1
      %p217 = scmp.lt.s32.totalorder %s17, 1
      %s218 = scalar_select %p217, %s17, 1
      %s219 = smul.addr %s218, 8
      %s220 = scalar_lea.vmem %s0, %s219
      %p221 = pneg %p38
      %p222 = pneg %p35
      %p223 = pneg %p59
      %p224 = pneg %p56
      %p225 = pneg %p80
      %p226 = pneg %p77
      %p227 = pneg %p101
      %p228 = pneg %p98
      %p229 = pneg %p122
      %p230 = pneg %p119
      %p231 = pneg %p143
      %p232 = pneg %p140
      %p233 = pneg %p169
      %p234 = pneg %p166
      %p235 = scmp.lt.s32.totalorder %s17, 1
      %s236 = scalar_select %p235, %s17, 1
      %s237 = smul.addr %s236, 8
      %s238 = scalar_lea.vmem %s6, %s237
      %p239 = scmp.lt.s32.totalorder %s17, 1
      %s240 = scalar_select %p239, %s17, 1
      %s241 = smul.addr %s240, 8
      %s242 = scalar_lea.vmem %s0, %s241
      %p243 = scmp.lt.s32.totalorder %s17, 1
      %s244 = scalar_select %p243, %s17, 1
      %s245 = smul.addr %s244, 8
      %s246 = scalar_lea.vmem %s6, %s245
      %v247 = vld [vmem:[%s242] sm:$0xff]
      %v248 = vld [vmem:[%s2] sm:$0xff]
      %vm249 = vcmask 64512
      %v251 = vsel %vm249, %v248, 0
      %253 = vmatprep.subr.mxu0 0.0
      %254 = vmatpush1.msra.mxu0 %v247
      %255 = vmatprep.subr.mxu0 0.0
      %256 = vmatpush1.msra.mxu0 0.0
      %257 = vmatprep.subr.mxu0 0.0
      %258 = vmatpush1.msra.mxu0 0.0
      %259 = vmatprep.subr.mxu0 0.0
      %260 = vmatpush1.msra.mxu0 0.0
      %261 = vmatprep.subr.mxu0 0.0
      %262 = vmatpush1.msra.mxu0 0.0
      %263 = vmatprep.subr.mxu0 0.0
      %264 = vmatpush1.msra.mxu0 0.0
      %265 = vmatprep.subr.mxu0 0.0
      %266 = vmatpush1.msra.mxu0 0.0
      %267 = vmatprep.subr.mxu0 0.0
      %268 = vmatpush1.msra.mxu0 0.0
      %269 = vmatprep.subr.mxu0 0.0
      %270 = vmatpush1.msra.mxu0 0.0
      %271 = vmatprep.subr.mxu0 0.0
      %272 = vmatpush1.msra.mxu0 0.0
      %273 = vmatprep.subr.mxu0 0.0
      %274 = vmatpush1.msra.mxu0 0.0
      %275 = vmatprep.subr.mxu0 0.0
      %276 = vmatpush1.msra.mxu0 0.0
      %277 = vmatprep.subr.mxu0 0.0
      %278 = vmatpush1.msra.mxu0 0.0
      %279 = vmatprep.subr.mxu0 0.0
      %280 = vmatpush1.msra.mxu0 0.0
      %281 = vmatprep.subr.mxu0 0.0
      %282 = vmatpush1.msra.mxu0 0.0
      %283 = vmatprep.subr.mxu0 0.0
      %284 = vmatpush1.msra.mxu0 0.0
      %285 = vmatprep.subr.mxu0 0.0
      %286 = vmatpush1.msra.mxu0 0.0
      %287 = vmatprep.subr.mxu0 0.0
      %288 = vmatpush1.msra.mxu0 0.0
      %289 = vmatprep.subr.mxu0 0.0
      %290 = vmatpush1.msra.mxu0 0.0
      %291 = vmatprep.subr.mxu0 0.0
      %292 = vmatpush1.msra.mxu0 0.0
      %293 = vmatprep.subr.mxu0 0.0
      %294 = vmatpush1.msra.mxu0 0.0
      %295 = vmatprep.subr.mxu0 0.0
      %296 = vmatpush1.msra.mxu0 0.0
      %297 = vmatprep.subr.mxu0 0.0
      %298 = vmatpush1.msra.mxu0 0.0
      %299 = vmatprep.subr.mxu0 0.0
      %300 = vmatpush1.msra.mxu0 0.0
      %301 = vmatprep.subr.mxu0 0.0
      %302 = vmatpush1.msra.mxu0 0.0
      %303 = vmatprep.subr.mxu0 0.0
      %304 = vmatpush1.msra.mxu0 0.0
      %305 = vmatprep.subr.mxu0 0.0
      %306 = vmatpush1.msra.mxu0 0.0
      %307 = vmatprep.subr.mxu0 0.0
      %308 = vmatpush1.msra.mxu0 0.0
      %309 = vmatprep.subr.mxu0 0.0
      %310 = vmatpush1.msra.mxu0 0.0
      %311 = vmatprep.subr.mxu0 0.0
      %312 = vmatpush1.msra.mxu0 0.0
      %313 = vmatprep.subr.mxu0 0.0
      %314 = vmatpush1.msra.mxu0 0.0
      %315 = vmatprep.subr.mxu0 0.0
      %316 = vmatpush1.msra.mxu0 0.0
      %317 = vmatprep.mubr.f32.mxu0 0.0
      %318 = vmatmul.mubr.f32.gmra.mrb[0].mxu0 %v251
      %v319 = vpop.f32.mrb[0].mxu0
      %v320 = vadd.f32 0.0, %v319
      %v321 = vpop.f32.mrb[0].mxu0
      %322 = vdwg.mxu0
      %323 = vrot.lane.b32.xlu0 %v320, 1
      %v324 = vpop.permute.xlu0 %323
      %v325 = vld [vmem:[%s1] sm:$0x1]
      %v326 = vlaneseq
      %v327 = vshrl.u32 %v326, 7
      %v328 = vsub.s32 0, %v327
      %v329 = vrot.slane %v325, %v328
      %v330 = vmul.f32 %v324, %v329
      %s331 = scalar_lea.vmem %s2, 8
      %v332 = vld [vmem:[%s331] sm:$0xff]
      %v334 = vsel %vm249, %v332, 0
      %336 = vmatprep.subr.mxu0 0.0
      %337 = vmatpush1.msra.mxu0 %v247
      %338 = vmatprep.subr.mxu0 0.0
      %339 = vmatpush1.msra.mxu0 0.0
      %340 = vmatprep.subr.mxu0 0.0
      %341 = vmatpush1.msra.mxu0 0.0
      %342 = vmatprep.subr.mxu0 0.0
      %343 = vmatpush1.msra.mxu0 0.0
      %344 = vmatprep.subr.mxu0 0.0
      %345 = vmatpush1.msra.mxu0 0.0
      %346 = vmatprep.subr.mxu0 0.0
      %347 = vmatpush1.msra.mxu0 0.0
      %348 = vmatprep.subr.mxu0 0.0
      %349 = vmatpush1.msra.mxu0 0.0
      %350 = vmatprep.subr.mxu0 0.0
      %351 = vmatpush1.msra.mxu0 0.0
      %352 = vmatprep.subr.mxu0 0.0
      %353 = vmatpush1.msra.mxu0 0.0
      %354 = vmatprep.subr.mxu0 0.0
      %355 = vmatpush1.msra.mxu0 0.0
      %356 = vmatprep.subr.mxu0 0.0
      %357 = vmatpush1.msra.mxu0 0.0
      %358 = vmatprep.subr.mxu0 0.0
      %359 = vmatpush1.msra.mxu0 0.0
      %360 = vmatprep.subr.mxu0 0.0
      %361 = vmatpush1.msra.mxu0 0.0
      %362 = vmatprep.subr.mxu0 0.0
      %363 = vmatpush1.msra.mxu0 0.0
      %364 = vmatprep.subr.mxu0 0.0
      %365 = vmatpush1.msra.mxu0 0.0
      %366 = vmatprep.subr.mxu0 0.0
      %367 = vmatpush1.msra.mxu0 0.0
      %368 = vmatprep.subr.mxu0 0.0
      %369 = vmatpush1.msra.mxu0 0.0
      %370 = vmatprep.subr.mxu0 0.0
      %371 = vmatpush1.msra.mxu0 0.0
      %372 = vmatprep.subr.mxu0 0.0
      %373 = vmatpush1.msra.mxu0 0.0
      %374 = vmatprep.subr.mxu0 0.0
      %375 = vmatpush1.msra.mxu0 0.0
      %376 = vmatprep.subr.mxu0 0.0
      %377 = vmatpush1.msra.mxu0 0.0
      %378 = vmatprep.subr.mxu0 0.0
      %379 = vmatpush1.msra.mxu0 0.0
      %380 = vmatprep.subr.mxu0 0.0
      %381 = vmatpush1.msra.mxu0 0.0
      %382 = vmatprep.subr.mxu0 0.0
      %383 = vmatpush1.msra.mxu0 0.0
      %384 = vmatprep.subr.mxu0 0.0
      %385 = vmatpush1.msra.mxu0 0.0
      %386 = vmatprep.subr.mxu0 0.0
      %387 = vmatpush1.msra.mxu0 0.0
      %388 = vmatprep.subr.mxu0 0.0
      %389 = vmatpush1.msra.mxu0 0.0
      %390 = vmatprep.subr.mxu0 0.0
      %391 = vmatpush1.msra.mxu0 0.0
      %392 = vmatprep.subr.mxu0 0.0
      %393 = vmatpush1.msra.mxu0 0.0
      %394 = vmatprep.subr.mxu0 0.0
      %395 = vmatpush1.msra.mxu0 0.0
      %396 = vmatprep.subr.mxu0 0.0
      %397 = vmatpush1.msra.mxu0 0.0
      %398 = vmatprep.subr.mxu0 0.0
      %399 = vmatpush1.msra.mxu0 0.0
      %400 = vmatprep.mubr.f32.mxu0 0.0
      %401 = vmatmul.mubr.f32.gmra.mrb[0].mxu0 %v334
      %v402 = vpop.f32.mrb[0].mxu0
      %v403 = vadd.f32 0.0, %v402
      %v404 = vpop.f32.mrb[0].mxu0
      %405 = vdwg.mxu0
      %v406 = vadd.f32 %v330, %v403
      %s407 = scalar_lea.vmem %s2, 16
      %v408 = vld [vmem:[%s407] sm:$0xff]
      %v410 = vsel %vm249, %v408, 0
      %412 = vmatprep.subr.mxu0 0.0
      %413 = vmatpush1.msra.mxu0 %v247
      %414 = vmatprep.subr.mxu0 0.0
      %415 = vmatpush1.msra.mxu0 0.0
      %416 = vmatprep.subr.mxu0 0.0
      %417 = vmatpush1.msra.mxu0 0.0
      %418 = vmatprep.subr.mxu0 0.0
      %419 = vmatpush1.msra.mxu0 0.0
      %420 = vmatprep.subr.mxu0 0.0
      %421 = vmatpush1.msra.mxu0 0.0
      %422 = vmatprep.subr.mxu0 0.0
      %423 = vmatpush1.msra.mxu0 0.0
      %424 = vmatprep.subr.mxu0 0.0
      %425 = vmatpush1.msra.mxu0 0.0
      %426 = vmatprep.subr.mxu0 0.0
      %427 = vmatpush1.msra.mxu0 0.0
      %428 = vmatprep.subr.mxu0 0.0
      %429 = vmatpush1.msra.mxu0 0.0
      %430 = vmatprep.subr.mxu0 0.0
      %431 = vmatpush1.msra.mxu0 0.0
      %432 = vmatprep.subr.mxu0 0.0
      %433 = vmatpush1.msra.mxu0 0.0
      %434 = vmatprep.subr.mxu0 0.0
      %435 = vmatpush1.msra.mxu0 0.0
      %436 = vmatprep.subr.mxu0 0.0
      %437 = vmatpush1.msra.mxu0 0.0
      %438 = vmatprep.subr.mxu0 0.0
      %439 = vmatpush1.msra.mxu0 0.0
      %440 = vmatprep.subr.mxu0 0.0
      %441 = vmatpush1.msra.mxu0 0.0
      %442 = vmatprep.subr.mxu0 0.0
      %443 = vmatpush1.msra.mxu0 0.0
      %444 = vmatprep.subr.mxu0 0.0
      %445 = vmatpush1.msra.mxu0 0.0
      %446 = vmatprep.subr.mxu0 0.0
      %447 = vmatpush1.msra.mxu0 0.0
      %448 = vmatprep.subr.mxu0 0.0
      %449 = vmatpush1.msra.mxu0 0.0
      %450 = vmatprep.subr.mxu0 0.0
      %451 = vmatpush1.msra.mxu0 0.0
      %452 = vmatprep.subr.mxu0 0.0
      %453 = vmatpush1.msra.mxu0 0.0
      %454 = vmatprep.subr.mxu0 0.0
      %455 = vmatpush1.msra.mxu0 0.0
      %456 = vmatprep.subr.mxu0 0.0
      %457 = vmatpush1.msra.mxu0 0.0
      %458 = vmatprep.subr.mxu0 0.0
      %459 = vmatpush1.msra.mxu0 0.0
      %460 = vmatprep.subr.mxu0 0.0
      %461 = vmatpush1.msra.mxu0 0.0
      %462 = vmatprep.subr.mxu0 0.0
      %463 = vmatpush1.msra.mxu0 0.0
      %464 = vmatprep.subr.mxu0 0.0
      %465 = vmatpush1.msra.mxu0 0.0
      %466 = vmatprep.subr.mxu0 0.0
      %467 = vmatpush1.msra.mxu0 0.0
      %468 = vmatprep.subr.mxu0 0.0
      %469 = vmatpush1.msra.mxu0 0.0
      %470 = vmatprep.subr.mxu0 0.0
      %471 = vmatpush1.msra.mxu0 0.0
      %472 = vmatprep.subr.mxu0 0.0
      %473 = vmatpush1.msra.mxu0 0.0
      %474 = vmatprep.subr.mxu0 0.0
      %475 = vmatpush1.msra.mxu0 0.0
      %476 = vmatprep.mubr.f32.mxu0 0.0
      %477 = vmatmul.mubr.f32.gmra.mrb[0].mxu0 %v410
      %v478 = vpop.f32.mrb[0].mxu0
      %v479 = vadd.f32 0.0, %v478
      %v480 = vpop.f32.mrb[0].mxu0
      %481 = vdwg.mxu0
      %482 = vrot.lane.b32.xlu0 %v479, 127
      %v483 = vpop.permute.xlu0 %482
      %v484 = vld [vmem:[%s1 + $0x2] sm:$0x1]
      %v485 = vlaneseq
      %v486 = vshrl.u32 %v485, 7
      %v487 = vsub.s32 0, %v486
      %v488 = vrot.slane %v484, %v487
      %v489 = vmul.f32 %v483, %v488
      %v490 = vadd.f32 %v406, %v489
      %v491 = vld [vmem:[%s3] sm:$0xff]
      %493 = vset.pattern.permute.xlu0 0
      %494 = vperm.xlu0 %493, %v491
      %v495 = vpop.permute.xlu0 %494
      %v497 = vadd.f32 %v490, %v495
      %v498 = vmax.f32 %v497, 0.0
      %v499 = vld [vmem:[%s4] sm:$0xff]
      %v501 = vsel %vm249, %v499, 0
      %503 = vmatprep.subr.mxu0 0.0
      %504 = vmatpush1.msra.mxu0 %v498
      %505 = vmatprep.subr.mxu0 0.0
      %506 = vmatpush1.msra.mxu0 0.0
      %507 = vmatprep.subr.mxu0 0.0
      %508 = vmatpush1.msra.mxu0 0.0
      %509 = vmatprep.subr.mxu0 0.0
      %510 = vmatpush1.msra.mxu0 0.0
      %511 = vmatprep.subr.mxu0 0.0
      %512 = vmatpush1.msra.mxu0 0.0
      %513 = vmatprep.subr.mxu0 0.0
      %514 = vmatpush1.msra.mxu0 0.0
      %515 = vmatprep.subr.mxu0 0.0
      %516 = vmatpush1.msra.mxu0 0.0
      %517 = vmatprep.subr.mxu0 0.0
      %518 = vmatpush1.msra.mxu0 0.0
      %519 = vmatprep.subr.mxu0 0.0
      %520 = vmatpush1.msra.mxu0 0.0
      %521 = vmatprep.subr.mxu0 0.0
      %522 = vmatpush1.msra.mxu0 0.0
      %523 = vmatprep.subr.mxu0 0.0
      %524 = vmatpush1.msra.mxu0 0.0
      %525 = vmatprep.subr.mxu0 0.0
      %526 = vmatpush1.msra.mxu0 0.0
      %527 = vmatprep.subr.mxu0 0.0
      %528 = vmatpush1.msra.mxu0 0.0
      %529 = vmatprep.subr.mxu0 0.0
      %530 = vmatpush1.msra.mxu0 0.0
      %531 = vmatprep.subr.mxu0 0.0
      %532 = vmatpush1.msra.mxu0 0.0
      %533 = vmatprep.subr.mxu0 0.0
      %534 = vmatpush1.msra.mxu0 0.0
      %535 = vmatprep.subr.mxu0 0.0
      %536 = vmatpush1.msra.mxu0 0.0
      %537 = vmatprep.subr.mxu0 0.0
      %538 = vmatpush1.msra.mxu0 0.0
      %539 = vmatprep.subr.mxu0 0.0
      %540 = vmatpush1.msra.mxu0 0.0
      %541 = vmatprep.subr.mxu0 0.0
      %542 = vmatpush1.msra.mxu0 0.0
      %543 = vmatprep.subr.mxu0 0.0
      %544 = vmatpush1.msra.mxu0 0.0
      %545 = vmatprep.subr.mxu0 0.0
      %546 = vmatpush1.msra.mxu0 0.0
      %547 = vmatprep.subr.mxu0 0.0
      %548 = vmatpush1.msra.mxu0 0.0
      %549 = vmatprep.subr.mxu0 0.0
      %550 = vmatpush1.msra.mxu0 0.0
      %551 = vmatprep.subr.mxu0 0.0
      %552 = vmatpush1.msra.mxu0 0.0
      %553 = vmatprep.subr.mxu0 0.0
      %554 = vmatpush1.msra.mxu0 0.0
      %555 = vmatprep.subr.mxu0 0.0
      %556 = vmatpush1.msra.mxu0 0.0
      %557 = vmatprep.subr.mxu0 0.0
      %558 = vmatpush1.msra.mxu0 0.0
      %559 = vmatprep.subr.mxu0 0.0
      %560 = vmatpush1.msra.mxu0 0.0
      %561 = vmatprep.subr.mxu0 0.0
      %562 = vmatpush1.msra.mxu0 0.0
      %563 = vmatprep.subr.mxu0 0.0
      %564 = vmatpush1.msra.mxu0 0.0
      %565 = vmatprep.subr.mxu0 0.0
      %566 = vmatpush1.msra.mxu0 0.0
      %567 = vmatprep.mubr.f32.mxu0 0.0
      %568 = vmatmul.mubr.f32.gmra.mrb[0].mxu0 %v501
      %v569 = vpop.f32.mrb[0].mxu0
      %v570 = vadd.f32 0.0, %v569
      %v571 = vpop.f32.mrb[0].mxu0
      %572 = vdwg.mxu0
      %573 = vrot.lane.b32.xlu0 %v570, 1
      %v574 = vpop.permute.xlu0 %573
      %v575 = vmul.f32 %v574, %v329
      %s576 = scalar_lea.vmem %s4, 8
      %v577 = vld [vmem:[%s576] sm:$0xff]
      %v579 = vsel %vm249, %v577, 0
      %581 = vmatprep.subr.mxu0 0.0
      %582 = vmatpush1.msra.mxu0 %v498
      %583 = vmatprep.subr.mxu0 0.0
      %584 = vmatpush1.msra.mxu0 0.0
      %585 = vmatprep.subr.mxu0 0.0
      %586 = vmatpush1.msra.mxu0 0.0
      %587 = vmatprep.subr.mxu0 0.0
      %588 = vmatpush1.msra.mxu0 0.0
      %589 = vmatprep.subr.mxu0 0.0
      %590 = vmatpush1.msra.mxu0 0.0
      %591 = vmatprep.subr.mxu0 0.0
      %592 = vmatpush1.msra.mxu0 0.0
      %593 = vmatprep.subr.mxu0 0.0
      %594 = vmatpush1.msra.mxu0 0.0
      %595 = vmatprep.subr.mxu0 0.0
      %596 = vmatpush1.msra.mxu0 0.0
      %597 = vmatprep.subr.mxu0 0.0
      %598 = vmatpush1.msra.mxu0 0.0
      %599 = vmatprep.subr.mxu0 0.0
      %600 = vmatpush1.msra.mxu0 0.0
      %601 = vmatprep.subr.mxu0 0.0
      %602 = vmatpush1.msra.mxu0 0.0
      %603 = vmatprep.subr.mxu0 0.0
      %604 = vmatpush1.msra.mxu0 0.0
      %605 = vmatprep.subr.mxu0 0.0
      %606 = vmatpush1.msra.mxu0 0.0
      %607 = vmatprep.subr.mxu0 0.0
      %608 = vmatpush1.msra.mxu0 0.0
      %609 = vmatprep.subr.mxu0 0.0
      %610 = vmatpush1.msra.mxu0 0.0
      %611 = vmatprep.subr.mxu0 0.0
      %612 = vmatpush1.msra.mxu0 0.0
      %613 = vmatprep.subr.mxu0 0.0
      %614 = vmatpush1.msra.mxu0 0.0
      %615 = vmatprep.subr.mxu0 0.0
      %616 = vmatpush1.msra.mxu0 0.0
      %617 = vmatprep.subr.mxu0 0.0
      %618 = vmatpush1.msra.mxu0 0.0
      %619 = vmatprep.subr.mxu0 0.0
      %620 = vmatpush1.msra.mxu0 0.0
      %621 = vmatprep.subr.mxu0 0.0
      %622 = vmatpush1.msra.mxu0 0.0
      %623 = vmatprep.subr.mxu0 0.0
      %624 = vmatpush1.msra.mxu0 0.0
      %625 = vmatprep.subr.mxu0 0.0
      %626 = vmatpush1.msra.mxu0 0.0
      %627 = vmatprep.subr.mxu0 0.0
      %628 = vmatpush1.msra.mxu0 0.0
      %629 = vmatprep.subr.mxu0 0.0
      %630 = vmatpush1.msra.mxu0 0.0
      %631 = vmatprep.subr.mxu0 0.0
      %632 = vmatpush1.msra.mxu0 0.0
      %633 = vmatprep.subr.mxu0 0.0
      %634 = vmatpush1.msra.mxu0 0.0
      %635 = vmatprep.subr.mxu0 0.0
      %636 = vmatpush1.msra.mxu0 0.0
      %637 = vmatprep.subr.mxu0 0.0
      %638 = vmatpush1.msra.mxu0 0.0
      %639 = vmatprep.subr.mxu0 0.0
      %640 = vmatpush1.msra.mxu0 0.0
      %641 = vmatprep.subr.mxu0 0.0
      %642 = vmatpush1.msra.mxu0 0.0
      %643 = vmatprep.subr.mxu0 0.0
      %644 = vmatpush1.msra.mxu0 0.0
      %645 = vmatprep.mubr.f32.mxu0 0.0
      %646 = vmatmul.mubr.f32.gmra.mrb[0].mxu0 %v579
      %v647 = vpop.f32.mrb[0].mxu0
      %v648 = vadd.f32 0.0, %v647
      %v649 = vpop.f32.mrb[0].mxu0
      %650 = vdwg.mxu0
      %v651 = vadd.f32 %v575, %v648
      %s652 = scalar_lea.vmem %s4, 16
      %v653 = vld [vmem:[%s652] sm:$0xff]
      %v655 = vsel %vm249, %v653, 0
      %657 = vmatprep.subr.mxu0 0.0
      %658 = vmatpush1.msra.mxu0 %v498
      %659 = vmatprep.subr.mxu0 0.0
      %660 = vmatpush1.msra.mxu0 0.0
      %661 = vmatprep.subr.mxu0 0.0
      %662 = vmatpush1.msra.mxu0 0.0
      %663 = vmatprep.subr.mxu0 0.0
      %664 = vmatpush1.msra.mxu0 0.0
      %665 = vmatprep.subr.mxu0 0.0
      %666 = vmatpush1.msra.mxu0 0.0
      %667 = vmatprep.subr.mxu0 0.0
      %668 = vmatpush1.msra.mxu0 0.0
      %669 = vmatprep.subr.mxu0 0.0
      %670 = vmatpush1.msra.mxu0 0.0
      %671 = vmatprep.subr.mxu0 0.0
      %672 = vmatpush1.msra.mxu0 0.0
      %673 = vmatprep.subr.mxu0 0.0
      %674 = vmatpush1.msra.mxu0 0.0
      %675 = vmatprep.subr.mxu0 0.0
      %676 = vmatpush1.msra.mxu0 0.0
      %677 = vmatprep.subr.mxu0 0.0
      %678 = vmatpush1.msra.mxu0 0.0
      %679 = vmatprep.subr.mxu0 0.0
      %680 = vmatpush1.msra.mxu0 0.0
      %681 = vmatprep.subr.mxu0 0.0
      %682 = vmatpush1.msra.mxu0 0.0
      %683 = vmatprep.subr.mxu0 0.0
      %684 = vmatpush1.msra.mxu0 0.0
      %685 = vmatprep.subr.mxu0 0.0
      %686 = vmatpush1.msra.mxu0 0.0
      %687 = vmatprep.subr.mxu0 0.0
      %688 = vmatpush1.msra.mxu0 0.0
      %689 = vmatprep.subr.mxu0 0.0
      %690 = vmatpush1.msra.mxu0 0.0
      %691 = vmatprep.subr.mxu0 0.0
      %692 = vmatpush1.msra.mxu0 0.0
      %693 = vmatprep.subr.mxu0 0.0
      %694 = vmatpush1.msra.mxu0 0.0
      %695 = vmatprep.subr.mxu0 0.0
      %696 = vmatpush1.msra.mxu0 0.0
      %697 = vmatprep.subr.mxu0 0.0
      %698 = vmatpush1.msra.mxu0 0.0
      %699 = vmatprep.subr.mxu0 0.0
      %700 = vmatpush1.msra.mxu0 0.0
      %701 = vmatprep.subr.mxu0 0.0
      %702 = vmatpush1.msra.mxu0 0.0
      %703 = vmatprep.subr.mxu0 0.0
      %704 = vmatpush1.msra.mxu0 0.0
      %705 = vmatprep.subr.mxu0 0.0
      %706 = vmatpush1.msra.mxu0 0.0
      %707 = vmatprep.subr.mxu0 0.0
      %708 = vmatpush1.msra.mxu0 0.0
      %709 = vmatprep.subr.mxu0 0.0
      %710 = vmatpush1.msra.mxu0 0.0
      %711 = vmatprep.subr.mxu0 0.0
      %712 = vmatpush1.msra.mxu0 0.0
      %713 = vmatprep.subr.mxu0 0.0
      %714 = vmatpush1.msra.mxu0 0.0
      %715 = vmatprep.subr.mxu0 0.0
      %716 = vmatpush1.msra.mxu0 0.0
      %717 = vmatprep.subr.mxu0 0.0
      %718 = vmatpush1.msra.mxu0 0.0
      %719 = vmatprep.subr.mxu0 0.0
      %720 = vmatpush1.msra.mxu0 0.0
      %721 = vmatprep.mubr.f32.mxu0 0.0
      %722 = vmatmul.mubr.f32.gmra.mrb[0].mxu0 %v655
      %v723 = vpop.f32.mrb[0].mxu0
      %v724 = vadd.f32 0.0, %v723
      %v725 = vpop.f32.mrb[0].mxu0
      %726 = vdwg.mxu0
      %727 = vrot.lane.b32.xlu0 %v724, 127
      %v728 = vpop.permute.xlu0 %727
      %v729 = vmul.f32 %v728, %v488
      %v730 = vadd.f32 %v651, %v729
      %v731 = vld [vmem:[%s5] sm:$0xff]
      %733 = vset.pattern.permute.xlu0 0
      %734 = vperm.xlu0 %733, %v731
      %v735 = vpop.permute.xlu0 %734
      %v737 = vadd.f32 %v730, %v735
      %v738 = vmax.f32 %v737, 0.0
      %739 = vst [vmem:[%s246] sm:$0xff] %v738
      %p740 = scmp.lt.s32.totalorder %s17, 1
      %s741 = scalar_select %p740, %s17, 1
      %s742 = smul.addr %s741, 8
      %s743 = scalar_lea.vmem %s6, %s742
      // Predicated region
      $region45: #{down_seq_forward.4} parent=43 // pred_check
        %p744 = pneg %p166
      $region46: #{down_seq_forward.4} parent=43 // pred_check_branch
        %746 = sbr.rel (%p744) target = $region48
      $region47: #{down_seq_forward.4} parent=43 // pred_region
        _
      $region48: #{down_seq_forward.4} parent=43 // pred_fallthru
        _
    $region44: #{down_seq_forward.4} parent=5 // pred_fallthru
      _
    %p747 = scmp.le.s32.totalorder 2, %s12
    // Predicated region
    $region49: #{down_seq_forward.4} parent=5 // pred_check
      %p748 = pneg %p747
    $region50: #{down_seq_forward.4} parent=5 // pred_check_branch
      %750 = sbr.rel (%p748) target = $region52
    $region51: #{down_seq_forward.4} parent=5 // pred_region
      %s751 = ssub.s32 %s12, 2
      // Predicated region
      $region53: #{down_seq_forward.4} parent=51 // pred_check
        %p752 = pneg %p172
      $region54: #{down_seq_forward.4} parent=51 // pred_check_branch
        %754 = sbr.rel (%p752) target = $region56
      $region55: #{down_seq_forward.4} parent=51 // pred_region
        %p755 = scmp.lt.s32.totalorder %s18, 1
        %s756 = scalar_select %p755, %s18, 1
        %s757 = smul.addr %s756, 8
        %s758 = scalar_lea.vmem %s6, %s757
      $region56: #{down_seq_forward.4} parent=51 // pred_fallthru
        _
    $region52: #{down_seq_forward.4} parent=5 // pred_fallthru
      _
  $region6: #{down_seq_forward.4} parent=0 // loop_footer
    %s16 = sadd.s32 1, %s12
  $region7: #{down_seq_forward.4} parent=0 // loop_footer_branch
    %11 = sbr.rel target = $region3
  $region8: #{down_seq_forward.4} parent=0 // loop_exit
    _

// kernel: down_seq_forward.5
$region0: #{down_seq_forward.5}
  #allocation0 [shape = 'u32[]', space=smem, size = 0x4, offset = 0x4, fixed_abs, tag = 'smem constant byte address 0x4 - core index']
  #allocation1 [shape = 'u32[144,128]{1,0:T(1,128)}', space=vmem, size = 0x12000, scoped, tag = 'internal scratch']
  %s0 = inlined_call_operand.vmem [shape: f32[8,128], index: 0, kind: input, shape index: {}]
  %s1 = inlined_call_operand.vmem [shape: f32[3,128], index: 1, kind: input, shape index: {}]
  %s2 = inlined_call_operand.vmem [shape: f32[3,16,8], index: 2, kind: input, shape index: {}]
  %s3 = inlined_call_operand.vmem [shape: f32[16,1], index: 3, kind: input, shape index: {}]
  %s4 = inlined_call_operand.vmem [shape: f32[3,16,16], index: 4, kind: input, shape index: {}]
  %s5 = inlined_call_operand.vmem [shape: f32[16,1], index: 5, kind: input, shape index: {}]
  %s6 = inlined_call_operand.vmem [shape: f32[16,128], index: 6, kind: output, shape index: {}]
  %s7 = sld [smem:[#allocation0]]
  $region34: #{down_seq_forward.5} parent=0
    _
  %s9 = ssub.s32 1, %s7
  %s10 = scalar_select 0, %s9, %s7
  // Predicated region
  $region2: #{down_seq_forward.5} parent=0 // pred_check
    _
  $region3: #{down_seq_forward.5} parent=0 // pred_check_branch
    %12 = sbr.rel (0) target = $region5
  $region4: #{down_seq_forward.5} parent=0 // pred_region
    _
  $region5: #{down_seq_forward.5} parent=0 // pred_fallthru
    _
  // Predicated region
  $region6: #{down_seq_forward.5} parent=0 // pred_check
    _
  $region7: #{down_seq_forward.5} parent=0 // pred_check_branch
    %14 = sbr.rel (0) target = $region9
  $region8: #{down_seq_forward.5} parent=0 // pred_region
    _
  $region9: #{down_seq_forward.5} parent=0 // pred_fallthru
    _
  // Predicated region
  $region10: #{down_seq_forward.5} parent=0 // pred_check
    _
  $region11: #{down_seq_forward.5} parent=0 // pred_check_branch
    %16 = sbr.rel (0) target = $region13
  $region12: #{down_seq_forward.5} parent=0 // pred_region
    _
  $region13: #{down_seq_forward.5} parent=0 // pred_fallthru
    _
  // Predicated region
  $region14: #{down_seq_forward.5} parent=0 // pred_check
    _
  $region15: #{down_seq_forward.5} parent=0 // pred_check_branch
    %18 = sbr.rel (0) target = $region17
  $region16: #{down_seq_forward.5} parent=0 // pred_region
    _
  $region17: #{down_seq_forward.5} parent=0 // pred_fallthru
    _
  // Predicated region
  $region18: #{down_seq_forward.5} parent=0 // pred_check
    _
  $region19: #{down_seq_forward.5} parent=0 // pred_check_branch
    %20 = sbr.rel (0) target = $region21
  $region20: #{down_seq_forward.5} parent=0 // pred_region
    _
  $region21: #{down_seq_forward.5} parent=0 // pred_fallthru
    _
  // Predicated region
  $region22: #{down_seq_forward.5} parent=0 // pred_check
    _
  $region23: #{down_seq_forward.5} parent=0 // pred_check_branch
    %22 = sbr.rel (0) target = $region25
  $region24: #{down_seq_forward.5} parent=0 // pred_region
    _
  $region25: #{down_seq_forward.5} parent=0 // pred_fallthru
    _
  %v23 = vld [vmem:[%s0] sm:$0xff]
  %v24 = vld [vmem:[%s2] sm:$0xff]
  %v25 = vld [vmem:[%s2 + $0x8] sm:$0xff]
  %vm26 = vcmask 64512
  %v28 = vsel %vm26, %v24, 0
  %v31 = vsel %vm26, %v25, 0
  %33 = vmatprep.subr.mxu0 0.0
  %34 = vmatpush1.msra.mxu0 %v23
  %35 = vmatprep.subr.mxu0 0.0
  %36 = vmatpush1.msra.mxu0 0.0
  %37 = vmatprep.subr.mxu0 0.0
  %38 = vmatpush1.msra.mxu0 0.0
  %39 = vmatprep.subr.mxu0 0.0
  %40 = vmatpush1.msra.mxu0 0.0
  %41 = vmatprep.subr.mxu0 0.0
  %42 = vmatpush1.msra.mxu0 0.0
  %43 = vmatprep.subr.mxu0 0.0
  %44 = vmatpush1.msra.mxu0 0.0
  %45 = vmatprep.subr.mxu0 0.0
  %46 = vmatpush1.msra.mxu0 0.0
  %47 = vmatprep.subr.mxu0 0.0
  %48 = vmatpush1.msra.mxu0 0.0
  %49 = vmatprep.subr.mxu0 0.0
  %50 = vmatpush1.msra.mxu0 0.0
  %51 = vmatprep.subr.mxu0 0.0
  %52 = vmatpush1.msra.mxu0 0.0
  %53 = vmatprep.subr.mxu0 0.0
  %54 = vmatpush1.msra.mxu0 0.0
  %55 = vmatprep.subr.mxu0 0.0
  %56 = vmatpush1.msra.mxu0 0.0
  %57 = vmatprep.subr.mxu0 0.0
  %58 = vmatpush1.msra.mxu0 0.0
  %59 = vmatprep.subr.mxu0 0.0
  %60 = vmatpush1.msra.mxu0 0.0
  %61 = vmatprep.subr.mxu0 0.0
  %62 = vmatpush1.msra.mxu0 0.0
  %63 = vmatprep.subr.mxu0 0.0
  %64 = vmatpush1.msra.mxu0 0.0
  %65 = vmatprep.subr.mxu0 0.0
  %66 = vmatpush1.msra.mxu0 0.0
  %67 = vmatprep.subr.mxu0 0.0
  %68 = vmatpush1.msra.mxu0 0.0
  %69 = vmatprep.subr.mxu0 0.0
  %70 = vmatpush1.msra.mxu0 0.0
  %71 = vmatprep.subr.mxu0 0.0
  %72 = vmatpush1.msra.mxu0 0.0
  %73 = vmatprep.subr.mxu0 0.0
  %74 = vmatpush1.msra.mxu0 0.0
  %75 = vmatprep.subr.mxu0 0.0
  %76 = vmatpush1.msra.mxu0 0.0
  %77 = vmatprep.subr.mxu0 0.0
  %78 = vmatpush1.msra.mxu0 0.0
  %79 = vmatprep.subr.mxu0 0.0
  %80 = vmatpush1.msra.mxu0 0.0
  %81 = vmatprep.subr.mxu0 0.0
  %82 = vmatpush1.msra.mxu0 0.0
  %83 = vmatprep.subr.mxu0 0.0
  %84 = vmatpush1.msra.mxu0 0.0
  %85 = vmatprep.subr.mxu0 0.0
  %86 = vmatpush1.msra.mxu0 0.0
  %87 = vmatprep.subr.mxu0 0.0
  %88 = vmatpush1.msra.mxu0 0.0
  %89 = vmatprep.subr.mxu0 0.0
  %90 = vmatpush1.msra.mxu0 0.0
  %91 = vmatprep.subr.mxu0 0.0
  %92 = vmatpush1.msra.mxu0 0.0
  %93 = vmatprep.subr.mxu0 0.0
  %94 = vmatpush1.msra.mxu0 0.0
  %95 = vmatprep.subr.mxu0 0.0
  %96 = vmatpush1.msra.mxu0 0.0
  %97 = vmatprep.mubr.f32.mxu0 0.0
  %98 = vmatmul.mubr.f32.gmra.mrb[0].mxu0 %v28
  %v99 = vpop.f32.mrb[0].mxu0
  %v100 = vadd.f32 0.0, %v99
  %v101 = vpop.f32.mrb[0].mxu0
  %102 = vmatprep.mubr.f32.mxu0 0.0
  %103 = vmatmul.mubr.f32.gmra.mrb[0].mxu0 %v31
  %v104 = vpop.f32.mrb[0].mxu0
  %v105 = vadd.f32 0.0, %v104
  %v106 = vpop.f32.mrb[0].mxu0
  %107 = vdwg.mxu0
  %108 = vrot.lane.b32.xlu0 %v100, 1
  %v109 = vpop.permute.xlu0 %108
  %110 = vrot.lane.b32.xlu0 %v105, 1
  %v111 = vpop.permute.xlu0 %110
  %v112 = vld [vmem:[%s1] sm:$0x1]
  %v113 = vlaneseq
  %v114 = vshrl.u32 %v113, 7
  %v115 = vsub.s32 0, %v114
  %v116 = vrot.slane %v112, %v115
  %v117 = vmul.f32 %v109, %v116
  %v118 = vmul.f32 %v111, %v116
  %s119 = scalar_lea.vmem %s2, 16
  %v120 = vld [vmem:[%s119] sm:$0xff]
  %v121 = vld [vmem:[%s119 + $0x8] sm:$0xff]
  %v123 = vsel %vm26, %v120, 0
  %v126 = vsel %vm26, %v121, 0
  %128 = vmatprep.subr.mxu0 0.0
  %129 = vmatpush1.msra.mxu0 %v23
  %130 = vmatprep.subr.mxu0 0.0
  %131 = vmatpush1.msra.mxu0 0.0
  %132 = vmatprep.subr.mxu0 0.0
  %133 = vmatpush1.msra.mxu0 0.0
  %134 = vmatprep.subr.mxu0 0.0
  %135 = vmatpush1.msra.mxu0 0.0
  %136 = vmatprep.subr.mxu0 0.0
  %137 = vmatpush1.msra.mxu0 0.0
  %138 = vmatprep.subr.mxu0 0.0
  %139 = vmatpush1.msra.mxu0 0.0
  %140 = vmatprep.subr.mxu0 0.0
  %141 = vmatpush1.msra.mxu0 0.0
  %142 = vmatprep.subr.mxu0 0.0
  %143 = vmatpush1.msra.mxu0 0.0
  %144 = vmatprep.subr.mxu0 0.0
  %145 = vmatpush1.msra.mxu0 0.0
  %146 = vmatprep.subr.mxu0 0.0
  %147 = vmatpush1.msra.mxu0 0.0
  %148 = vmatprep.subr.mxu0 0.0
  %149 = vmatpush1.msra.mxu0 0.0
  %150 = vmatprep.subr.mxu0 0.0
  %151 = vmatpush1.msra.mxu0 0.0
  %152 = vmatprep.subr.mxu0 0.0
  %153 = vmatpush1.msra.mxu0 0.0
  %154 = vmatprep.subr.mxu0 0.0
  %155 = vmatpush1.msra.mxu0 0.0
  %156 = vmatprep.subr.mxu0 0.0
  %157 = vmatpush1.msra.mxu0 0.0
  %158 = vmatprep.subr.mxu0 0.0
  %159 = vmatpush1.msra.mxu0 0.0
  %160 = vmatprep.subr.mxu0 0.0
  %161 = vmatpush1.msra.mxu0 0.0
  %162 = vmatprep.subr.mxu0 0.0
  %163 = vmatpush1.msra.mxu0 0.0
  %164 = vmatprep.subr.mxu0 0.0
  %165 = vmatpush1.msra.mxu0 0.0
  %166 = vmatprep.subr.mxu0 0.0
  %167 = vmatpush1.msra.mxu0 0.0
  %168 = vmatprep.subr.mxu0 0.0
  %169 = vmatpush1.msra.mxu0 0.0
  %170 = vmatprep.subr.mxu0 0.0
  %171 = vmatpush1.msra.mxu0 0.0
  %172 = vmatprep.subr.mxu0 0.0
  %173 = vmatpush1.msra.mxu0 0.0
  %174 = vmatprep.subr.mxu0 0.0
  %175 = vmatpush1.msra.mxu0 0.0
  %176 = vmatprep.subr.mxu0 0.0
  %177 = vmatpush1.msra.mxu0 0.0
  %178 = vmatprep.subr.mxu0 0.0
  %179 = vmatpush1.msra.mxu0 0.0
  %180 = vmatprep.subr.mxu0 0.0
  %181 = vmatpush1.msra.mxu0 0.0
  %182 = vmatprep.subr.mxu0 0.0
  %183 = vmatpush1.msra.mxu0 0.0
  %184 = vmatprep.subr.mxu0 0.0
  %185 = vmatpush1.msra.mxu0 0.0
  %186 = vmatprep.subr.mxu0 0.0
  %187 = vmatpush1.msra.mxu0 0.0
  %188 = vmatprep.subr.mxu0 0.0
  %189 = vmatpush1.msra.mxu0 0.0
  %190 = vmatprep.subr.mxu0 0.0
  %191 = vmatpush1.msra.mxu0 0.0
  %192 = vmatprep.mubr.f32.mxu0 0.0
  %193 = vmatmul.mubr.f32.gmra.mrb[0].mxu0 %v123
  %v194 = vpop.f32.mrb[0].mxu0
  %v195 = vadd.f32 0.0, %v194
  %v196 = vpop.f32.mrb[0].mxu0
  %197 = vmatprep.mubr.f32.mxu0 0.0
  %198 = vmatmul.mubr.f32.gmra.mrb[0].mxu0 %v126
  %v199 = vpop.f32.mrb[0].mxu0
  %v200 = vadd.f32 0.0, %v199
  %v201 = vpop.f32.mrb[0].mxu0
  %202 = vdwg.mxu0
  %v203 = vadd.f32 %v117, %v195
  %v204 = vadd.f32 %v118, %v200
  %s205 = scalar_lea.vmem %s2, 32
  %v206 = vld [vmem:[%s205] sm:$0xff]
  %v207 = vld [vmem:[%s205 + $0x8] sm:$0xff]
  %v209 = vsel %vm26, %v206, 0
  %v212 = vsel %vm26, %v207, 0
  %214 = vmatprep.subr.mxu0 0.0
  %215 = vmatpush1.msra.mxu0 %v23
  %216 = vmatprep.subr.mxu0 0.0
  %217 = vmatpush1.msra.mxu0 0.0
  %218 = vmatprep.subr.mxu0 0.0
  %219 = vmatpush1.msra.mxu0 0.0
  %220 = vmatprep.subr.mxu0 0.0
  %221 = vmatpush1.msra.mxu0 0.0
  %222 = vmatprep.subr.mxu0 0.0
  %223 = vmatpush1.msra.mxu0 0.0
  %224 = vmatprep.subr.mxu0 0.0
  %225 = vmatpush1.msra.mxu0 0.0
  %226 = vmatprep.subr.mxu0 0.0
  %227 = vmatpush1.msra.mxu0 0.0
  %228 = vmatprep.subr.mxu0 0.0
  %229 = vmatpush1.msra.mxu0 0.0
  %230 = vmatprep.subr.mxu0 0.0
  %231 = vmatpush1.msra.mxu0 0.0
  %232 = vmatprep.subr.mxu0 0.0
  %233 = vmatpush1.msra.mxu0 0.0
  %234 = vmatprep.subr.mxu0 0.0
  %235 = vmatpush1.msra.mxu0 0.0
  %236 = vmatprep.subr.mxu0 0.0
  %237 = vmatpush1.msra.mxu0 0.0
  %238 = vmatprep.subr.mxu0 0.0
  %239 = vmatpush1.msra.mxu0 0.0
  %240 = vmatprep.subr.mxu0 0.0
  %241 = vmatpush1.msra.mxu0 0.0
  %242 = vmatprep.subr.mxu0 0.0
  %243 = vmatpush1.msra.mxu0 0.0
  %244 = vmatprep.subr.mxu0 0.0
  %245 = vmatpush1.msra.mxu0 0.0
  %246 = vmatprep.subr.mxu0 0.0
  %247 = vmatpush1.msra.mxu0 0.0
  %248 = vmatprep.subr.mxu0 0.0
  %249 = vmatpush1.msra.mxu0 0.0
  %250 = vmatprep.subr.mxu0 0.0
  %251 = vmatpush1.msra.mxu0 0.0
  %252 = vmatprep.subr.mxu0 0.0
  %253 = vmatpush1.msra.mxu0 0.0
  %254 = vmatprep.subr.mxu0 0.0
  %255 = vmatpush1.msra.mxu0 0.0
  %256 = vmatprep.subr.mxu0 0.0
  %257 = vmatpush1.msra.mxu0 0.0
  %258 = vmatprep.subr.mxu0 0.0
  %259 = vmatpush1.msra.mxu0 0.0
  %260 = vmatprep.subr.mxu0 0.0
  %261 = vmatpush1.msra.mxu0 0.0
  %262 = vmatprep.subr.mxu0 0.0
  %263 = vmatpush1.msra.mxu0 0.0
  %264 = vmatprep.subr.mxu0 0.0
  %265 = vmatpush1.msra.mxu0 0.0
  %266 = vmatprep.subr.mxu0 0.0
  %267 = vmatpush1.msra.mxu0 0.0
  %268 = vmatprep.subr.mxu0 0.0
  %269 = vmatpush1.msra.mxu0 0.0
  %270 = vmatprep.subr.mxu0 0.0
  %271 = vmatpush1.msra.mxu0 0.0
  %272 = vmatprep.subr.mxu0 0.0
  %273 = vmatpush1.msra.mxu0 0.0
  %274 = vmatprep.subr.mxu0 0.0
  %275 = vmatpush1.msra.mxu0 0.0
  %276 = vmatprep.subr.mxu0 0.0
  %277 = vmatpush1.msra.mxu0 0.0
  %278 = vmatprep.mubr.f32.mxu0 0.0
  %279 = vmatmul.mubr.f32.gmra.mrb[0].mxu0 %v209
  %v280 = vpop.f32.mrb[0].mxu0
  %v281 = vadd.f32 0.0, %v280
  %v282 = vpop.f32.mrb[0].mxu0
  %283 = vmatprep.mubr.f32.mxu0 0.0
  %284 = vmatmul.mubr.f32.gmra.mrb[0].mxu0 %v212
  %v285 = vpop.f32.mrb[0].mxu0
  %v286 = vadd.f32 0.0, %v285
  %v287 = vpop.f32.mrb[0].mxu0
  %288 = vdwg.mxu0
  %289 = vrot.lane.b32.xlu0 %v281, 127
  %v290 = vpop.permute.xlu0 %289
  %291 = vrot.lane.b32.xlu0 %v286, 127
  %v292 = vpop.permute.xlu0 %291
  %v293 = vld [vmem:[%s1 + $0x2] sm:$0x1]
  %v294 = vlaneseq
  %v295 = vshrl.u32 %v294, 7
  %v296 = vsub.s32 0, %v295
  %v297 = vrot.slane %v293, %v296
  %v298 = vmul.f32 %v290, %v297
  %v299 = vmul.f32 %v292, %v297
  %v300 = vadd.f32 %v203, %v298
  %v301 = vadd.f32 %v204, %v299
  %v302 = vld [vmem:[%s3] sm:$0xff]
  %v303 = vld [vmem:[%s3 + $0x8] sm:$0xff]
  %305 = vset.pattern.permute.xlu0 0
  %306 = vperm.xlu0 %305, %v302
  %v307 = vpop.permute.xlu0 %306
  %310 = vset.pattern.permute.xlu0 0
  %311 = vperm.xlu0 %310, %v303
  %v312 = vpop.permute.xlu0 %311
  %v314 = vadd.f32 %v300, %v307
  %v315 = vadd.f32 %v301, %v312
  %v316 = vmax.f32 %v314, 0.0
  %v317 = vmax.f32 %v315, 0.0
  %v318 = vld [vmem:[%s4] sm:$0xff]
  %v319 = vld [vmem:[%s4 + $0x8] sm:$0xff]
  %vm320 = vcmask 130048
  %v322 = vsel %vm320, %v318, 0
  %v325 = vsel %vm320, %v319, 0
  %327 = vmatprep.subr.mxu0 0.0
  %328 = vmatpush1.msra.mxu0 %v316
  %329 = vmatprep.subr.mxu0 0.0
  %330 = vmatpush1.msra.mxu0 %v317
  %331 = vmatprep.subr.mxu0 0.0
  %332 = vmatpush1.msra.mxu0 0.0
  %333 = vmatprep.subr.mxu0 0.0
  %334 = vmatpush1.msra.mxu0 0.0
  %335 = vmatprep.subr.mxu0 0.0
  %336 = vmatpush1.msra.mxu0 0.0
  %337 = vmatprep.subr.mxu0 0.0
  %338 = vmatpush1.msra.mxu0 0.0
  %339 = vmatprep.subr.mxu0 0.0
  %340 = vmatpush1.msra.mxu0 0.0
  %341 = vmatprep.subr.mxu0 0.0
  %342 = vmatpush1.msra.mxu0 0.0
  %343 = vmatprep.subr.mxu0 0.0
  %344 = vmatpush1.msra.mxu0 0.0
  %345 = vmatprep.subr.mxu0 0.0
  %346 = vmatpush1.msra.mxu0 0.0
  %347 = vmatprep.subr.mxu0 0.0
  %348 = vmatpush1.msra.mxu0 0.0
  %349 = vmatprep.subr.mxu0 0.0
  %350 = vmatpush1.msra.mxu0 0.0
  %351 = vmatprep.subr.mxu0 0.0
  %352 = vmatpush1.msra.mxu0 0.0
  %353 = vmatprep.subr.mxu0 0.0
  %354 = vmatpush1.msra.mxu0 0.0
  %355 = vmatprep.subr.mxu0 0.0
  %356 = vmatpush1.msra.mxu0 0.0
  %357 = vmatprep.subr.mxu0 0.0
  %358 = vmatpush1.msra.mxu0 0.0
  %359 = vmatprep.subr.mxu0 0.0
  %360 = vmatpush1.msra.mxu0 0.0
  %361 = vmatprep.subr.mxu0 0.0
  %362 = vmatpush1.msra.mxu0 0.0
  %363 = vmatprep.subr.mxu0 0.0
  %364 = vmatpush1.msra.mxu0 0.0
  %365 = vmatprep.subr.mxu0 0.0
  %366 = vmatpush1.msra.mxu0 0.0
  %367 = vmatprep.subr.mxu0 0.0
  %368 = vmatpush1.msra.mxu0 0.0
  %369 = vmatprep.subr.mxu0 0.0
  %370 = vmatpush1.msra.mxu0 0.0
  %371 = vmatprep.subr.mxu0 0.0
  %372 = vmatpush1.msra.mxu0 0.0
  %373 = vmatprep.subr.mxu0 0.0
  %374 = vmatpush1.msra.mxu0 0.0
  %375 = vmatprep.subr.mxu0 0.0
  %376 = vmatpush1.msra.mxu0 0.0
  %377 = vmatprep.subr.mxu0 0.0
  %378 = vmatpush1.msra.mxu0 0.0
  %379 = vmatprep.subr.mxu0 0.0
  %380 = vmatpush1.msra.mxu0 0.0
  %381 = vmatprep.subr.mxu0 0.0
  %382 = vmatpush1.msra.mxu0 0.0
  %383 = vmatprep.subr.mxu0 0.0
  %384 = vmatpush1.msra.mxu0 0.0
  %385 = vmatprep.subr.mxu0 0.0
  %386 = vmatpush1.msra.mxu0 0.0
  %387 = vmatprep.subr.mxu0 0.0
  %388 = vmatpush1.msra.mxu0 0.0
  %389 = vmatprep.subr.mxu0 0.0
  %390 = vmatpush1.msra.mxu0 0.0
  %391 = vmatprep.mubr.f32.mxu0 0.0
  %392 = vmatmul.mubr.f32.gmra.mrb[0].mxu0 %v322
  %v393 = vpop.f32.mrb[0].mxu0
  %v394 = vadd.f32 0.0, %v393
  %v395 = vpop.f32.mrb[0].mxu0
  %396 = vmatprep.mubr.f32.mxu0 0.0
  %397 = vmatmul.mubr.f32.gmra.mrb[0].mxu0 %v325
  %v398 = vpop.f32.mrb[0].mxu0
  %v399 = vadd.f32 0.0, %v398
  %v400 = vpop.f32.mrb[0].mxu0
  %401 = vdwg.mxu0
  %402 = vrot.lane.b32.xlu0 %v394, 1
  %v403 = vpop.permute.xlu0 %402
  %404 = vrot.lane.b32.xlu0 %v399, 1
  %v405 = vpop.permute.xlu0 %404
  %v406 = vmul.f32 %v403, %v116
  %v407 = vmul.f32 %v405, %v116
  %s408 = scalar_lea.vmem %s4, 16
  %v409 = vld [vmem:[%s408] sm:$0xff]
  %v410 = vld [vmem:[%s408 + $0x8] sm:$0xff]
  %v412 = vsel %vm320, %v409, 0
  %v415 = vsel %vm320, %v410, 0
  %417 = vmatprep.subr.mxu0 0.0
  %418 = vmatpush1.msra.mxu0 %v316
  %419 = vmatprep.subr.mxu0 0.0
  %420 = vmatpush1.msra.mxu0 %v317
  %421 = vmatprep.subr.mxu0 0.0
  %422 = vmatpush1.msra.mxu0 0.0
  %423 = vmatprep.subr.mxu0 0.0
  %424 = vmatpush1.msra.mxu0 0.0
  %425 = vmatprep.subr.mxu0 0.0
  %426 = vmatpush1.msra.mxu0 0.0
  %427 = vmatprep.subr.mxu0 0.0
  %428 = vmatpush1.msra.mxu0 0.0
  %429 = vmatprep.subr.mxu0 0.0
  %430 = vmatpush1.msra.mxu0 0.0
  %431 = vmatprep.subr.mxu0 0.0
  %432 = vmatpush1.msra.mxu0 0.0
  %433 = vmatprep.subr.mxu0 0.0
  %434 = vmatpush1.msra.mxu0 0.0
  %435 = vmatprep.subr.mxu0 0.0
  %436 = vmatpush1.msra.mxu0 0.0
  %437 = vmatprep.subr.mxu0 0.0
  %438 = vmatpush1.msra.mxu0 0.0
  %439 = vmatprep.subr.mxu0 0.0
  %440 = vmatpush1.msra.mxu0 0.0
  %441 = vmatprep.subr.mxu0 0.0
  %442 = vmatpush1.msra.mxu0 0.0
  %443 = vmatprep.subr.mxu0 0.0
  %444 = vmatpush1.msra.mxu0 0.0
  %445 = vmatprep.subr.mxu0 0.0
  %446 = vmatpush1.msra.mxu0 0.0
  %447 = vmatprep.subr.mxu0 0.0
  %448 = vmatpush1.msra.mxu0 0.0
  %449 = vmatprep.subr.mxu0 0.0
  %450 = vmatpush1.msra.mxu0 0.0
  %451 = vmatprep.subr.mxu0 0.0
  %452 = vmatpush1.msra.mxu0 0.0
  %453 = vmatprep.subr.mxu0 0.0
  %454 = vmatpush1.msra.mxu0 0.0
  %455 = vmatprep.subr.mxu0 0.0
  %456 = vmatpush1.msra.mxu0 0.0
  %457 = vmatprep.subr.mxu0 0.0
  %458 = vmatpush1.msra.mxu0 0.0
  %459 = vmatprep.subr.mxu0 0.0
  %460 = vmatpush1.msra.mxu0 0.0
  %461 = vmatprep.subr.mxu0 0.0
  %462 = vmatpush1.msra.mxu0 0.0
  %463 = vmatprep.subr.mxu0 0.0
  %464 = vmatpush1.msra.mxu0 0.0
  %465 = vmatprep.subr.mxu0 0.0
  %466 = vmatpush1.msra.mxu0 0.0
  %467 = vmatprep.subr.mxu0 0.0
  %468 = vmatpush1.msra.mxu0 0.0
  %469 = vmatprep.subr.mxu0 0.0
  %470 = vmatpush1.msra.mxu0 0.0
  %471 = vmatprep.subr.mxu0 0.0
  %472 = vmatpush1.msra.mxu0 0.0
  %473 = vmatprep.subr.mxu0 0.0
  %474 = vmatpush1.msra.mxu0 0.0
  %475 = vmatprep.subr.mxu0 0.0
  %476 = vmatpush1.msra.mxu0 0.0
  %477 = vmatprep.subr.mxu0 0.0
  %478 = vmatpush1.msra.mxu0 0.0
  %479 = vmatprep.subr.mxu0 0.0
  %480 = vmatpush1.msra.mxu0 0.0
  %481 = vmatprep.mubr.f32.mxu0 0.0
  %482 = vmatmul.mubr.f32.gmra.mrb[0].mxu0 %v412
  %v483 = vpop.f32.mrb[0].mxu0
  %v484 = vadd.f32 0.0, %v483
  %v485 = vpop.f32.mrb[0].mxu0
  %486 = vmatprep.mubr.f32.mxu0 0.0
  %487 = vmatmul.mubr.f32.gmra.mrb[0].mxu0 %v415
  %v488 = vpop.f32.mrb[0].mxu0
  %v489 = vadd.f32 0.0, %v488
  %v490 = vpop.f32.mrb[0].mxu0
  %491 = vdwg.mxu0
  %v492 = vadd.f32 %v406, %v484
  %v493 = vadd.f32 %v407, %v489
  %s494 = scalar_lea.vmem %s4, 32
  %v495 = vld [vmem:[%s494] sm:$0xff]
  %v496 = vld [vmem:[%s494 + $0x8] sm:$0xff]
  %v498 = vsel %vm320, %v495, 0
  %v501 = vsel %vm320, %v496, 0
  %503 = vmatprep.subr.mxu0 0.0
  %504 = vmatpush1.msra.mxu0 %v316
  %505 = vmatprep.subr.mxu0 0.0
  %506 = vmatpush1.msra.mxu0 %v317
  %507 = vmatprep.subr.mxu0 0.0
  %508 = vmatpush1.msra.mxu0 0.0
  %509 = vmatprep.subr.mxu0 0.0
  %510 = vmatpush1.msra.mxu0 0.0
  %511 = vmatprep.subr.mxu0 0.0
  %512 = vmatpush1.msra.mxu0 0.0
  %513 = vmatprep.subr.mxu0 0.0
  %514 = vmatpush1.msra.mxu0 0.0
  %515 = vmatprep.subr.mxu0 0.0
  %516 = vmatpush1.msra.mxu0 0.0
  %517 = vmatprep.subr.mxu0 0.0
  %518 = vmatpush1.msra.mxu0 0.0
  %519 = vmatprep.subr.mxu0 0.0
  %520 = vmatpush1.msra.mxu0 0.0
  %521 = vmatprep.subr.mxu0 0.0
  %522 = vmatpush1.msra.mxu0 0.0
  %523 = vmatprep.subr.mxu0 0.0
  %524 = vmatpush1.msra.mxu0 0.0
  %525 = vmatprep.subr.mxu0 0.0
  %526 = vmatpush1.msra.mxu0 0.0
  %527 = vmatprep.subr.mxu0 0.0
  %528 = vmatpush1.msra.mxu0 0.0
  %529 = vmatprep.subr.mxu0 0.0
  %530 = vmatpush1.msra.mxu0 0.0
  %531 = vmatprep.subr.mxu0 0.0
  %532 = vmatpush1.msra.mxu0 0.0
  %533 = vmatprep.subr.mxu0 0.0
  %534 = vmatpush1.msra.mxu0 0.0
  %535 = vmatprep.subr.mxu0 0.0
  %536 = vmatpush1.msra.mxu0 0.0
  %537 = vmatprep.subr.mxu0 0.0
  %538 = vmatpush1.msra.mxu0 0.0
  %539 = vmatprep.subr.mxu0 0.0
  %540 = vmatpush1.msra.mxu0 0.0
  %541 = vmatprep.subr.mxu0 0.0
  %542 = vmatpush1.msra.mxu0 0.0
  %543 = vmatprep.subr.mxu0 0.0
  %544 = vmatpush1.msra.mxu0 0.0
  %545 = vmatprep.subr.mxu0 0.0
  %546 = vmatpush1.msra.mxu0 0.0
  %547 = vmatprep.subr.mxu0 0.0
  %548 = vmatpush1.msra.mxu0 0.0
  %549 = vmatprep.subr.mxu0 0.0
  %550 = vmatpush1.msra.mxu0 0.0
  %551 = vmatprep.subr.mxu0 0.0
  %552 = vmatpush1.msra.mxu0 0.0
  %553 = vmatprep.subr.mxu0 0.0
  %554 = vmatpush1.msra.mxu0 0.0
  %555 = vmatprep.subr.mxu0 0.0
  %556 = vmatpush1.msra.mxu0 0.0
  %557 = vmatprep.subr.mxu0 0.0
  %558 = vmatpush1.msra.mxu0 0.0
  %559 = vmatprep.subr.mxu0 0.0
  %560 = vmatpush1.msra.mxu0 0.0
  %561 = vmatprep.subr.mxu0 0.0
  %562 = vmatpush1.msra.mxu0 0.0
  %563 = vmatprep.subr.mxu0 0.0
  %564 = vmatpush1.msra.mxu0 0.0
  %565 = vmatprep.subr.mxu0 0.0
  %566 = vmatpush1.msra.mxu0 0.0
  %567 = vmatprep.mubr.f32.mxu0 0.0
  %568 = vmatmul.mubr.f32.gmra.mrb[0].mxu0 %v498
  %v569 = vpop.f32.mrb[0].mxu0
  %v570 = vadd.f32 0.0, %v569
  %v571 = vpop.f32.mrb[0].mxu0
  %572 = vmatprep.mubr.f32.mxu0 0.0
  %573 = vmatmul.mubr.f32.gmra.mrb[0].mxu0 %v501
  %v574 = vpop.f32.mrb[0].mxu0
  %v575 = vadd.f32 0.0, %v574
  %v576 = vpop.f32.mrb[0].mxu0
  %577 = vdwg.mxu0
  %578 = vrot.lane.b32.xlu0 %v570, 127
  %v579 = vpop.permute.xlu0 %578
  %580 = vrot.lane.b32.xlu0 %v575, 127
  %v581 = vpop.permute.xlu0 %580
  %v582 = vmul.f32 %v579, %v297
  %v583 = vmul.f32 %v581, %v297
  %v584 = vadd.f32 %v492, %v582
  %v585 = vadd.f32 %v493, %v583
  %v586 = vld [vmem:[%s5] sm:$0xff]
  %v587 = vld [vmem:[%s5 + $0x8] sm:$0xff]
  %589 = vset.pattern.permute.xlu0 0
  %590 = vperm.xlu0 %589, %v586
  %v591 = vpop.permute.xlu0 %590
  %594 = vset.pattern.permute.xlu0 0
  %595 = vperm.xlu0 %594, %v587
  %v596 = vpop.permute.xlu0 %595
  %v598 = vadd.f32 %v584, %v591
  %v599 = vadd.f32 %v585, %v596
  %v600 = vmax.f32 %v598, 0.0
  %v601 = vmax.f32 %v599, 0.0
  %602 = vst [vmem:[%s6] sm:$0xff] %v600
  %603 = vst [vmem:[%s6 + $0x8] sm:$0xff] %v601
  // Predicated region
  $region26: #{down_seq_forward.5} parent=0 // pred_check
    _
  $region27: #{down_seq_forward.5} parent=0 // pred_check_branch
    %605 = sbr.rel (0) target = $region29
  $region28: #{down_seq_forward.5} parent=0 // pred_region
    _
  $region29: #{down_seq_forward.5} parent=0 // pred_fallthru
    _
  // Predicated region
  $region30: #{down_seq_forward.5} parent=0 // pred_check
    _
  $region31: #{down_seq_forward.5} parent=0 // pred_check_branch
    %607 = sbr.rel (0) target = $region33
  $region32: #{down_seq_forward.5} parent=0 // pred_region
    _
  $region33: #{down_seq_forward.5} parent=0 // pred_fallthru
    _

// kernel: down_seq_forward.6
$region0: #{down_seq_forward.6}
  #allocation0 [shape = 'u32[]', space=smem, size = 0x4, offset = 0x4, fixed_abs, tag = 'smem constant byte address 0x4 - core index']
  #allocation1 [shape = 'u32[144,128]{1,0:T(1,128)}', space=vmem, size = 0x12000, scoped, tag = 'internal scratch']
  %s0 = inlined_call_operand.vmem [shape: f32[16,64], index: 0, kind: input, shape index: {}]
  %s1 = inlined_call_operand.vmem [shape: f32[3,64], index: 1, kind: input, shape index: {}]
  %s2 = inlined_call_operand.vmem [shape: f32[3,32,16], index: 2, kind: input, shape index: {}]
  %s3 = inlined_call_operand.vmem [shape: f32[32,1], index: 3, kind: input, shape index: {}]
  %s4 = inlined_call_operand.vmem [shape: f32[3,32,32], index: 4, kind: input, shape index: {}]
  %s5 = inlined_call_operand.vmem [shape: f32[32,1], index: 5, kind: input, shape index: {}]
  %s6 = inlined_call_operand.vmem [shape: f32[32,64], index: 6, kind: output, shape index: {}]
  %s7 = sld [smem:[#allocation0]]
  $region34: #{down_seq_forward.6} parent=0
    _
  %s9 = ssub.s32 1, %s7
  %s10 = scalar_select 0, %s9, %s7
  // Predicated region
  $region2: #{down_seq_forward.6} parent=0 // pred_check
    _
  $region3: #{down_seq_forward.6} parent=0 // pred_check_branch
    %12 = sbr.rel (0) target = $region5
  $region4: #{down_seq_forward.6} parent=0 // pred_region
    _
  $region5: #{down_seq_forward.6} parent=0 // pred_fallthru
    _
  // Predicated region
  $region6: #{down_seq_forward.6} parent=0 // pred_check
    _
  $region7: #{down_seq_forward.6} parent=0 // pred_check_branch
    %14 = sbr.rel (0) target = $region9
  $region8: #{down_seq_forward.6} parent=0 // pred_region
    _
  $region9: #{down_seq_forward.6} parent=0 // pred_fallthru
    _
  // Predicated region
  $region10: #{down_seq_forward.6} parent=0 // pred_check
    _
  $region11: #{down_seq_forward.6} parent=0 // pred_check_branch
    %16 = sbr.rel (0) target = $region13
  $region12: #{down_seq_forward.6} parent=0 // pred_region
    _
  $region13: #{down_seq_forward.6} parent=0 // pred_fallthru
    _
  // Predicated region
  $region14: #{down_seq_forward.6} parent=0 // pred_check
    _
  $region15: #{down_seq_forward.6} parent=0 // pred_check_branch
    %18 = sbr.rel (0) target = $region17
  $region16: #{down_seq_forward.6} parent=0 // pred_region
    _
  $region17: #{down_seq_forward.6} parent=0 // pred_fallthru
    _
  // Predicated region
  $region18: #{down_seq_forward.6} parent=0 // pred_check
    _
  $region19: #{down_seq_forward.6} parent=0 // pred_check_branch
    %20 = sbr.rel (0) target = $region21
  $region20: #{down_seq_forward.6} parent=0 // pred_region
    _
  $region21: #{down_seq_forward.6} parent=0 // pred_fallthru
    _
  // Predicated region
  $region22: #{down_seq_forward.6} parent=0 // pred_check
    _
  $region23: #{down_seq_forward.6} parent=0 // pred_check_branch
    %22 = sbr.rel (0) target = $region25
  $region24: #{down_seq_forward.6} parent=0 // pred_region
    _
  $region25: #{down_seq_forward.6} parent=0 // pred_fallthru
    _
  %v23 = vld [vmem:[%s0] sm:$0xff]
  %v24 = vld [vmem:[%s0 + $0x8] sm:$0xff]
  %v25 = vld [vmem:[%s2] sm:$0xff]
  %v26 = vld [vmem:[%s2 + $0x8] sm:$0xff]
  %v27 = vld [vmem:[%s2 + $0x10] sm:$0xff]
  %v28 = vld [vmem:[%s2 + $0x18] sm:$0xff]
  %vm29 = vcmask 130048
  %v31 = vsel %vm29, %v25, 0
  %v34 = vsel %vm29, %v26, 0
  %v37 = vsel %vm29, %v27, 0
  %v40 = vsel %vm29, %v28, 0
  %42 = vmatprep.subr.mxu0 0.0
  %43 = vmatpush1.msra.mxu0 %v23
  %44 = vmatprep.subr.mxu0 0.0
  %45 = vmatpush1.msra.mxu0 %v24
  %46 = vmatprep.subr.mxu0 0.0
  %47 = vmatpush1.msra.mxu0 0.0
  %48 = vmatprep.subr.mxu0 0.0
  %49 = vmatpush1.msra.mxu0 0.0
  %50 = vmatprep.subr.mxu0 0.0
  %51 = vmatpush1.msra.mxu0 0.0
  %52 = vmatprep.subr.mxu0 0.0
  %53 = vmatpush1.msra.mxu0 0.0
  %54 = vmatprep.subr.mxu0 0.0
  %55 = vmatpush1.msra.mxu0 0.0
  %56 = vmatprep.subr.mxu0 0.0
  %57 = vmatpush1.msra.mxu0 0.0
  %58 = vmatprep.subr.mxu0 0.0
  %59 = vmatpush1.msra.mxu0 0.0
  %60 = vmatprep.subr.mxu0 0.0
  %61 = vmatpush1.msra.mxu0 0.0
  %62 = vmatprep.subr.mxu0 0.0
  %63 = vmatpush1.msra.mxu0 0.0
  %64 = vmatprep.subr.mxu0 0.0
  %65 = vmatpush1.msra.mxu0 0.0
  %66 = vmatprep.subr.mxu0 0.0
  %67 = vmatpush1.msra.mxu0 0.0
  %68 = vmatprep.subr.mxu0 0.0
  %69 = vmatpush1.msra.mxu0 0.0
  %70 = vmatprep.subr.mxu0 0.0
  %71 = vmatpush1.msra.mxu0 0.0
  %72 = vmatprep.subr.mxu0 0.0
  %73 = vmatpush1.msra.mxu0 0.0
  %74 = vmatprep.subr.mxu0 0.0
  %75 = vmatpush1.msra.mxu0 0.0
  %76 = vmatprep.subr.mxu0 0.0
  %77 = vmatpush1.msra.mxu0 0.0
  %78 = vmatprep.subr.mxu0 0.0
  %79 = vmatpush1.msra.mxu0 0.0
  %80 = vmatprep.subr.mxu0 0.0
  %81 = vmatpush1.msra.mxu0 0.0
  %82 = vmatprep.subr.mxu0 0.0
  %83 = vmatpush1.msra.mxu0 0.0
  %84 = vmatprep.subr.mxu0 0.0
  %85 = vmatpush1.msra.mxu0 0.0
  %86 = vmatprep.subr.mxu0 0.0
  %87 = vmatpush1.msra.mxu0 0.0
  %88 = vmatprep.subr.mxu0 0.0
  %89 = vmatpush1.msra.mxu0 0.0
  %90 = vmatprep.subr.mxu0 0.0
  %91 = vmatpush1.msra.mxu0 0.0
  %92 = vmatprep.subr.mxu0 0.0
  %93 = vmatpush1.msra.mxu0 0.0
  %94 = vmatprep.subr.mxu0 0.0
  %95 = vmatpush1.msra.mxu0 0.0
  %96 = vmatprep.subr.mxu0 0.0
  %97 = vmatpush1.msra.mxu0 0.0
  %98 = vmatprep.subr.mxu0 0.0
  %99 = vmatpush1.msra.mxu0 0.0
  %100 = vmatprep.subr.mxu0 0.0
  %101 = vmatpush1.msra.mxu0 0.0
  %102 = vmatprep.subr.mxu0 0.0
  %103 = vmatpush1.msra.mxu0 0.0
  %104 = vmatprep.subr.mxu0 0.0
  %105 = vmatpush1.msra.mxu0 0.0
  %106 = vmatprep.mubr.f32.mxu0 0.0
  %107 = vmatmul.mubr.f32.gmra.mrb[0].mxu0 %v31
  %v108 = vpop.f32.mrb[0].mxu0
  %v109 = vadd.f32 0.0, %v108
  %v110 = vpop.f32.mrb[0].mxu0
  %111 = vmatprep.mubr.f32.mxu0 0.0
  %112 = vmatmul.mubr.f32.gmra.mrb[0].mxu0 %v34
  %v113 = vpop.f32.mrb[0].mxu0
  %v114 = vadd.f32 0.0, %v113
  %v115 = vpop.f32.mrb[0].mxu0
  %116 = vmatprep.mubr.f32.mxu0 0.0
  %117 = vmatmul.mubr.f32.gmra.mrb[0].mxu0 %v37
  %v118 = vpop.f32.mrb[0].mxu0
  %v119 = vadd.f32 0.0, %v118
  %v120 = vpop.f32.mrb[0].mxu0
  %121 = vmatprep.mubr.f32.mxu0 0.0
  %122 = vmatmul.mubr.f32.gmra.mrb[0].mxu0 %v40
  %v123 = vpop.f32.mrb[0].mxu0
  %v124 = vadd.f32 0.0, %v123
  %v125 = vpop.f32.mrb[0].mxu0
  %126 = vdwg.mxu0
  %131 = vrot.lane.b32.xlu0 %v109, 1
  %v132 = vpop.permute.xlu0 %131
  %133 = vrot.lane.b32.xlu0 %v114, 1
  %v134 = vpop.permute.xlu0 %133
  %135 = vrot.lane.b32.xlu0 %v119, 1
  %v136 = vpop.permute.xlu0 %135
  %137 = vrot.lane.b32.xlu0 %v124, 1
  %v138 = vpop.permute.xlu0 %137
  %vm143 = vcmask 7168
  %v144 = vsel %vm143, 0.0, %v132
  %v145 = vsel %vm143, 0.0, %v134
  %v146 = vsel %vm143, 0.0, %v136
  %v147 = vsel %vm143, 0.0, %v138
  %v148 = vld [vmem:[%s1] sm:$0x1]
  %v149 = vlaneseq
  %v150 = vshrl.u32 %v149, 7
  %v151 = vsub.s32 0, %v150
  %v152 = vrot.slane %v148, %v151
  %v153 = vmul.f32 %v144, %v152
  %v154 = vmul.f32 %v145, %v152
  %v155 = vmul.f32 %v146, %v152
  %v156 = vmul.f32 %v147, %v152
  %s157 = scalar_lea.vmem %s2, 32
  %v158 = vld [vmem:[%s157] sm:$0xff]
  %v159 = vld [vmem:[%s157 + $0x8] sm:$0xff]
  %v160 = vld [vmem:[%s157 + $0x10] sm:$0xff]
  %v161 = vld [vmem:[%s157 + $0x18] sm:$0xff]
  %v163 = vsel %vm29, %v158, 0
  %v166 = vsel %vm29, %v159, 0
  %v169 = vsel %vm29, %v160, 0
  %v172 = vsel %vm29, %v161, 0
  %174 = vmatprep.subr.mxu0 0.0
  %175 = vmatpush1.msra.mxu0 %v23
  %176 = vmatprep.subr.mxu0 0.0
  %177 = vmatpush1.msra.mxu0 %v24
  %178 = vmatprep.subr.mxu0 0.0
  %179 = vmatpush1.msra.mxu0 0.0
  %180 = vmatprep.subr.mxu0 0.0
  %181 = vmatpush1.msra.mxu0 0.0
  %182 = vmatprep.subr.mxu0 0.0
  %183 = vmatpush1.msra.mxu0 0.0
  %184 = vmatprep.subr.mxu0 0.0
  %185 = vmatpush1.msra.mxu0 0.0
  %186 = vmatprep.subr.mxu0 0.0
  %187 = vmatpush1.msra.mxu0 0.0
  %188 = vmatprep.subr.mxu0 0.0
  %189 = vmatpush1.msra.mxu0 0.0
  %190 = vmatprep.subr.mxu0 0.0
  %191 = vmatpush1.msra.mxu0 0.0
  %192 = vmatprep.subr.mxu0 0.0
  %193 = vmatpush1.msra.mxu0 0.0
  %194 = vmatprep.subr.mxu0 0.0
  %195 = vmatpush1.msra.mxu0 0.0
  %196 = vmatprep.subr.mxu0 0.0
  %197 = vmatpush1.msra.mxu0 0.0
  %198 = vmatprep.subr.mxu0 0.0
  %199 = vmatpush1.msra.mxu0 0.0
  %200 = vmatprep.subr.mxu0 0.0
  %201 = vmatpush1.msra.mxu0 0.0
  %202 = vmatprep.subr.mxu0 0.0
  %203 = vmatpush1.msra.mxu0 0.0
  %204 = vmatprep.subr.mxu0 0.0
  %205 = vmatpush1.msra.mxu0 0.0
  %206 = vmatprep.subr.mxu0 0.0
  %207 = vmatpush1.msra.mxu0 0.0
  %208 = vmatprep.subr.mxu0 0.0
  %209 = vmatpush1.msra.mxu0 0.0
  %210 = vmatprep.subr.mxu0 0.0
  %211 = vmatpush1.msra.mxu0 0.0
  %212 = vmatprep.subr.mxu0 0.0
  %213 = vmatpush1.msra.mxu0 0.0
  %214 = vmatprep.subr.mxu0 0.0
  %215 = vmatpush1.msra.mxu0 0.0
  %216 = vmatprep.subr.mxu0 0.0
  %217 = vmatpush1.msra.mxu0 0.0
  %218 = vmatprep.subr.mxu0 0.0
  %219 = vmatpush1.msra.mxu0 0.0
  %220 = vmatprep.subr.mxu0 0.0
  %221 = vmatpush1.msra.mxu0 0.0
  %222 = vmatprep.subr.mxu0 0.0
  %223 = vmatpush1.msra.mxu0 0.0
  %224 = vmatprep.subr.mxu0 0.0
  %225 = vmatpush1.msra.mxu0 0.0
  %226 = vmatprep.subr.mxu0 0.0
  %227 = vmatpush1.msra.mxu0 0.0
  %228 = vmatprep.subr.mxu0 0.0
  %229 = vmatpush1.msra.mxu0 0.0
  %230 = vmatprep.subr.mxu0 0.0
  %231 = vmatpush1.msra.mxu0 0.0
  %232 = vmatprep.subr.mxu0 0.0
  %233 = vmatpush1.msra.mxu0 0.0
  %234 = vmatprep.subr.mxu0 0.0
  %235 = vmatpush1.msra.mxu0 0.0
  %236 = vmatprep.subr.mxu0 0.0
  %237 = vmatpush1.msra.mxu0 0.0
  %238 = vmatprep.mubr.f32.mxu0 0.0
  %239 = vmatmul.mubr.f32.gmra.mrb[0].mxu0 %v163
  %v240 = vpop.f32.mrb[0].mxu0
  %v241 = vadd.f32 0.0, %v240
  %v242 = vpop.f32.mrb[0].mxu0
  %243 = vmatprep.mubr.f32.mxu0 0.0
  %244 = vmatmul.mubr.f32.gmra.mrb[0].mxu0 %v166
  %v245 = vpop.f32.mrb[0].mxu0
  %v246 = vadd.f32 0.0, %v245
  %v247 = vpop.f32.mrb[0].mxu0
  %248 = vmatprep.mubr.f32.mxu0 0.0
  %249 = vmatmul.mubr.f32.gmra.mrb[0].mxu0 %v169
  %v250 = vpop.f32.mrb[0].mxu0
  %v251 = vadd.f32 0.0, %v250
  %v252 = vpop.f32.mrb[0].mxu0
  %253 = vmatprep.mubr.f32.mxu0 0.0
  %254 = vmatmul.mubr.f32.gmra.mrb[0].mxu0 %v172
  %v255 = vpop.f32.mrb[0].mxu0
  %v256 = vadd.f32 0.0, %v255
  %v257 = vpop.f32.mrb[0].mxu0
  %258 = vdwg.mxu0
  %v259 = vadd.f32 %v153, %v241
  %v260 = vadd.f32 %v154, %v246
  %v261 = vadd.f32 %v155, %v251
  %v262 = vadd.f32 %v156, %v256
  %s263 = scalar_lea.vmem %s2, 64
  %v264 = vld [vmem:[%s263] sm:$0xff]
  %v265 = vld [vmem:[%s263 + $0x8] sm:$0xff]
  %v266 = vld [vmem:[%s263 + $0x10] sm:$0xff]
  %v267 = vld [vmem:[%s263 + $0x18] sm:$0xff]
  %v269 = vsel %vm29, %v264, 0
  %v272 = vsel %vm29, %v265, 0
  %v275 = vsel %vm29, %v266, 0
  %v278 = vsel %vm29, %v267, 0
  %280 = vmatprep.subr.mxu0 0.0
  %281 = vmatpush1.msra.mxu0 %v23
  %282 = vmatprep.subr.mxu0 0.0
  %283 = vmatpush1.msra.mxu0 %v24
  %284 = vmatprep.subr.mxu0 0.0
  %285 = vmatpush1.msra.mxu0 0.0
  %286 = vmatprep.subr.mxu0 0.0
  %287 = vmatpush1.msra.mxu0 0.0
  %288 = vmatprep.subr.mxu0 0.0
  %289 = vmatpush1.msra.mxu0 0.0
  %290 = vmatprep.subr.mxu0 0.0
  %291 = vmatpush1.msra.mxu0 0.0
  %292 = vmatprep.subr.mxu0 0.0
  %293 = vmatpush1.msra.mxu0 0.0
  %294 = vmatprep.subr.mxu0 0.0
  %295 = vmatpush1.msra.mxu0 0.0
  %296 = vmatprep.subr.mxu0 0.0
  %297 = vmatpush1.msra.mxu0 0.0
  %298 = vmatprep.subr.mxu0 0.0
  %299 = vmatpush1.msra.mxu0 0.0
  %300 = vmatprep.subr.mxu0 0.0
  %301 = vmatpush1.msra.mxu0 0.0
  %302 = vmatprep.subr.mxu0 0.0
  %303 = vmatpush1.msra.mxu0 0.0
  %304 = vmatprep.subr.mxu0 0.0
  %305 = vmatpush1.msra.mxu0 0.0
  %306 = vmatprep.subr.mxu0 0.0
  %307 = vmatpush1.msra.mxu0 0.0
  %308 = vmatprep.subr.mxu0 0.0
  %309 = vmatpush1.msra.mxu0 0.0
  %310 = vmatprep.subr.mxu0 0.0
  %311 = vmatpush1.msra.mxu0 0.0
  %312 = vmatprep.subr.mxu0 0.0
  %313 = vmatpush1.msra.mxu0 0.0
  %314 = vmatprep.subr.mxu0 0.0
  %315 = vmatpush1.msra.mxu0 0.0
  %316 = vmatprep.subr.mxu0 0.0
  %317 = vmatpush1.msra.mxu0 0.0
  %318 = vmatprep.subr.mxu0 0.0
  %319 = vmatpush1.msra.mxu0 0.0
  %320 = vmatprep.subr.mxu0 0.0
  %321 = vmatpush1.msra.mxu0 0.0
  %322 = vmatprep.subr.mxu0 0.0
  %323 = vmatpush1.msra.mxu0 0.0
  %324 = vmatprep.subr.mxu0 0.0
  %325 = vmatpush1.msra.mxu0 0.0
  %326 = vmatprep.subr.mxu0 0.0
  %327 = vmatpush1.msra.mxu0 0.0
  %328 = vmatprep.subr.mxu0 0.0
  %329 = vmatpush1.msra.mxu0 0.0
  %330 = vmatprep.subr.mxu0 0.0
  %331 = vmatpush1.msra.mxu0 0.0
  %332 = vmatprep.subr.mxu0 0.0
  %333 = vmatpush1.msra.mxu0 0.0
  %334 = vmatprep.subr.mxu0 0.0
  %335 = vmatpush1.msra.mxu0 0.0
  %336 = vmatprep.subr.mxu0 0.0
  %337 = vmatpush1.msra.mxu0 0.0
  %338 = vmatprep.subr.mxu0 0.0
  %339 = vmatpush1.msra.mxu0 0.0
  %340 = vmatprep.subr.mxu0 0.0
  %341 = vmatpush1.msra.mxu0 0.0
  %342 = vmatprep.subr.mxu0 0.0
  %343 = vmatpush1.msra.mxu0 0.0
  %344 = vmatprep.mubr.f32.mxu0 0.0
  %345 = vmatmul.mubr.f32.gmra.mrb[0].mxu0 %v269
  %v346 = vpop.f32.mrb[0].mxu0
  %v347 = vadd.f32 0.0, %v346
  %v348 = vpop.f32.mrb[0].mxu0
  %349 = vmatprep.mubr.f32.mxu0 0.0
  %350 = vmatmul.mubr.f32.gmra.mrb[0].mxu0 %v272
  %v351 = vpop.f32.mrb[0].mxu0
  %v352 = vadd.f32 0.0, %v351
  %v353 = vpop.f32.mrb[0].mxu0
  %354 = vmatprep.mubr.f32.mxu0 0.0
  %355 = vmatmul.mubr.f32.gmra.mrb[0].mxu0 %v275
  %v356 = vpop.f32.mrb[0].mxu0
  %v357 = vadd.f32 0.0, %v356
  %v358 = vpop.f32.mrb[0].mxu0
  %359 = vmatprep.mubr.f32.mxu0 0.0
  %360 = vmatmul.mubr.f32.gmra.mrb[0].mxu0 %v278
  %v361 = vpop.f32.mrb[0].mxu0
  %v362 = vadd.f32 0.0, %v361
  %v363 = vpop.f32.mrb[0].mxu0
  %364 = vdwg.mxu0
  %369 = vrot.lane.b32.xlu0 %v347, 127
  %v370 = vpop.permute.xlu0 %369
  %371 = vrot.lane.b32.xlu0 %v352, 127
  %v372 = vpop.permute.xlu0 %371
  %373 = vrot.lane.b32.xlu0 %v357, 127
  %v374 = vpop.permute.xlu0 %373
  %375 = vrot.lane.b32.xlu0 %v362, 127
  %v376 = vpop.permute.xlu0 %375
  %vm381 = vcmask 515072
  %v382 = vsel %vm381, %v370, 0.0
  %v383 = vsel %vm381, %v372, 0.0
  %v384 = vsel %vm381, %v374, 0.0
  %v385 = vsel %vm381, %v376, 0.0
  %v386 = vld [vmem:[%s1 + $0x2] sm:$0x1]
  %v387 = vlaneseq
  %v388 = vshrl.u32 %v387, 7
  %v389 = vsub.s32 0, %v388
  %v390 = vrot.slane %v386, %v389
  %v391 = vmul.f32 %v382, %v390
  %v392 = vmul.f32 %v383, %v390
  %v393 = vmul.f32 %v384, %v390
  %v394 = vmul.f32 %v385, %v390
  %v395 = vadd.f32 %v259, %v391
  %v396 = vadd.f32 %v260, %v392
  %v397 = vadd.f32 %v261, %v393
  %v398 = vadd.f32 %v262, %v394
  %v399 = vld [vmem:[%s3] sm:$0xff]
  %v400 = vld [vmem:[%s3 + $0x8] sm:$0xff]
  %v401 = vld [vmem:[%s3 + $0x10] sm:$0xff]
  %v402 = vld [vmem:[%s3 + $0x18] sm:$0xff]
  %404 = vset.pattern.permute.xlu0 0
  %405 = vperm.xlu0 %404, %v399
  %v406 = vpop.permute.xlu0 %405
  %409 = vset.pattern.permute.xlu0 0
  %410 = vperm.xlu0 %409, %v400
  %v411 = vpop.permute.xlu0 %410
  %414 = vset.pattern.permute.xlu0 0
  %415 = vperm.xlu0 %414, %v401
  %v416 = vpop.permute.xlu0 %415
  %419 = vset.pattern.permute.xlu0 0
  %420 = vperm.xlu0 %419, %v402
  %v421 = vpop.permute.xlu0 %420
  %v423 = vadd.f32 %v395, %v406
  %v424 = vadd.f32 %v396, %v411
  %v425 = vadd.f32 %v397, %v416
  %v426 = vadd.f32 %v398, %v421
  %v427 = vmax.f32 %v423, 0.0
  %v428 = vmax.f32 %v424, 0.0
  %v429 = vmax.f32 %v425, 0.0
  %v430 = vmax.f32 %v426, 0.0
  %v431 = vld [vmem:[%s4] sm:$0xff]
  %v432 = vld [vmem:[%s4 + $0x8] sm:$0xff]
  %v433 = vld [vmem:[%s4 + $0x10] sm:$0xff]
  %v434 = vld [vmem:[%s4 + $0x18] sm:$0xff]
  %vm435 = vcmask 261120
  %v437 = vsel %vm435, %v431, 0
  %v440 = vsel %vm435, %v432, 0
  %v443 = vsel %vm435, %v433, 0
  %v446 = vsel %vm435, %v434, 0
  %448 = vmatprep.subr.mxu0 0.0
  %449 = vmatpush1.msra.mxu0 %v427
  %450 = vmatprep.subr.mxu0 0.0
  %451 = vmatpush1.msra.mxu0 %v428
  %452 = vmatprep.subr.mxu0 0.0
  %453 = vmatpush1.msra.mxu0 %v429
  %454 = vmatprep.subr.mxu0 0.0
  %455 = vmatpush1.msra.mxu0 %v430
  %456 = vmatprep.subr.mxu0 0.0
  %457 = vmatpush1.msra.mxu0 0.0
  %458 = vmatprep.subr.mxu0 0.0
  %459 = vmatpush1.msra.mxu0 0.0
  %460 = vmatprep.subr.mxu0 0.0
  %461 = vmatpush1.msra.mxu0 0.0
  %462 = vmatprep.subr.mxu0 0.0
  %463 = vmatpush1.msra.mxu0 0.0
  %464 = vmatprep.subr.mxu0 0.0
  %465 = vmatpush1.msra.mxu0 0.0
  %466 = vmatprep.subr.mxu0 0.0
  %467 = vmatpush1.msra.mxu0 0.0
  %468 = vmatprep.subr.mxu0 0.0
  %469 = vmatpush1.msra.mxu0 0.0
  %470 = vmatprep.subr.mxu0 0.0
  %471 = vmatpush1.msra.mxu0 0.0
  %472 = vmatprep.subr.mxu0 0.0
  %473 = vmatpush1.msra.mxu0 0.0
  %474 = vmatprep.subr.mxu0 0.0
  %475 = vmatpush1.msra.mxu0 0.0
  %476 = vmatprep.subr.mxu0 0.0
  %477 = vmatpush1.msra.mxu0 0.0
  %478 = vmatprep.subr.mxu0 0.0
  %479 = vmatpush1.msra.mxu0 0.0
  %480 = vmatprep.subr.mxu0 0.0
  %481 = vmatpush1.msra.mxu0 0.0
  %482 = vmatprep.subr.mxu0 0.0
  %483 = vmatpush1.msra.mxu0 0.0
  %484 = vmatprep.subr.mxu0 0.0
  %485 = vmatpush1.msra.mxu0 0.0
  %486 = vmatprep.subr.mxu0 0.0
  %487 = vmatpush1.msra.mxu0 0.0
  %488 = vmatprep.subr.mxu0 0.0
  %489 = vmatpush1.msra.mxu0 0.0
  %490 = vmatprep.subr.mxu0 0.0
  %491 = vmatpush1.msra.mxu0 0.0
  %492 = vmatprep.subr.mxu0 0.0
  %493 = vmatpush1.msra.mxu0 0.0
  %494 = vmatprep.subr.mxu0 0.0
  %495 = vmatpush1.msra.mxu0 0.0
  %496 = vmatprep.subr.mxu0 0.0
  %497 = vmatpush1.msra.mxu0 0.0
  %498 = vmatprep.subr.mxu0 0.0
  %499 = vmatpush1.msra.mxu0 0.0
  %500 = vmatprep.subr.mxu0 0.0
  %501 = vmatpush1.msra.mxu0 0.0
  %502 = vmatprep.subr.mxu0 0.0
  %503 = vmatpush1.msra.mxu0 0.0
  %504 = vmatprep.subr.mxu0 0.0
  %505 = vmatpush1.msra.mxu0 0.0
  %506 = vmatprep.subr.mxu0 0.0
  %507 = vmatpush1.msra.mxu0 0.0
  %508 = vmatprep.subr.mxu0 0.0
  %509 = vmatpush1.msra.mxu0 0.0
  %510 = vmatprep.subr.mxu0 0.0
  %511 = vmatpush1.msra.mxu0 0.0
  %512 = vmatprep.mubr.f32.mxu0 0.0
  %513 = vmatmul.mubr.f32.gmra.mrb[0].mxu0 %v437
  %v514 = vpop.f32.mrb[0].mxu0
  %v515 = vadd.f32 0.0, %v514
  %v516 = vpop.f32.mrb[0].mxu0
  %517 = vmatprep.mubr.f32.mxu0 0.0
  %518 = vmatmul.mubr.f32.gmra.mrb[0].mxu0 %v440
  %v519 = vpop.f32.mrb[0].mxu0
  %v520 = vadd.f32 0.0, %v519
  %v521 = vpop.f32.mrb[0].mxu0
  %522 = vmatprep.mubr.f32.mxu0 0.0
  %523 = vmatmul.mubr.f32.gmra.mrb[0].mxu0 %v443
  %v524 = vpop.f32.mrb[0].mxu0
  %v525 = vadd.f32 0.0, %v524
  %v526 = vpop.f32.mrb[0].mxu0
  %527 = vmatprep.mubr.f32.mxu0 0.0
  %528 = vmatmul.mubr.f32.gmra.mrb[0].mxu0 %v446
  %v529 = vpop.f32.mrb[0].mxu0
  %v530 = vadd.f32 0.0, %v529
  %v531 = vpop.f32.mrb[0].mxu0
  %532 = vdwg.mxu0
  %537 = vrot.lane.b32.xlu0 %v515, 1
  %v538 = vpop.permute.xlu0 %537
  %539 = vrot.lane.b32.xlu0 %v520, 1
  %v540 = vpop.permute.xlu0 %539
  %541 = vrot.lane.b32.xlu0 %v525, 1
  %v542 = vpop.permute.xlu0 %541
  %543 = vrot.lane.b32.xlu0 %v530, 1
  %v544 = vpop.permute.xlu0 %543
  %v549 = vsel %vm143, 0.0, %v538
  %v550 = vsel %vm143, 0.0, %v540
  %v551 = vsel %vm143, 0.0, %v542
  %v552 = vsel %vm143, 0.0, %v544
  %v553 = vmul.f32 %v549, %v152
  %v554 = vmul.f32 %v550, %v152
  %v555 = vmul.f32 %v551, %v152
  %v556 = vmul.f32 %v552, %v152
  %s557 = scalar_lea.vmem %s4, 32
  %v558 = vld [vmem:[%s557] sm:$0xff]
  %v559 = vld [vmem:[%s557 + $0x8] sm:$0xff]
  %v560 = vld [vmem:[%s557 + $0x10] sm:$0xff]
  %v561 = vld [vmem:[%s557 + $0x18] sm:$0xff]
  %v563 = vsel %vm435, %v558, 0
  %v566 = vsel %vm435, %v559, 0
  %v569 = vsel %vm435, %v560, 0
  %v572 = vsel %vm435, %v561, 0
  %574 = vmatprep.subr.mxu0 0.0
  %575 = vmatpush1.msra.mxu0 %v427
  %576 = vmatprep.subr.mxu0 0.0
  %577 = vmatpush1.msra.mxu0 %v428
  %578 = vmatprep.subr.mxu0 0.0
  %579 = vmatpush1.msra.mxu0 %v429
  %580 = vmatprep.subr.mxu0 0.0
  %581 = vmatpush1.msra.mxu0 %v430
  %582 = vmatprep.subr.mxu0 0.0
  %583 = vmatpush1.msra.mxu0 0.0
  %584 = vmatprep.subr.mxu0 0.0
  %585 = vmatpush1.msra.mxu0 0.0
  %586 = vmatprep.subr.mxu0 0.0
  %587 = vmatpush1.msra.mxu0 0.0
  %588 = vmatprep.subr.mxu0 0.0
  %589 = vmatpush1.msra.mxu0 0.0
  %590 = vmatprep.subr.mxu0 0.0
  %591 = vmatpush1.msra.mxu0 0.0
  %592 = vmatprep.subr.mxu0 0.0
  %593 = vmatpush1.msra.mxu0 0.0
  %594 = vmatprep.subr.mxu0 0.0
  %595 = vmatpush1.msra.mxu0 0.0
  %596 = vmatprep.subr.mxu0 0.0
  %597 = vmatpush1.msra.mxu0 0.0
  %598 = vmatprep.subr.mxu0 0.0
  %599 = vmatpush1.msra.mxu0 0.0
  %600 = vmatprep.subr.mxu0 0.0
  %601 = vmatpush1.msra.mxu0 0.0
  %602 = vmatprep.subr.mxu0 0.0
  %603 = vmatpush1.msra.mxu0 0.0
  %604 = vmatprep.subr.mxu0 0.0
  %605 = vmatpush1.msra.mxu0 0.0
  %606 = vmatprep.subr.mxu0 0.0
  %607 = vmatpush1.msra.mxu0 0.0
  %608 = vmatprep.subr.mxu0 0.0
  %609 = vmatpush1.msra.mxu0 0.0
  %610 = vmatprep.subr.mxu0 0.0
  %611 = vmatpush1.msra.mxu0 0.0
  %612 = vmatprep.subr.mxu0 0.0
  %613 = vmatpush1.msra.mxu0 0.0
  %614 = vmatprep.subr.mxu0 0.0
  %615 = vmatpush1.msra.mxu0 0.0
  %616 = vmatprep.subr.mxu0 0.0
  %617 = vmatpush1.msra.mxu0 0.0
  %618 = vmatprep.subr.mxu0 0.0
  %619 = vmatpush1.msra.mxu0 0.0
  %620 = vmatprep.subr.mxu0 0.0
  %621 = vmatpush1.msra.mxu0 0.0
  %622 = vmatprep.subr.mxu0 0.0
  %623 = vmatpush1.msra.mxu0 0.0
  %624 = vmatprep.subr.mxu0 0.0
  %625 = vmatpush1.msra.mxu0 0.0
  %626 = vmatprep.subr.mxu0 0.0
  %627 = vmatpush1.msra.mxu0 0.0
  %628 = vmatprep.subr.mxu0 0.0
  %629 = vmatpush1.msra.mxu0 0.0
  %630 = vmatprep.subr.mxu0 0.0
  %631 = vmatpush1.msra.mxu0 0.0
  %632 = vmatprep.subr.mxu0 0.0
  %633 = vmatpush1.msra.mxu0 0.0
  %634 = vmatprep.subr.mxu0 0.0
  %635 = vmatpush1.msra.mxu0 0.0
  %636 = vmatprep.subr.mxu0 0.0
  %637 = vmatpush1.msra.mxu0 0.0
  %638 = vmatprep.mubr.f32.mxu0 0.0
  %639 = vmatmul.mubr.f32.gmra.mrb[0].mxu0 %v563
  %v640 = vpop.f32.mrb[0].mxu0
  %v641 = vadd.f32 0.0, %v640
  %v642 = vpop.f32.mrb[0].mxu0
  %643 = vmatprep.mubr.f32.mxu0 0.0
  %644 = vmatmul.mubr.f32.gmra.mrb[0].mxu0 %v566
  %v645 = vpop.f32.mrb[0].mxu0
  %v646 = vadd.f32 0.0, %v645
  %v647 = vpop.f32.mrb[0].mxu0
  %648 = vmatprep.mubr.f32.mxu0 0.0
  %649 = vmatmul.mubr.f32.gmra.mrb[0].mxu0 %v569
  %v650 = vpop.f32.mrb[0].mxu0
  %v651 = vadd.f32 0.0, %v650
  %v652 = vpop.f32.mrb[0].mxu0
  %653 = vmatprep.mubr.f32.mxu0 0.0
  %654 = vmatmul.mubr.f32.gmra.mrb[0].mxu0 %v572
  %v655 = vpop.f32.mrb[0].mxu0
  %v656 = vadd.f32 0.0, %v655
  %v657 = vpop.f32.mrb[0].mxu0
  %658 = vdwg.mxu0
  %v659 = vadd.f32 %v553, %v641
  %v660 = vadd.f32 %v554, %v646
  %v661 = vadd.f32 %v555, %v651
  %v662 = vadd.f32 %v556, %v656
  %s663 = scalar_lea.vmem %s4, 64
  %v664 = vld [vmem:[%s663] sm:$0xff]
  %v665 = vld [vmem:[%s663 + $0x8] sm:$0xff]
  %v666 = vld [vmem:[%s663 + $0x10] sm:$0xff]
  %v667 = vld [vmem:[%s663 + $0x18] sm:$0xff]
  %v669 = vsel %vm435, %v664, 0
  %v672 = vsel %vm435, %v665, 0
  %v675 = vsel %vm435, %v666, 0
  %v678 = vsel %vm435, %v667, 0
  %680 = vmatprep.subr.mxu0 0.0
  %681 = vmatpush1.msra.mxu0 %v427
  %682 = vmatprep.subr.mxu0 0.0
  %683 = vmatpush1.msra.mxu0 %v428
  %684 = vmatprep.subr.mxu0 0.0
  %685 = vmatpush1.msra.mxu0 %v429
  %686 = vmatprep.subr.mxu0 0.0
  %687 = vmatpush1.msra.mxu0 %v430
  %688 = vmatprep.subr.mxu0 0.0
  %689 = vmatpush1.msra.mxu0 0.0
  %690 = vmatprep.subr.mxu0 0.0
  %691 = vmatpush1.msra.mxu0 0.0
  %692 = vmatprep.subr.mxu0 0.0
  %693 = vmatpush1.msra.mxu0 0.0
  %694 = vmatprep.subr.mxu0 0.0
  %695 = vmatpush1.msra.mxu0 0.0
  %696 = vmatprep.subr.mxu0 0.0
  %697 = vmatpush1.msra.mxu0 0.0
  %698 = vmatprep.subr.mxu0 0.0
  %699 = vmatpush1.msra.mxu0 0.0
  %700 = vmatprep.subr.mxu0 0.0
  %701 = vmatpush1.msra.mxu0 0.0
  %702 = vmatprep.subr.mxu0 0.0
  %703 = vmatpush1.msra.mxu0 0.0
  %704 = vmatprep.subr.mxu0 0.0
  %705 = vmatpush1.msra.mxu0 0.0
  %706 = vmatprep.subr.mxu0 0.0
  %707 = vmatpush1.msra.mxu0 0.0
  %708 = vmatprep.subr.mxu0 0.0
  %709 = vmatpush1.msra.mxu0 0.0
  %710 = vmatprep.subr.mxu0 0.0
  %711 = vmatpush1.msra.mxu0 0.0
  %712 = vmatprep.subr.mxu0 0.0
  %713 = vmatpush1.msra.mxu0 0.0
  %714 = vmatprep.subr.mxu0 0.0
  %715 = vmatpush1.msra.mxu0 0.0
  %716 = vmatprep.subr.mxu0 0.0
  %717 = vmatpush1.msra.mxu0 0.0
  %718 = vmatprep.subr.mxu0 0.0
  %719 = vmatpush1.msra.mxu0 0.0
  %720 = vmatprep.subr.mxu0 0.0
  %721 = vmatpush1.msra.mxu0 0.0
  %722 = vmatprep.subr.mxu0 0.0
  %723 = vmatpush1.msra.mxu0 0.0
  %724 = vmatprep.subr.mxu0 0.0
  %725 = vmatpush1.msra.mxu0 0.0
  %726 = vmatprep.subr.mxu0 0.0
  %727 = vmatpush1.msra.mxu0 0.0
  %728 = vmatprep.subr.mxu0 0.0
  %729 = vmatpush1.msra.mxu0 0.0
  %730 = vmatprep.subr.mxu0 0.0
  %731 = vmatpush1.msra.mxu0 0.0
  %732 = vmatprep.subr.mxu0 0.0
  %733 = vmatpush1.msra.mxu0 0.0
  %734 = vmatprep.subr.mxu0 0.0
  %735 = vmatpush1.msra.mxu0 0.0
  %736 = vmatprep.subr.mxu0 0.0
  %737 = vmatpush1.msra.mxu0 0.0
  %738 = vmatprep.subr.mxu0 0.0
  %739 = vmatpush1.msra.mxu0 0.0
  %740 = vmatprep.subr.mxu0 0.0
  %741 = vmatpush1.msra.mxu0 0.0
  %742 = vmatprep.subr.mxu0 0.0
  %743 = vmatpush1.msra.mxu0 0.0
  %744 = vmatprep.mubr.f32.mxu0 0.0
  %745 = vmatmul.mubr.f32.gmra.mrb[0].mxu0 %v669
  %v746 = vpop.f32.mrb[0].mxu0
  %v747 = vadd.f32 0.0, %v746
  %v748 = vpop.f32.mrb[0].mxu0
  %749 = vmatprep.mubr.f32.mxu0 0.0
  %750 = vmatmul.mubr.f32.gmra.mrb[0].mxu0 %v672
  %v751 = vpop.f32.mrb[0].mxu0
  %v752 = vadd.f32 0.0, %v751
  %v753 = vpop.f32.mrb[0].mxu0
  %754 = vmatprep.mubr.f32.mxu0 0.0
  %755 = vmatmul.mubr.f32.gmra.mrb[0].mxu0 %v675
  %v756 = vpop.f32.mrb[0].mxu0
  %v757 = vadd.f32 0.0, %v756
  %v758 = vpop.f32.mrb[0].mxu0
  %759 = vmatprep.mubr.f32.mxu0 0.0
  %760 = vmatmul.mubr.f32.gmra.mrb[0].mxu0 %v678
  %v761 = vpop.f32.mrb[0].mxu0
  %v762 = vadd.f32 0.0, %v761
  %v763 = vpop.f32.mrb[0].mxu0
  %764 = vdwg.mxu0
  %769 = vrot.lane.b32.xlu0 %v747, 127
  %v770 = vpop.permute.xlu0 %769
  %771 = vrot.lane.b32.xlu0 %v752, 127
  %v772 = vpop.permute.xlu0 %771
  %773 = vrot.lane.b32.xlu0 %v757, 127
  %v774 = vpop.permute.xlu0 %773
  %775 = vrot.lane.b32.xlu0 %v762, 127
  %v776 = vpop.permute.xlu0 %775
  %v781 = vsel %vm381, %v770, 0.0
  %v782 = vsel %vm381, %v772, 0.0
  %v783 = vsel %vm381, %v774, 0.0
  %v784 = vsel %vm381, %v776, 0.0
  %v785 = vmul.f32 %v781, %v390
  %v786 = vmul.f32 %v782, %v390
  %v787 = vmul.f32 %v783, %v390
  %v788 = vmul.f32 %v784, %v390
  %v789 = vadd.f32 %v659, %v785
  %v790 = vadd.f32 %v660, %v786
  %v791 = vadd.f32 %v661, %v787
  %v792 = vadd.f32 %v662, %v788
  %v793 = vld [vmem:[%s5] sm:$0xff]
  %v794 = vld [vmem:[%s5 + $0x8] sm:$0xff]
  %v795 = vld [vmem:[%s5 + $0x10] sm:$0xff]
  %v796 = vld [vmem:[%s5 + $0x18] sm:$0xff]
  %798 = vset.pattern.permute.xlu0 0
  %799 = vperm.xlu0 %798, %v793
  %v800 = vpop.permute.xlu0 %799
  %803 = vset.pattern.permute.xlu0 0
  %804 = vperm.xlu0 %803, %v794
  %v805 = vpop.permute.xlu0 %804
  %808 = vset.pattern.permute.xlu0 0
  %809 = vperm.xlu0 %808, %v795
  %v810 = vpop.permute.xlu0 %809
  %813 = vset.pattern.permute.xlu0 0
  %814 = vperm.xlu0 %813, %v796
  %v815 = vpop.permute.xlu0 %814
  %v817 = vadd.f32 %v789, %v800
  %v818 = vadd.f32 %v790, %v805
  %v819 = vadd.f32 %v791, %v810
  %v820 = vadd.f32 %v792, %v815
  %v821 = vmax.f32 %v817, 0.0
  %v822 = vmax.f32 %v818, 0.0
  %v823 = vmax.f32 %v819, 0.0
  %v824 = vmax.f32 %v820, 0.0
  %vm825 = vcmask 523264
  %826 = vst.msk [vmem:[%s6] sm:$0xff] %vm825, %v821
  %827 = vst.msk [vmem:[%s6 + $0x8] sm:$0xff] %vm825, %v822
  %828 = vst.msk [vmem:[%s6 + $0x10] sm:$0xff] %vm825, %v823
  %829 = vst.msk [vmem:[%s6 + $0x18] sm:$0xff] %vm825, %v824
  // Predicated region
  $region26: #{down_seq_forward.6} parent=0 // pred_check
    _
  $region27: #{down_seq_forward.6} parent=0 // pred_check_branch
    %831 = sbr.rel (0) target = $region29
  $region28: #{down_seq_forward.6} parent=0 // pred_region
    _
  $region29: #{down_seq_forward.6} parent=0 // pred_fallthru
    _
  // Predicated region
  $region30: #{down_seq_forward.6} parent=0 // pred_check
    _
  $region31: #{down_seq_forward.6} parent=0 // pred_check_branch
    %833 = sbr.rel (0) target = $region33
  $region32: #{down_seq_forward.6} parent=0 // pred_region
    _
  $region33: #{down_seq_forward.6} parent=0 // pred_fallthru
    _

// kernel: down_seq_forward.7
$region0: #{down_seq_forward.7}
  #allocation0 [shape = 'u32[]', space=smem, size = 0x4, offset = 0x4, fixed_abs, tag = 'smem constant byte address 0x4 - core index']
  #allocation1 [shape = 'u32[144,128]{1,0:T(1,128)}', space=vmem, size = 0x12000, scoped, tag = 'internal scratch']
  %s0 = inlined_call_operand.vmem [shape: f32[32,32], index: 0, kind: input, shape index: {}]
  %s1 = inlined_call_operand.vmem [shape: f32[3,32], index: 1, kind: input, shape index: {}]
  %s2 = inlined_call_operand.vmem [shape: f32[3,64,32], index: 2, kind: input, shape index: {}]
  %s3 = inlined_call_operand.vmem [shape: f32[64,1], index: 3, kind: input, shape index: {}]
  %s4 = inlined_call_operand.vmem [shape: f32[3,64,64], index: 4, kind: input, shape index: {}]
  %s5 = inlined_call_operand.vmem [shape: f32[64,1], index: 5, kind: input, shape index: {}]
  %s6 = inlined_call_operand.vmem [shape: f32[64,32], index: 6, kind: output, shape index: {}]
  %s7 = sld [smem:[#allocation0]]
  $region34: #{down_seq_forward.7} parent=0
    _
  %s9 = ssub.s32 1, %s7
  %s10 = scalar_select 0, %s9, %s7
  // Predicated region
  $region2: #{down_seq_forward.7} parent=0 // pred_check
    _
  $region3: #{down_seq_forward.7} parent=0 // pred_check_branch
    %12 = sbr.rel (0) target = $region5
  $region4: #{down_seq_forward.7} parent=0 // pred_region
    _
  $region5: #{down_seq_forward.7} parent=0 // pred_fallthru
    _
  // Predicated region
  $region6: #{down_seq_forward.7} parent=0 // pred_check
    _
  $region7: #{down_seq_forward.7} parent=0 // pred_check_branch
    %14 = sbr.rel (0) target = $region9
  $region8: #{down_seq_forward.7} parent=0 // pred_region
    _
  $region9: #{down_seq_forward.7} parent=0 // pred_fallthru
    _
  // Predicated region
  $region10: #{down_seq_forward.7} parent=0 // pred_check
    _
  $region11: #{down_seq_forward.7} parent=0 // pred_check_branch
    %16 = sbr.rel (0) target = $region13
  $region12: #{down_seq_forward.7} parent=0 // pred_region
    _
  $region13: #{down_seq_forward.7} parent=0 // pred_fallthru
    _
  // Predicated region
  $region14: #{down_seq_forward.7} parent=0 // pred_check
    _
  $region15: #{down_seq_forward.7} parent=0 // pred_check_branch
    %18 = sbr.rel (0) target = $region17
  $region16: #{down_seq_forward.7} parent=0 // pred_region
    _
  $region17: #{down_seq_forward.7} parent=0 // pred_fallthru
    _
  // Predicated region
  $region18: #{down_seq_forward.7} parent=0 // pred_check
    _
  $region19: #{down_seq_forward.7} parent=0 // pred_check_branch
    %20 = sbr.rel (0) target = $region21
  $region20: #{down_seq_forward.7} parent=0 // pred_region
    _
  $region21: #{down_seq_forward.7} parent=0 // pred_fallthru
    _
  // Predicated region
  $region22: #{down_seq_forward.7} parent=0 // pred_check
    _
  $region23: #{down_seq_forward.7} parent=0 // pred_check_branch
    %22 = sbr.rel (0) target = $region25
  $region24: #{down_seq_forward.7} parent=0 // pred_region
    _
  $region25: #{down_seq_forward.7} parent=0 // pred_fallthru
    _
  %v23 = vld [vmem:[%s0] sm:$0xff]
  %v24 = vld [vmem:[%s0 + $0x8] sm:$0xff]
  %v25 = vld [vmem:[%s0 + $0x10] sm:$0xff]
  %v26 = vld [vmem:[%s0 + $0x18] sm:$0xff]
  %v27 = vld [vmem:[%s2] sm:$0xff]
  %v28 = vld [vmem:[%s2 + $0x8] sm:$0xff]
  %v29 = vld [vmem:[%s2 + $0x10] sm:$0xff]
  %v30 = vld [vmem:[%s2 + $0x18] sm:$0xff]
  %v31 = vld [vmem:[%s2 + $0x20] sm:$0xff]
  %v32 = vld [vmem:[%s2 + $0x28] sm:$0xff]
  %v33 = vld [vmem:[%s2 + $0x30] sm:$0xff]
  %v34 = vld [vmem:[%s2 + $0x38] sm:$0xff]
  %vm35 = vcmask 261120
  %v37 = vsel %vm35, %v27, 0
  %v40 = vsel %vm35, %v28, 0
  %v43 = vsel %vm35, %v29, 0
  %v46 = vsel %vm35, %v30, 0
  %v49 = vsel %vm35, %v31, 0
  %v52 = vsel %vm35, %v32, 0
  %v55 = vsel %vm35, %v33, 0
  %v58 = vsel %vm35, %v34, 0
  %60 = vmatprep.subr.mxu0 0.0
  %61 = vmatpush1.msra.mxu0 %v23
  %62 = vmatprep.subr.mxu0 0.0
  %63 = vmatpush1.msra.mxu0 %v24
  %64 = vmatprep.subr.mxu0 0.0
  %65 = vmatpush1.msra.mxu0 %v25
  %66 = vmatprep.subr.mxu0 0.0
  %67 = vmatpush1.msra.mxu0 %v26
  %68 = vmatprep.subr.mxu0 0.0
  %69 = vmatpush1.msra.mxu0 0.0
  %70 = vmatprep.subr.mxu0 0.0
  %71 = vmatpush1.msra.mxu0 0.0
  %72 = vmatprep.subr.mxu0 0.0
  %73 = vmatpush1.msra.mxu0 0.0
  %74 = vmatprep.subr.mxu0 0.0
  %75 = vmatpush1.msra.mxu0 0.0
  %76 = vmatprep.subr.mxu0 0.0
  %77 = vmatpush1.msra.mxu0 0.0
  %78 = vmatprep.subr.mxu0 0.0
  %79 = vmatpush1.msra.mxu0 0.0
  %80 = vmatprep.subr.mxu0 0.0
  %81 = vmatpush1.msra.mxu0 0.0
  %82 = vmatprep.subr.mxu0 0.0
  %83 = vmatpush1.msra.mxu0 0.0
  %84 = vmatprep.subr.mxu0 0.0
  %85 = vmatpush1.msra.mxu0 0.0
  %86 = vmatprep.subr.mxu0 0.0
  %87 = vmatpush1.msra.mxu0 0.0
  %88 = vmatprep.subr.mxu0 0.0
  %89 = vmatpush1.msra.mxu0 0.0
  %90 = vmatprep.subr.mxu0 0.0
  %91 = vmatpush1.msra.mxu0 0.0
  %92 = vmatprep.subr.mxu0 0.0
  %93 = vmatpush1.msra.mxu0 0.0
  %94 = vmatprep.subr.mxu0 0.0
  %95 = vmatpush1.msra.mxu0 0.0
  %96 = vmatprep.subr.mxu0 0.0
  %97 = vmatpush1.msra.mxu0 0.0
  %98 = vmatprep.subr.mxu0 0.0
  %99 = vmatpush1.msra.mxu0 0.0
  %100 = vmatprep.subr.mxu0 0.0
  %101 = vmatpush1.msra.mxu0 0.0
  %102 = vmatprep.subr.mxu0 0.0
  %103 = vmatpush1.msra.mxu0 0.0
  %104 = vmatprep.subr.mxu0 0.0
  %105 = vmatpush1.msra.mxu0 0.0
  %106 = vmatprep.subr.mxu0 0.0
  %107 = vmatpush1.msra.mxu0 0.0
  %108 = vmatprep.subr.mxu0 0.0
  %109 = vmatpush1.msra.mxu0 0.0
  %110 = vmatprep.subr.mxu0 0.0
  %111 = vmatpush1.msra.mxu0 0.0
  %112 = vmatprep.subr.mxu0 0.0
  %113 = vmatpush1.msra.mxu0 0.0
  %114 = vmatprep.subr.mxu0 0.0
  %115 = vmatpush1.msra.mxu0 0.0
  %116 = vmatprep.subr.mxu0 0.0
  %117 = vmatpush1.msra.mxu0 0.0
  %118 = vmatprep.subr.mxu0 0.0
  %119 = vmatpush1.msra.mxu0 0.0
  %120 = vmatprep.subr.mxu0 0.0
  %121 = vmatpush1.msra.mxu0 0.0
  %122 = vmatprep.subr.mxu0 0.0
  %123 = vmatpush1.msra.mxu0 0.0
  %124 = vmatprep.mubr.f32.mxu0 0.0
  %125 = vmatmul.mubr.f32.gmra.mrb[0].mxu0 %v37
  %v126 = vpop.f32.mrb[0].mxu0
  %v127 = vadd.f32 0.0, %v126
  %v128 = vpop.f32.mrb[0].mxu0
  %129 = vmatprep.mubr.f32.mxu0 0.0
  %130 = vmatmul.mubr.f32.gmra.mrb[0].mxu0 %v40
  %v131 = vpop.f32.mrb[0].mxu0
  %v132 = vadd.f32 0.0, %v131
  %v133 = vpop.f32.mrb[0].mxu0
  %134 = vmatprep.mubr.f32.mxu0 0.0
  %135 = vmatmul.mubr.f32.gmra.mrb[0].mxu0 %v43
  %v136 = vpop.f32.mrb[0].mxu0
  %v137 = vadd.f32 0.0, %v136
  %v138 = vpop.f32.mrb[0].mxu0
  %139 = vmatprep.mubr.f32.mxu0 0.0
  %140 = vmatmul.mubr.f32.gmra.mrb[0].mxu0 %v46
  %v141 = vpop.f32.mrb[0].mxu0
  %v142 = vadd.f32 0.0, %v141
  %v143 = vpop.f32.mrb[0].mxu0
  %144 = vmatprep.mubr.f32.mxu0 0.0
  %145 = vmatmul.mubr.f32.gmra.mrb[0].mxu0 %v49
  %v146 = vpop.f32.mrb[0].mxu0
  %v147 = vadd.f32 0.0, %v146
  %v148 = vpop.f32.mrb[0].mxu0
  %149 = vmatprep.mubr.f32.mxu0 0.0
  %150 = vmatmul.mubr.f32.gmra.mrb[0].mxu0 %v52
  %v151 = vpop.f32.mrb[0].mxu0
  %v152 = vadd.f32 0.0, %v151
  %v153 = vpop.f32.mrb[0].mxu0
  %154 = vmatprep.mubr.f32.mxu0 0.0
  %155 = vmatmul.mubr.f32.gmra.mrb[0].mxu0 %v55
  %v156 = vpop.f32.mrb[0].mxu0
  %v157 = vadd.f32 0.0, %v156
  %v158 = vpop.f32.mrb[0].mxu0
  %159 = vmatprep.mubr.f32.mxu0 0.0
  %160 = vmatmul.mubr.f32.gmra.mrb[0].mxu0 %v58
  %v161 = vpop.f32.mrb[0].mxu0
  %v162 = vadd.f32 0.0, %v161
  %v163 = vpop.f32.mrb[0].mxu0
  %164 = vdwg.mxu0
  %173 = vrot.lane.b32.xlu0 %v127, 1
  %v174 = vpop.permute.xlu0 %173
  %175 = vrot.lane.b32.xlu0 %v132, 1
  %v176 = vpop.permute.xlu0 %175
  %177 = vrot.lane.b32.xlu0 %v137, 1
  %v178 = vpop.permute.xlu0 %177
  %179 = vrot.lane.b32.xlu0 %v142, 1
  %v180 = vpop.permute.xlu0 %179
  %181 = vrot.lane.b32.xlu0 %v147, 1
  %v182 = vpop.permute.xlu0 %181
  %183 = vrot.lane.b32.xlu0 %v152, 1
  %v184 = vpop.permute.xlu0 %183
  %185 = vrot.lane.b32.xlu0 %v157, 1
  %v186 = vpop.permute.xlu0 %185
  %187 = vrot.lane.b32.xlu0 %v162, 1
  %v188 = vpop.permute.xlu0 %187
  %vm197 = vcmask 7168
  %v198 = vsel %vm197, 0.0, %v174
  %v199 = vsel %vm197, 0.0, %v176
  %v200 = vsel %vm197, 0.0, %v178
  %v201 = vsel %vm197, 0.0, %v180
  %v202 = vsel %vm197, 0.0, %v182
  %v203 = vsel %vm197, 0.0, %v184
  %v204 = vsel %vm197, 0.0, %v186
  %v205 = vsel %vm197, 0.0, %v188
  %v206 = vld [vmem:[%s1] sm:$0x1]
  %v207 = vlaneseq
  %v208 = vshrl.u32 %v207, 7
  %v209 = vsub.s32 0, %v208
  %v210 = vrot.slane %v206, %v209
  %v211 = vmul.f32 %v198, %v210
  %v212 = vmul.f32 %v199, %v210
  %v213 = vmul.f32 %v200, %v210
  %v214 = vmul.f32 %v201, %v210
  %v215 = vmul.f32 %v202, %v210
  %v216 = vmul.f32 %v203, %v210
  %v217 = vmul.f32 %v204, %v210
  %v218 = vmul.f32 %v205, %v210
  %s219 = scalar_lea.vmem %s2, 64
  %v220 = vld [vmem:[%s219] sm:$0xff]
  %v221 = vld [vmem:[%s219 + $0x8] sm:$0xff]
  %v222 = vld [vmem:[%s219 + $0x10] sm:$0xff]
  %v223 = vld [vmem:[%s219 + $0x18] sm:$0xff]
  %v224 = vld [vmem:[%s219 + $0x20] sm:$0xff]
  %v225 = vld [vmem:[%s219 + $0x28] sm:$0xff]
  %v226 = vld [vmem:[%s219 + $0x30] sm:$0xff]
  %v227 = vld [vmem:[%s219 + $0x38] sm:$0xff]
  %v229 = vsel %vm35, %v220, 0
  %v232 = vsel %vm35, %v221, 0
  %v235 = vsel %vm35, %v222, 0
  %v238 = vsel %vm35, %v223, 0
  %v241 = vsel %vm35, %v224, 0
  %v244 = vsel %vm35, %v225, 0
  %v247 = vsel %vm35, %v226, 0
  %v250 = vsel %vm35, %v227, 0
  %252 = vmatprep.subr.mxu0 0.0
  %253 = vmatpush1.msra.mxu0 %v23
  %254 = vmatprep.subr.mxu0 0.0
  %255 = vmatpush1.msra.mxu0 %v24
  %256 = vmatprep.subr.mxu0 0.0
  %257 = vmatpush1.msra.mxu0 %v25
  %258 = vmatprep.subr.mxu0 0.0
  %259 = vmatpush1.msra.mxu0 %v26
  %260 = vmatprep.subr.mxu0 0.0
  %261 = vmatpush1.msra.mxu0 0.0
  %262 = vmatprep.subr.mxu0 0.0
  %263 = vmatpush1.msra.mxu0 0.0
  %264 = vmatprep.subr.mxu0 0.0
  %265 = vmatpush1.msra.mxu0 0.0
  %266 = vmatprep.subr.mxu0 0.0
  %267 = vmatpush1.msra.mxu0 0.0
  %268 = vmatprep.subr.mxu0 0.0
  %269 = vmatpush1.msra.mxu0 0.0
  %270 = vmatprep.subr.mxu0 0.0
  %271 = vmatpush1.msra.mxu0 0.0
  %272 = vmatprep.subr.mxu0 0.0
  %273 = vmatpush1.msra.mxu0 0.0
  %274 = vmatprep.subr.mxu0 0.0
  %275 = vmatpush1.msra.mxu0 0.0
  %276 = vmatprep.subr.mxu0 0.0
  %277 = vmatpush1.msra.mxu0 0.0
  %278 = vmatprep.subr.mxu0 0.0
  %279 = vmatpush1.msra.mxu0 0.0
  %280 = vmatprep.subr.mxu0 0.0
  %281 = vmatpush1.msra.mxu0 0.0
  %282 = vmatprep.subr.mxu0 0.0
  %283 = vmatpush1.msra.mxu0 0.0
  %284 = vmatprep.subr.mxu0 0.0
  %285 = vmatpush1.msra.mxu0 0.0
  %286 = vmatprep.subr.mxu0 0.0
  %287 = vmatpush1.msra.mxu0 0.0
  %288 = vmatprep.subr.mxu0 0.0
  %289 = vmatpush1.msra.mxu0 0.0
  %290 = vmatprep.subr.mxu0 0.0
  %291 = vmatpush1.msra.mxu0 0.0
  %292 = vmatprep.subr.mxu0 0.0
  %293 = vmatpush1.msra.mxu0 0.0
  %294 = vmatprep.subr.mxu0 0.0
  %295 = vmatpush1.msra.mxu0 0.0
  %296 = vmatprep.subr.mxu0 0.0
  %297 = vmatpush1.msra.mxu0 0.0
  %298 = vmatprep.subr.mxu0 0.0
  %299 = vmatpush1.msra.mxu0 0.0
  %300 = vmatprep.subr.mxu0 0.0
  %301 = vmatpush1.msra.mxu0 0.0
  %302 = vmatprep.subr.mxu0 0.0
  %303 = vmatpush1.msra.mxu0 0.0
  %304 = vmatprep.subr.mxu0 0.0
  %305 = vmatpush1.msra.mxu0 0.0
  %306 = vmatprep.subr.mxu0 0.0
  %307 = vmatpush1.msra.mxu0 0.0
  %308 = vmatprep.subr.mxu0 0.0
  %309 = vmatpush1.msra.mxu0 0.0
  %310 = vmatprep.subr.mxu0 0.0
  %311 = vmatpush1.msra.mxu0 0.0
  %312 = vmatprep.subr.mxu0 0.0
  %313 = vmatpush1.msra.mxu0 0.0
  %314 = vmatprep.subr.mxu0 0.0
  %315 = vmatpush1.msra.mxu0 0.0
  %316 = vmatprep.mubr.f32.mxu0 0.0
  %317 = vmatmul.mubr.f32.gmra.mrb[0].mxu0 %v229
  %v318 = vpop.f32.mrb[0].mxu0
  %v319 = vadd.f32 0.0, %v318
  %v320 = vpop.f32.mrb[0].mxu0
  %321 = vmatprep.mubr.f32.mxu0 0.0
  %322 = vmatmul.mubr.f32.gmra.mrb[0].mxu0 %v232
  %v323 = vpop.f32.mrb[0].mxu0
  %v324 = vadd.f32 0.0, %v323
  %v325 = vpop.f32.mrb[0].mxu0
  %326 = vmatprep.mubr.f32.mxu0 0.0
  %327 = vmatmul.mubr.f32.gmra.mrb[0].mxu0 %v235
  %v328 = vpop.f32.mrb[0].mxu0
  %v329 = vadd.f32 0.0, %v328
  %v330 = vpop.f32.mrb[0].mxu0
  %331 = vmatprep.mubr.f32.mxu0 0.0
  %332 = vmatmul.mubr.f32.gmra.mrb[0].mxu0 %v238
  %v333 = vpop.f32.mrb[0].mxu0
  %v334 = vadd.f32 0.0, %v333
  %v335 = vpop.f32.mrb[0].mxu0
  %336 = vmatprep.mubr.f32.mxu0 0.0
  %337 = vmatmul.mubr.f32.gmra.mrb[0].mxu0 %v241
  %v338 = vpop.f32.mrb[0].mxu0
  %v339 = vadd.f32 0.0, %v338
  %v340 = vpop.f32.mrb[0].mxu0
  %341 = vmatprep.mubr.f32.mxu0 0.0
  %342 = vmatmul.mubr.f32.gmra.mrb[0].mxu0 %v244
  %v343 = vpop.f32.mrb[0].mxu0
  %v344 = vadd.f32 0.0, %v343
  %v345 = vpop.f32.mrb[0].mxu0
  %346 = vmatprep.mubr.f32.mxu0 0.0
  %347 = vmatmul.mubr.f32.gmra.mrb[0].mxu0 %v247
  %v348 = vpop.f32.mrb[0].mxu0
  %v349 = vadd.f32 0.0, %v348
  %v350 = vpop.f32.mrb[0].mxu0
  %351 = vmatprep.mubr.f32.mxu0 0.0
  %352 = vmatmul.mubr.f32.gmra.mrb[0].mxu0 %v250
  %v353 = vpop.f32.mrb[0].mxu0
  %v354 = vadd.f32 0.0, %v353
  %v355 = vpop.f32.mrb[0].mxu0
  %356 = vdwg.mxu0
  %v357 = vadd.f32 %v211, %v319
  %v358 = vadd.f32 %v212, %v324
  %v359 = vadd.f32 %v213, %v329
  %v360 = vadd.f32 %v214, %v334
  %v361 = vadd.f32 %v215, %v339
  %v362 = vadd.f32 %v216, %v344
  %v363 = vadd.f32 %v217, %v349
  %v364 = vadd.f32 %v218, %v354
  %s365 = scalar_lea.vmem %s2, 128
  %v366 = vld [vmem:[%s365] sm:$0xff]
  %v367 = vld [vmem:[%s365 + $0x8] sm:$0xff]
  %v368 = vld [vmem:[%s365 + $0x10] sm:$0xff]
  %v369 = vld [vmem:[%s365 + $0x18] sm:$0xff]
  %v370 = vld [vmem:[%s365 + $0x20] sm:$0xff]
  %v371 = vld [vmem:[%s365 + $0x28] sm:$0xff]
  %v372 = vld [vmem:[%s365 + $0x30] sm:$0xff]
  %v373 = vld [vmem:[%s365 + $0x38] sm:$0xff]
  %v375 = vsel %vm35, %v366, 0
  %v378 = vsel %vm35, %v367, 0
  %v381 = vsel %vm35, %v368, 0
  %v384 = vsel %vm35, %v369, 0
  %v387 = vsel %vm35, %v370, 0
  %v390 = vsel %vm35, %v371, 0
  %v393 = vsel %vm35, %v372, 0
  %v396 = vsel %vm35, %v373, 0
  %398 = vmatprep.subr.mxu0 0.0
  %399 = vmatpush1.msra.mxu0 %v23
  %400 = vmatprep.subr.mxu0 0.0
  %401 = vmatpush1.msra.mxu0 %v24
  %402 = vmatprep.subr.mxu0 0.0
  %403 = vmatpush1.msra.mxu0 %v25
  %404 = vmatprep.subr.mxu0 0.0
  %405 = vmatpush1.msra.mxu0 %v26
  %406 = vmatprep.subr.mxu0 0.0
  %407 = vmatpush1.msra.mxu0 0.0
  %408 = vmatprep.subr.mxu0 0.0
  %409 = vmatpush1.msra.mxu0 0.0
  %410 = vmatprep.subr.mxu0 0.0
  %411 = vmatpush1.msra.mxu0 0.0
  %412 = vmatprep.subr.mxu0 0.0
  %413 = vmatpush1.msra.mxu0 0.0
  %414 = vmatprep.subr.mxu0 0.0
  %415 = vmatpush1.msra.mxu0 0.0
  %416 = vmatprep.subr.mxu0 0.0
  %417 = vmatpush1.msra.mxu0 0.0
  %418 = vmatprep.subr.mxu0 0.0
  %419 = vmatpush1.msra.mxu0 0.0
  %420 = vmatprep.subr.mxu0 0.0
  %421 = vmatpush1.msra.mxu0 0.0
  %422 = vmatprep.subr.mxu0 0.0
  %423 = vmatpush1.msra.mxu0 0.0
  %424 = vmatprep.subr.mxu0 0.0
  %425 = vmatpush1.msra.mxu0 0.0
  %426 = vmatprep.subr.mxu0 0.0
  %427 = vmatpush1.msra.mxu0 0.0
  %428 = vmatprep.subr.mxu0 0.0
  %429 = vmatpush1.msra.mxu0 0.0
  %430 = vmatprep.subr.mxu0 0.0
  %431 = vmatpush1.msra.mxu0 0.0
  %432 = vmatprep.subr.mxu0 0.0
  %433 = vmatpush1.msra.mxu0 0.0
  %434 = vmatprep.subr.mxu0 0.0
  %435 = vmatpush1.msra.mxu0 0.0
  %436 = vmatprep.subr.mxu0 0.0
  %437 = vmatpush1.msra.mxu0 0.0
  %438 = vmatprep.subr.mxu0 0.0
  %439 = vmatpush1.msra.mxu0 0.0
  %440 = vmatprep.subr.mxu0 0.0
  %441 = vmatpush1.msra.mxu0 0.0
  %442 = vmatprep.subr.mxu0 0.0
  %443 = vmatpush1.msra.mxu0 0.0
  %444 = vmatprep.subr.mxu0 0.0
  %445 = vmatpush1.msra.mxu0 0.0
  %446 = vmatprep.subr.mxu0 0.0
  %447 = vmatpush1.msra.mxu0 0.0
  %448 = vmatprep.subr.mxu0 0.0
  %449 = vmatpush1.msra.mxu0 0.0
  %450 = vmatprep.subr.mxu0 0.0
  %451 = vmatpush1.msra.mxu0 0.0
  %452 = vmatprep.subr.mxu0 0.0
  %453 = vmatpush1.msra.mxu0 0.0
  %454 = vmatprep.subr.mxu0 0.0
  %455 = vmatpush1.msra.mxu0 0.0
  %456 = vmatprep.subr.mxu0 0.0
  %457 = vmatpush1.msra.mxu0 0.0
  %458 = vmatprep.subr.mxu0 0.0
  %459 = vmatpush1.msra.mxu0 0.0
  %460 = vmatprep.subr.mxu0 0.0
  %461 = vmatpush1.msra.mxu0 0.0
  %462 = vmatprep.mubr.f32.mxu0 0.0
  %463 = vmatmul.mubr.f32.gmra.mrb[0].mxu0 %v375
  %v464 = vpop.f32.mrb[0].mxu0
  %v465 = vadd.f32 0.0, %v464
  %v466 = vpop.f32.mrb[0].mxu0
  %467 = vmatprep.mubr.f32.mxu0 0.0
  %468 = vmatmul.mubr.f32.gmra.mrb[0].mxu0 %v378
  %v469 = vpop.f32.mrb[0].mxu0
  %v470 = vadd.f32 0.0, %v469
  %v471 = vpop.f32.mrb[0].mxu0
  %472 = vmatprep.mubr.f32.mxu0 0.0
  %473 = vmatmul.mubr.f32.gmra.mrb[0].mxu0 %v381
  %v474 = vpop.f32.mrb[0].mxu0
  %v475 = vadd.f32 0.0, %v474
  %v476 = vpop.f32.mrb[0].mxu0
  %477 = vmatprep.mubr.f32.mxu0 0.0
  %478 = vmatmul.mubr.f32.gmra.mrb[0].mxu0 %v384
  %v479 = vpop.f32.mrb[0].mxu0
  %v480 = vadd.f32 0.0, %v479
  %v481 = vpop.f32.mrb[0].mxu0
  %482 = vmatprep.mubr.f32.mxu0 0.0
  %483 = vmatmul.mubr.f32.gmra.mrb[0].mxu0 %v387
  %v484 = vpop.f32.mrb[0].mxu0
  %v485 = vadd.f32 0.0, %v484
  %v486 = vpop.f32.mrb[0].mxu0
  %487 = vmatprep.mubr.f32.mxu0 0.0
  %488 = vmatmul.mubr.f32.gmra.mrb[0].mxu0 %v390
  %v489 = vpop.f32.mrb[0].mxu0
  %v490 = vadd.f32 0.0, %v489
  %v491 = vpop.f32.mrb[0].mxu0
  %492 = vmatprep.mubr.f32.mxu0 0.0
  %493 = vmatmul.mubr.f32.gmra.mrb[0].mxu0 %v393
  %v494 = vpop.f32.mrb[0].mxu0
  %v495 = vadd.f32 0.0, %v494
  %v496 = vpop.f32.mrb[0].mxu0
  %497 = vmatprep.mubr.f32.mxu0 0.0
  %498 = vmatmul.mubr.f32.gmra.mrb[0].mxu0 %v396
  %v499 = vpop.f32.mrb[0].mxu0
  %v500 = vadd.f32 0.0, %v499
  %v501 = vpop.f32.mrb[0].mxu0
  %502 = vdwg.mxu0
  %511 = vrot.lane.b32.xlu0 %v465, 127
  %v512 = vpop.permute.xlu0 %511
  %513 = vrot.lane.b32.xlu0 %v470, 127
  %v514 = vpop.permute.xlu0 %513
  %515 = vrot.lane.b32.xlu0 %v475, 127
  %v516 = vpop.permute.xlu0 %515
  %517 = vrot.lane.b32.xlu0 %v480, 127
  %v518 = vpop.permute.xlu0 %517
  %519 = vrot.lane.b32.xlu0 %v485, 127
  %v520 = vpop.permute.xlu0 %519
  %521 = vrot.lane.b32.xlu0 %v490, 127
  %v522 = vpop.permute.xlu0 %521
  %523 = vrot.lane.b32.xlu0 %v495, 127
  %v524 = vpop.permute.xlu0 %523
  %525 = vrot.lane.b32.xlu0 %v500, 127
  %v526 = vpop.permute.xlu0 %525
  %vm535 = vcmask 252928
  %v536 = vsel %vm535, %v512, 0.0
  %v537 = vsel %vm535, %v514, 0.0
  %v538 = vsel %vm535, %v516, 0.0
  %v539 = vsel %vm535, %v518, 0.0
  %v540 = vsel %vm535, %v520, 0.0
  %v541 = vsel %vm535, %v522, 0.0
  %v542 = vsel %vm535, %v524, 0.0
  %v543 = vsel %vm535, %v526, 0.0
  %v544 = vld [vmem:[%s1 + $0x2] sm:$0x1]
  %v545 = vlaneseq
  %v546 = vshrl.u32 %v545, 7
  %v547 = vsub.s32 0, %v546
  %v548 = vrot.slane %v544, %v547
  %v549 = vmul.f32 %v536, %v548
  %v550 = vmul.f32 %v537, %v548
  %v551 = vmul.f32 %v538, %v548
  %v552 = vmul.f32 %v539, %v548
  %v553 = vmul.f32 %v540, %v548
  %v554 = vmul.f32 %v541, %v548
  %v555 = vmul.f32 %v542, %v548
  %v556 = vmul.f32 %v543, %v548
  %v557 = vadd.f32 %v357, %v549
  %v558 = vadd.f32 %v358, %v550
  %v559 = vadd.f32 %v359, %v551
  %v560 = vadd.f32 %v360, %v552
  %v561 = vadd.f32 %v361, %v553
  %v562 = vadd.f32 %v362, %v554
  %v563 = vadd.f32 %v363, %v555
  %v564 = vadd.f32 %v364, %v556
  %v565 = vld [vmem:[%s3] sm:$0xff]
  %v566 = vld [vmem:[%s3 + $0x8] sm:$0xff]
  %v567 = vld [vmem:[%s3 + $0x10] sm:$0xff]
  %v568 = vld [vmem:[%s3 + $0x18] sm:$0xff]
  %v569 = vld [vmem:[%s3 + $0x20] sm:$0xff]
  %v570 = vld [vmem:[%s3 + $0x28] sm:$0xff]
  %v571 = vld [vmem:[%s3 + $0x30] sm:$0xff]
  %v572 = vld [vmem:[%s3 + $0x38] sm:$0xff]
  %574 = vset.pattern.permute.xlu0 0
  %575 = vperm.xlu0 %574, %v565
  %v576 = vpop.permute.xlu0 %575
  %579 = vset.pattern.permute.xlu0 0
  %580 = vperm.xlu0 %579, %v566
  %v581 = vpop.permute.xlu0 %580
  %584 = vset.pattern.permute.xlu0 0
  %585 = vperm.xlu0 %584, %v567
  %v586 = vpop.permute.xlu0 %585
  %589 = vset.pattern.permute.xlu0 0
  %590 = vperm.xlu0 %589, %v568
  %v591 = vpop.permute.xlu0 %590
  %594 = vset.pattern.permute.xlu0 0
  %595 = vperm.xlu0 %594, %v569
  %v596 = vpop.permute.xlu0 %595
  %599 = vset.pattern.permute.xlu0 0
  %600 = vperm.xlu0 %599, %v570
  %v601 = vpop.permute.xlu0 %600
  %604 = vset.pattern.permute.xlu0 0
  %605 = vperm.xlu0 %604, %v571
  %v606 = vpop.permute.xlu0 %605
  %609 = vset.pattern.permute.xlu0 0
  %610 = vperm.xlu0 %609, %v572
  %v611 = vpop.permute.xlu0 %610
  %v613 = vadd.f32 %v557, %v576
  %v614 = vadd.f32 %v558, %v581
  %v615 = vadd.f32 %v559, %v586
  %v616 = vadd.f32 %v560, %v591
  %v617 = vadd.f32 %v561, %v596
  %v618 = vadd.f32 %v562, %v601
  %v619 = vadd.f32 %v563, %v606
  %v620 = vadd.f32 %v564, %v611
  %v621 = vmax.f32 %v613, 0.0
  %v622 = vmax.f32 %v614, 0.0
  %v623 = vmax.f32 %v615, 0.0
  %v624 = vmax.f32 %v616, 0.0
  %v625 = vmax.f32 %v617, 0.0
  %v626 = vmax.f32 %v618, 0.0
  %v627 = vmax.f32 %v619, 0.0
  %v628 = vmax.f32 %v620, 0.0
  %v629 = vld [vmem:[%s4] sm:$0xff]
  %v630 = vld [vmem:[%s4 + $0x8] sm:$0xff]
  %v631 = vld [vmem:[%s4 + $0x10] sm:$0xff]
  %v632 = vld [vmem:[%s4 + $0x18] sm:$0xff]
  %v633 = vld [vmem:[%s4 + $0x20] sm:$0xff]
  %v634 = vld [vmem:[%s4 + $0x28] sm:$0xff]
  %v635 = vld [vmem:[%s4 + $0x30] sm:$0xff]
  %v636 = vld [vmem:[%s4 + $0x38] sm:$0xff]
  %vm637 = vcmask 523264
  %v639 = vsel %vm637, %v629, 0
  %v642 = vsel %vm637, %v630, 0
  %v645 = vsel %vm637, %v631, 0
  %v648 = vsel %vm637, %v632, 0
  %v651 = vsel %vm637, %v633, 0
  %v654 = vsel %vm637, %v634, 0
  %v657 = vsel %vm637, %v635, 0
  %v660 = vsel %vm637, %v636, 0
  %662 = vmatprep.subr.mxu0 0.0
  %663 = vmatpush1.msra.mxu0 %v621
  %664 = vmatprep.subr.mxu0 0.0
  %665 = vmatpush1.msra.mxu0 %v622
  %666 = vmatprep.subr.mxu0 0.0
  %667 = vmatpush1.msra.mxu0 %v623
  %668 = vmatprep.subr.mxu0 0.0
  %669 = vmatpush1.msra.mxu0 %v624
  %670 = vmatprep.subr.mxu0 0.0
  %671 = vmatpush1.msra.mxu0 %v625
  %672 = vmatprep.subr.mxu0 0.0
  %673 = vmatpush1.msra.mxu0 %v626
  %674 = vmatprep.subr.mxu0 0.0
  %675 = vmatpush1.msra.mxu0 %v627
  %676 = vmatprep.subr.mxu0 0.0
  %677 = vmatpush1.msra.mxu0 %v628
  %678 = vmatprep.subr.mxu0 0.0
  %679 = vmatpush1.msra.mxu0 0.0
  %680 = vmatprep.subr.mxu0 0.0
  %681 = vmatpush1.msra.mxu0 0.0
  %682 = vmatprep.subr.mxu0 0.0
  %683 = vmatpush1.msra.mxu0 0.0
  %684 = vmatprep.subr.mxu0 0.0
  %685 = vmatpush1.msra.mxu0 0.0
  %686 = vmatprep.subr.mxu0 0.0
  %687 = vmatpush1.msra.mxu0 0.0
  %688 = vmatprep.subr.mxu0 0.0
  %689 = vmatpush1.msra.mxu0 0.0
  %690 = vmatprep.subr.mxu0 0.0
  %691 = vmatpush1.msra.mxu0 0.0
  %692 = vmatprep.subr.mxu0 0.0
  %693 = vmatpush1.msra.mxu0 0.0
  %694 = vmatprep.subr.mxu0 0.0
  %695 = vmatpush1.msra.mxu0 0.0
  %696 = vmatprep.subr.mxu0 0.0
  %697 = vmatpush1.msra.mxu0 0.0
  %698 = vmatprep.subr.mxu0 0.0
  %699 = vmatpush1.msra.mxu0 0.0
  %700 = vmatprep.subr.mxu0 0.0
  %701 = vmatpush1.msra.mxu0 0.0
  %702 = vmatprep.subr.mxu0 0.0
  %703 = vmatpush1.msra.mxu0 0.0
  %704 = vmatprep.subr.mxu0 0.0
  %705 = vmatpush1.msra.mxu0 0.0
  %706 = vmatprep.subr.mxu0 0.0
  %707 = vmatpush1.msra.mxu0 0.0
  %708 = vmatprep.subr.mxu0 0.0
  %709 = vmatpush1.msra.mxu0 0.0
  %710 = vmatprep.subr.mxu0 0.0
  %711 = vmatpush1.msra.mxu0 0.0
  %712 = vmatprep.subr.mxu0 0.0
  %713 = vmatpush1.msra.mxu0 0.0
  %714 = vmatprep.subr.mxu0 0.0
  %715 = vmatpush1.msra.mxu0 0.0
  %716 = vmatprep.subr.mxu0 0.0
  %717 = vmatpush1.msra.mxu0 0.0
  %718 = vmatprep.subr.mxu0 0.0
  %719 = vmatpush1.msra.mxu0 0.0
  %720 = vmatprep.subr.mxu0 0.0
  %721 = vmatpush1.msra.mxu0 0.0
  %722 = vmatprep.subr.mxu0 0.0
  %723 = vmatpush1.msra.mxu0 0.0
  %724 = vmatprep.subr.mxu0 0.0
  %725 = vmatpush1.msra.mxu0 0.0
  %726 = vmatprep.mubr.f32.mxu0 0.0
  %727 = vmatmul.mubr.f32.gmra.mrb[0].mxu0 %v639
  %v728 = vpop.f32.mrb[0].mxu0
  %v729 = vadd.f32 0.0, %v728
  %v730 = vpop.f32.mrb[0].mxu0
  %731 = vmatprep.mubr.f32.mxu0 0.0
  %732 = vmatmul.mubr.f32.gmra.mrb[0].mxu0 %v642
  %v733 = vpop.f32.mrb[0].mxu0
  %v734 = vadd.f32 0.0, %v733
  %v735 = vpop.f32.mrb[0].mxu0
  %736 = vmatprep.mubr.f32.mxu0 0.0
  %737 = vmatmul.mubr.f32.gmra.mrb[0].mxu0 %v645
  %v738 = vpop.f32.mrb[0].mxu0
  %v739 = vadd.f32 0.0, %v738
  %v740 = vpop.f32.mrb[0].mxu0
  %741 = vmatprep.mubr.f32.mxu0 0.0
  %742 = vmatmul.mubr.f32.gmra.mrb[0].mxu0 %v648
  %v743 = vpop.f32.mrb[0].mxu0
  %v744 = vadd.f32 0.0, %v743
  %v745 = vpop.f32.mrb[0].mxu0
  %746 = vmatprep.mubr.f32.mxu0 0.0
  %747 = vmatmul.mubr.f32.gmra.mrb[0].mxu0 %v651
  %v748 = vpop.f32.mrb[0].mxu0
  %v749 = vadd.f32 0.0, %v748
  %v750 = vpop.f32.mrb[0].mxu0
  %751 = vmatprep.mubr.f32.mxu0 0.0
  %752 = vmatmul.mubr.f32.gmra.mrb[0].mxu0 %v654
  %v753 = vpop.f32.mrb[0].mxu0
  %v754 = vadd.f32 0.0, %v753
  %v755 = vpop.f32.mrb[0].mxu0
  %756 = vmatprep.mubr.f32.mxu0 0.0
  %757 = vmatmul.mubr.f32.gmra.mrb[0].mxu0 %v657
  %v758 = vpop.f32.mrb[0].mxu0
  %v759 = vadd.f32 0.0, %v758
  %v760 = vpop.f32.mrb[0].mxu0
  %761 = vmatprep.mubr.f32.mxu0 0.0
  %762 = vmatmul.mubr.f32.gmra.mrb[0].mxu0 %v660
  %v763 = vpop.f32.mrb[0].mxu0
  %v764 = vadd.f32 0.0, %v763
  %v765 = vpop.f32.mrb[0].mxu0
  %766 = vdwg.mxu0
  %775 = vrot.lane.b32.xlu0 %v729, 1
  %v776 = vpop.permute.xlu0 %775
  %777 = vrot.lane.b32.xlu0 %v734, 1
  %v778 = vpop.permute.xlu0 %777
  %779 = vrot.lane.b32.xlu0 %v739, 1
  %v780 = vpop.permute.xlu0 %779
  %781 = vrot.lane.b32.xlu0 %v744, 1
  %v782 = vpop.permute.xlu0 %781
  %783 = vrot.lane.b32.xlu0 %v749, 1
  %v784 = vpop.permute.xlu0 %783
  %785 = vrot.lane.b32.xlu0 %v754, 1
  %v786 = vpop.permute.xlu0 %785
  %787 = vrot.lane.b32.xlu0 %v759, 1
  %v788 = vpop.permute.xlu0 %787
  %789 = vrot.lane.b32.xlu0 %v764, 1
  %v790 = vpop.permute.xlu0 %789
  %v799 = vsel %vm197, 0.0, %v776
  %v800 = vsel %vm197, 0.0, %v778
  %v801 = vsel %vm197, 0.0, %v780
  %v802 = vsel %vm197, 0.0, %v782
  %v803 = vsel %vm197, 0.0, %v784
  %v804 = vsel %vm197, 0.0, %v786
  %v805 = vsel %vm197, 0.0, %v788
  %v806 = vsel %vm197, 0.0, %v790
  %v807 = vmul.f32 %v799, %v210
  %v808 = vmul.f32 %v800, %v210
  %v809 = vmul.f32 %v801, %v210
  %v810 = vmul.f32 %v802, %v210
  %v811 = vmul.f32 %v803, %v210
  %v812 = vmul.f32 %v804, %v210
  %v813 = vmul.f32 %v805, %v210
  %v814 = vmul.f32 %v806, %v210
  %s815 = scalar_lea.vmem %s4, 64
  %v816 = vld [vmem:[%s815] sm:$0xff]
  %v817 = vld [vmem:[%s815 + $0x8] sm:$0xff]
  %v818 = vld [vmem:[%s815 + $0x10] sm:$0xff]
  %v819 = vld [vmem:[%s815 + $0x18] sm:$0xff]
  %v820 = vld [vmem:[%s815 + $0x20] sm:$0xff]
  %v821 = vld [vmem:[%s815 + $0x28] sm:$0xff]
  %v822 = vld [vmem:[%s815 + $0x30] sm:$0xff]
  %v823 = vld [vmem:[%s815 + $0x38] sm:$0xff]
  %v825 = vsel %vm637, %v816, 0
  %v828 = vsel %vm637, %v817, 0
  %v831 = vsel %vm637, %v818, 0
  %v834 = vsel %vm637, %v819, 0
  %v837 = vsel %vm637, %v820, 0
  %v840 = vsel %vm637, %v821, 0
  %v843 = vsel %vm637, %v822, 0
  %v846 = vsel %vm637, %v823, 0
  %848 = vmatprep.subr.mxu0 0.0
  %849 = vmatpush1.msra.mxu0 %v621
  %850 = vmatprep.subr.mxu0 0.0
  %851 = vmatpush1.msra.mxu0 %v622
  %852 = vmatprep.subr.mxu0 0.0
  %853 = vmatpush1.msra.mxu0 %v623
  %854 = vmatprep.subr.mxu0 0.0
  %855 = vmatpush1.msra.mxu0 %v624
  %856 = vmatprep.subr.mxu0 0.0
  %857 = vmatpush1.msra.mxu0 %v625
  %858 = vmatprep.subr.mxu0 0.0
  %859 = vmatpush1.msra.mxu0 %v626
  %860 = vmatprep.subr.mxu0 0.0
  %861 = vmatpush1.msra.mxu0 %v627
  %862 = vmatprep.subr.mxu0 0.0
  %863 = vmatpush1.msra.mxu0 %v628
  %864 = vmatprep.subr.mxu0 0.0
  %865 = vmatpush1.msra.mxu0 0.0
  %866 = vmatprep.subr.mxu0 0.0
  %867 = vmatpush1.msra.mxu0 0.0
  %868 = vmatprep.subr.mxu0 0.0
  %869 = vmatpush1.msra.mxu0 0.0
  %870 = vmatprep.subr.mxu0 0.0
  %871 = vmatpush1.msra.mxu0 0.0
  %872 = vmatprep.subr.mxu0 0.0
  %873 = vmatpush1.msra.mxu0 0.0
  %874 = vmatprep.subr.mxu0 0.0
  %875 = vmatpush1.msra.mxu0 0.0
  %876 = vmatprep.subr.mxu0 0.0
  %877 = vmatpush1.msra.mxu0 0.0
  %878 = vmatprep.subr.mxu0 0.0
  %879 = vmatpush1.msra.mxu0 0.0
  %880 = vmatprep.subr.mxu0 0.0
  %881 = vmatpush1.msra.mxu0 0.0
  %882 = vmatprep.subr.mxu0 0.0
  %883 = vmatpush1.msra.mxu0 0.0
  %884 = vmatprep.subr.mxu0 0.0
  %885 = vmatpush1.msra.mxu0 0.0
  %886 = vmatprep.subr.mxu0 0.0
  %887 = vmatpush1.msra.mxu0 0.0
  %888 = vmatprep.subr.mxu0 0.0
  %889 = vmatpush1.msra.mxu0 0.0
  %890 = vmatprep.subr.mxu0 0.0
  %891 = vmatpush1.msra.mxu0 0.0
  %892 = vmatprep.subr.mxu0 0.0
  %893 = vmatpush1.msra.mxu0 0.0
  %894 = vmatprep.subr.mxu0 0.0
  %895 = vmatpush1.msra.mxu0 0.0
  %896 = vmatprep.subr.mxu0 0.0
  %897 = vmatpush1.msra.mxu0 0.0
  %898 = vmatprep.subr.mxu0 0.0
  %899 = vmatpush1.msra.mxu0 0.0
  %900 = vmatprep.subr.mxu0 0.0
  %901 = vmatpush1.msra.mxu0 0.0
  %902 = vmatprep.subr.mxu0 0.0
  %903 = vmatpush1.msra.mxu0 0.0
  %904 = vmatprep.subr.mxu0 0.0
  %905 = vmatpush1.msra.mxu0 0.0
  %906 = vmatprep.subr.mxu0 0.0
  %907 = vmatpush1.msra.mxu0 0.0
  %908 = vmatprep.subr.mxu0 0.0
  %909 = vmatpush1.msra.mxu0 0.0
  %910 = vmatprep.subr.mxu0 0.0
  %911 = vmatpush1.msra.mxu0 0.0
  %912 = vmatprep.mubr.f32.mxu0 0.0
  %913 = vmatmul.mubr.f32.gmra.mrb[0].mxu0 %v825
  %v914 = vpop.f32.mrb[0].mxu0
  %v915 = vadd.f32 0.0, %v914
  %v916 = vpop.f32.mrb[0].mxu0
  %917 = vmatprep.mubr.f32.mxu0 0.0
  %918 = vmatmul.mubr.f32.gmra.mrb[0].mxu0 %v828
  %v919 = vpop.f32.mrb[0].mxu0
  %v920 = vadd.f32 0.0, %v919
  %v921 = vpop.f32.mrb[0].mxu0
  %922 = vmatprep.mubr.f32.mxu0 0.0
  %923 = vmatmul.mubr.f32.gmra.mrb[0].mxu0 %v831
  %v924 = vpop.f32.mrb[0].mxu0
  %v925 = vadd.f32 0.0, %v924
  %v926 = vpop.f32.mrb[0].mxu0
  %927 = vmatprep.mubr.f32.mxu0 0.0
  %928 = vmatmul.mubr.f32.gmra.mrb[0].mxu0 %v834
  %v929 = vpop.f32.mrb[0].mxu0
  %v930 = vadd.f32 0.0, %v929
  %v931 = vpop.f32.mrb[0].mxu0
  %932 = vmatprep.mubr.f32.mxu0 0.0
  %933 = vmatmul.mubr.f32.gmra.mrb[0].mxu0 %v837
  %v934 = vpop.f32.mrb[0].mxu0
  %v935 = vadd.f32 0.0, %v934
  %v936 = vpop.f32.mrb[0].mxu0
  %937 = vmatprep.mubr.f32.mxu0 0.0
  %938 = vmatmul.mubr.f32.gmra.mrb[0].mxu0 %v840
  %v939 = vpop.f32.mrb[0].mxu0
  %v940 = vadd.f32 0.0, %v939
  %v941 = vpop.f32.mrb[0].mxu0
  %942 = vmatprep.mubr.f32.mxu0 0.0
  %943 = vmatmul.mubr.f32.gmra.mrb[0].mxu0 %v843
  %v944 = vpop.f32.mrb[0].mxu0
  %v945 = vadd.f32 0.0, %v944
  %v946 = vpop.f32.mrb[0].mxu0
  %947 = vmatprep.mubr.f32.mxu0 0.0
  %948 = vmatmul.mubr.f32.gmra.mrb[0].mxu0 %v846
  %v949 = vpop.f32.mrb[0].mxu0
  %v950 = vadd.f32 0.0, %v949
  %v951 = vpop.f32.mrb[0].mxu0
  %952 = vdwg.mxu0
  %v953 = vadd.f32 %v807, %v915
  %v954 = vadd.f32 %v808, %v920
  %v955 = vadd.f32 %v809, %v925
  %v956 = vadd.f32 %v810, %v930
  %v957 = vadd.f32 %v811, %v935
  %v958 = vadd.f32 %v812, %v940
  %v959 = vadd.f32 %v813, %v945
  %v960 = vadd.f32 %v814, %v950
  %s961 = scalar_lea.vmem %s4, 128
  %v962 = vld [vmem:[%s961] sm:$0xff]
  %v963 = vld [vmem:[%s961 + $0x8] sm:$0xff]
  %v964 = vld [vmem:[%s961 + $0x10] sm:$0xff]
  %v965 = vld [vmem:[%s961 + $0x18] sm:$0xff]
  %v966 = vld [vmem:[%s961 + $0x20] sm:$0xff]
  %v967 = vld [vmem:[%s961 + $0x28] sm:$0xff]
  %v968 = vld [vmem:[%s961 + $0x30] sm:$0xff]
  %v969 = vld [vmem:[%s961 + $0x38] sm:$0xff]
  %v971 = vsel %vm637, %v962, 0
  %v974 = vsel %vm637, %v963, 0
  %v977 = vsel %vm637, %v964, 0
  %v980 = vsel %vm637, %v965, 0
  %v983 = vsel %vm637, %v966, 0
  %v986 = vsel %vm637, %v967, 0
  %v989 = vsel %vm637, %v968, 0
  %v992 = vsel %vm637, %v969, 0
  %994 = vmatprep.subr.mxu0 0.0
  %995 = vmatpush1.msra.mxu0 %v621
  %996 = vmatprep.subr.mxu0 0.0
  %997 = vmatpush1.msra.mxu0 %v622
  %998 = vmatprep.subr.mxu0 0.0
  %999 = vmatpush1.msra.mxu0 %v623
  %1000 = vmatprep.subr.mxu0 0.0
  %1001 = vmatpush1.msra.mxu0 %v624
  %1002 = vmatprep.subr.mxu0 0.0
  %1003 = vmatpush1.msra.mxu0 %v625
  %1004 = vmatprep.subr.mxu0 0.0
  %1005 = vmatpush1.msra.mxu0 %v626
  %1006 = vmatprep.subr.mxu0 0.0
  %1007 = vmatpush1.msra.mxu0 %v627
  %1008 = vmatprep.subr.mxu0 0.0
  %1009 = vmatpush1.msra.mxu0 %v628
  %1010 = vmatprep.subr.mxu0 0.0
  %1011 = vmatpush1.msra.mxu0 0.0
  %1012 = vmatprep.subr.mxu0 0.0
  %1013 = vmatpush1.msra.mxu0 0.0
  %1014 = vmatprep.subr.mxu0 0.0
  %1015 = vmatpush1.msra.mxu0 0.0
  %1016 = vmatprep.subr.mxu0 0.0
  %1017 = vmatpush1.msra.mxu0 0.0
  %1018 = vmatprep.subr.mxu0 0.0
  %1019 = vmatpush1.msra.mxu0 0.0
  %1020 = vmatprep.subr.mxu0 0.0
  %1021 = vmatpush1.msra.mxu0 0.0
  %1022 = vmatprep.subr.mxu0 0.0
  %1023 = vmatpush1.msra.mxu0 0.0
  %1024 = vmatprep.subr.mxu0 0.0
  %1025 = vmatpush1.msra.mxu0 0.0
  %1026 = vmatprep.subr.mxu0 0.0
  %1027 = vmatpush1.msra.mxu0 0.0
  %1028 = vmatprep.subr.mxu0 0.0
  %1029 = vmatpush1.msra.mxu0 0.0
  %1030 = vmatprep.subr.mxu0 0.0
  %1031 = vmatpush1.msra.mxu0 0.0
  %1032 = vmatprep.subr.mxu0 0.0
  %1033 = vmatpush1.msra.mxu0 0.0
  %1034 = vmatprep.subr.mxu0 0.0
  %1035 = vmatpush1.msra.mxu0 0.0
  %1036 = vmatprep.subr.mxu0 0.0
  %1037 = vmatpush1.msra.mxu0 0.0
  %1038 = vmatprep.subr.mxu0 0.0
  %1039 = vmatpush1.msra.mxu0 0.0
  %1040 = vmatprep.subr.mxu0 0.0
  %1041 = vmatpush1.msra.mxu0 0.0
  %1042 = vmatprep.subr.mxu0 0.0
  %1043 = vmatpush1.msra.mxu0 0.0
  %1044 = vmatprep.subr.mxu0 0.0
  %1045 = vmatpush1.msra.mxu0 0.0
  %1046 = vmatprep.subr.mxu0 0.0
  %1047 = vmatpush1.msra.mxu0 0.0
  %1048 = vmatprep.subr.mxu0 0.0
  %1049 = vmatpush1.msra.mxu0 0.0
  %1050 = vmatprep.subr.mxu0 0.0
  %1051 = vmatpush1.msra.mxu0 0.0
  %1052 = vmatprep.subr.mxu0 0.0
  %1053 = vmatpush1.msra.mxu0 0.0
  %1054 = vmatprep.subr.mxu0 0.0
  %1055 = vmatpush1.msra.mxu0 0.0
  %1056 = vmatprep.subr.mxu0 0.0
  %1057 = vmatpush1.msra.mxu0 0.0
  %1058 = vmatprep.mubr.f32.mxu0 0.0
  %1059 = vmatmul.mubr.f32.gmra.mrb[0].mxu0 %v971
  %v1060 = vpop.f32.mrb[0].mxu0
  %v1061 = vadd.f32 0.0, %v1060
  %v1062 = vpop.f32.mrb[0].mxu0
  %1063 = vmatprep.mubr.f32.mxu0 0.0
  %1064 = vmatmul.mubr.f32.gmra.mrb[0].mxu0 %v974
  %v1065 = vpop.f32.mrb[0].mxu0
  %v1066 = vadd.f32 0.0, %v1065
  %v1067 = vpop.f32.mrb[0].mxu0
  %1068 = vmatprep.mubr.f32.mxu0 0.0
  %1069 = vmatmul.mubr.f32.gmra.mrb[0].mxu0 %v977
  %v1070 = vpop.f32.mrb[0].mxu0
  %v1071 = vadd.f32 0.0, %v1070
  %v1072 = vpop.f32.mrb[0].mxu0
  %1073 = vmatprep.mubr.f32.mxu0 0.0
  %1074 = vmatmul.mubr.f32.gmra.mrb[0].mxu0 %v980
  %v1075 = vpop.f32.mrb[0].mxu0
  %v1076 = vadd.f32 0.0, %v1075
  %v1077 = vpop.f32.mrb[0].mxu0
  %1078 = vmatprep.mubr.f32.mxu0 0.0
  %1079 = vmatmul.mubr.f32.gmra.mrb[0].mxu0 %v983
  %v1080 = vpop.f32.mrb[0].mxu0
  %v1081 = vadd.f32 0.0, %v1080
  %v1082 = vpop.f32.mrb[0].mxu0
  %1083 = vmatprep.mubr.f32.mxu0 0.0
  %1084 = vmatmul.mubr.f32.gmra.mrb[0].mxu0 %v986
  %v1085 = vpop.f32.mrb[0].mxu0
  %v1086 = vadd.f32 0.0, %v1085
  %v1087 = vpop.f32.mrb[0].mxu0
  %1088 = vmatprep.mubr.f32.mxu0 0.0
  %1089 = vmatmul.mubr.f32.gmra.mrb[0].mxu0 %v989
  %v1090 = vpop.f32.mrb[0].mxu0
  %v1091 = vadd.f32 0.0, %v1090
  %v1092 = vpop.f32.mrb[0].mxu0
  %1093 = vmatprep.mubr.f32.mxu0 0.0
  %1094 = vmatmul.mubr.f32.gmra.mrb[0].mxu0 %v992
  %v1095 = vpop.f32.mrb[0].mxu0
  %v1096 = vadd.f32 0.0, %v1095
  %v1097 = vpop.f32.mrb[0].mxu0
  %1098 = vdwg.mxu0
  %1107 = vrot.lane.b32.xlu0 %v1061, 127
  %v1108 = vpop.permute.xlu0 %1107
  %1109 = vrot.lane.b32.xlu0 %v1066, 127
  %v1110 = vpop.permute.xlu0 %1109
  %1111 = vrot.lane.b32.xlu0 %v1071, 127
  %v1112 = vpop.permute.xlu0 %1111
  %1113 = vrot.lane.b32.xlu0 %v1076, 127
  %v1114 = vpop.permute.xlu0 %1113
  %1115 = vrot.lane.b32.xlu0 %v1081, 127
  %v1116 = vpop.permute.xlu0 %1115
  %1117 = vrot.lane.b32.xlu0 %v1086, 127
  %v1118 = vpop.permute.xlu0 %1117
  %1119 = vrot.lane.b32.xlu0 %v1091, 127
  %v1120 = vpop.permute.xlu0 %1119
  %1121 = vrot.lane.b32.xlu0 %v1096, 127
  %v1122 = vpop.permute.xlu0 %1121
  %v1131 = vsel %vm535, %v1108, 0.0
  %v1132 = vsel %vm535, %v1110, 0.0
  %v1133 = vsel %vm535, %v1112, 0.0
  %v1134 = vsel %vm535, %v1114, 0.0
  %v1135 = vsel %vm535, %v1116, 0.0
  %v1136 = vsel %vm535, %v1118, 0.0
  %v1137 = vsel %vm535, %v1120, 0.0
  %v1138 = vsel %vm535, %v1122, 0.0
  %v1139 = vmul.f32 %v1131, %v548
  %v1140 = vmul.f32 %v1132, %v548
  %v1141 = vmul.f32 %v1133, %v548
  %v1142 = vmul.f32 %v1134, %v548
  %v1143 = vmul.f32 %v1135, %v548
  %v1144 = vmul.f32 %v1136, %v548
  %v1145 = vmul.f32 %v1137, %v548
  %v1146 = vmul.f32 %v1138, %v548
  %v1147 = vadd.f32 %v953, %v1139
  %v1148 = vadd.f32 %v954, %v1140
  %v1149 = vadd.f32 %v955, %v1141
  %v1150 = vadd.f32 %v956, %v1142
  %v1151 = vadd.f32 %v957, %v1143
  %v1152 = vadd.f32 %v958, %v1144
  %v1153 = vadd.f32 %v959, %v1145
  %v1154 = vadd.f32 %v960, %v1146
  %v1155 = vld [vmem:[%s5] sm:$0xff]
  %v1156 = vld [vmem:[%s5 + $0x8] sm:$0xff]
  %v1157 = vld [vmem:[%s5 + $0x10] sm:$0xff]
  %v1158 = vld [vmem:[%s5 + $0x18] sm:$0xff]
  %v1159 = vld [vmem:[%s5 + $0x20] sm:$0xff]
  %v1160 = vld [vmem:[%s5 + $0x28] sm:$0xff]
  %v1161 = vld [vmem:[%s5 + $0x30] sm:$0xff]
  %v1162 = vld [vmem:[%s5 + $0x38] sm:$0xff]
  %1164 = vset.pattern.permute.xlu0 0
  %1165 = vperm.xlu0 %1164, %v1155
  %v1166 = vpop.permute.xlu0 %1165
  %1169 = vset.pattern.permute.xlu0 0
  %1170 = vperm.xlu0 %1169, %v1156
  %v1171 = vpop.permute.xlu0 %1170
  %1174 = vset.pattern.permute.xlu0 0
  %1175 = vperm.xlu0 %1174, %v1157
  %v1176 = vpop.permute.xlu0 %1175
  %1179 = vset.pattern.permute.xlu0 0
  %1180 = vperm.xlu0 %1179, %v1158
  %v1181 = vpop.permute.xlu0 %1180
  %1184 = vset.pattern.permute.xlu0 0
  %1185 = vperm.xlu0 %1184, %v1159
  %v1186 = vpop.permute.xlu0 %1185
  %1189 = vset.pattern.permute.xlu0 0
  %1190 = vperm.xlu0 %1189, %v1160
  %v1191 = vpop.permute.xlu0 %1190
  %1194 = vset.pattern.permute.xlu0 0
  %1195 = vperm.xlu0 %1194, %v1161
  %v1196 = vpop.permute.xlu0 %1195
  %1199 = vset.pattern.permute.xlu0 0
  %1200 = vperm.xlu0 %1199, %v1162
  %v1201 = vpop.permute.xlu0 %1200
  %v1203 = vadd.f32 %v1147, %v1166
  %v1204 = vadd.f32 %v1148, %v1171
  %v1205 = vadd.f32 %v1149, %v1176
  %v1206 = vadd.f32 %v1150, %v1181
  %v1207 = vadd.f32 %v1151, %v1186
  %v1208 = vadd.f32 %v1152, %v1191
  %v1209 = vadd.f32 %v1153, %v1196
  %v1210 = vadd.f32 %v1154, %v1201
  %v1211 = vmax.f32 %v1203, 0.0
  %v1212 = vmax.f32 %v1204, 0.0
  %v1213 = vmax.f32 %v1205, 0.0
  %v1214 = vmax.f32 %v1206, 0.0
  %v1215 = vmax.f32 %v1207, 0.0
  %v1216 = vmax.f32 %v1208, 0.0
  %v1217 = vmax.f32 %v1209, 0.0
  %v1218 = vmax.f32 %v1210, 0.0
  %1219 = vst.msk [vmem:[%s6] sm:$0xff] %vm35, %v1211
  %1220 = vst.msk [vmem:[%s6 + $0x8] sm:$0xff] %vm35, %v1212
  %1221 = vst.msk [vmem:[%s6 + $0x10] sm:$0xff] %vm35, %v1213
  %1222 = vst.msk [vmem:[%s6 + $0x18] sm:$0xff] %vm35, %v1214
  %1223 = vst.msk [vmem:[%s6 + $0x20] sm:$0xff] %vm35, %v1215
  %1224 = vst.msk [vmem:[%s6 + $0x28] sm:$0xff] %vm35, %v1216
  %1225 = vst.msk [vmem:[%s6 + $0x30] sm:$0xff] %vm35, %v1217
  %1226 = vst.msk [vmem:[%s6 + $0x38] sm:$0xff] %vm35, %v1218
  // Predicated region
  $region26: #{down_seq_forward.7} parent=0 // pred_check
    _
  $region27: #{down_seq_forward.7} parent=0 // pred_check_branch
    %1228 = sbr.rel (0) target = $region29
  $region28: #{down_seq_forward.7} parent=0 // pred_region
    _
  $region29: #{down_seq_forward.7} parent=0 // pred_fallthru
    _
  // Predicated region
  $region30: #{down_seq_forward.7} parent=0 // pred_check
    _
  $region31: #{down_seq_forward.7} parent=0 // pred_check_branch
    %1230 = sbr.rel (0) target = $region33
  $region32: #{down_seq_forward.7} parent=0 // pred_region
    _
  $region33: #{down_seq_forward.7} parent=0 // pred_fallthru
    _

</llo_original>
